<compile_context>
chip_gen: v7x
topology: tpu7x:2x2x1
jax: 0.10.0
libtpu: 0.0.40
codegen_flags: <defaults>
</compile_context>

<pallas_src>
import math
import jax
import jax.numpy as jnp
from jax.experimental import pallas as pl
from jax.experimental.pallas import tpu as pltpu

# ---- hyper-parameters (the `args` object) ----
B = 2
SEQ_LEN = 8
D_MODEL = 32
N_HEAD = 4
D_K = D_MODEL // N_HEAD
D_FF = 64
N_LAYERS = 2
N_VOCAB = 50
PADDING_IDX = 0
MAX_LEN = 16
EPS = 1e-8
GELU_C = math.sqrt(2.0 / math.pi)
BS = B * SEQ_LEN
SCALE = 1.0 / math.sqrt(D_K)

# ---- packed-operand layout constants ----
# wd slab (D_MODEL rows): [ wq_0 | wq_1 | wk_0 wv_0 wk_1 wv_1 | w1_0 | w1_1 ]
WQ_OFF = 0
WKV_OFF = WQ_OFF + N_LAYERS * D_MODEL          # fused enc-side K/V weights
W1_OFF = WKV_OFF + N_LAYERS * 2 * D_MODEL
WD_COLS = W1_OFF + N_LAYERS * D_FF
# wff slab (D_FF rows): [ w2_0 | w2_1 ]
# b_all slab, one row per layer: [ bq | bk | bv | b1 | b2 | gamma | beta ]
BQ_OFF = 0
BK_OFF = BQ_OFF + D_MODEL
BV_OFF = BK_OFF + D_MODEL
B1_OFF = BV_OFF + D_MODEL
B2_OFF = B1_OFF + D_FF
G_OFF = B2_OFF + D_MODEL
BE_OFF = G_OFF + D_MODEL
B_COLS = BE_OFF + D_MODEL


# -------------------- shared math helpers ------------------------------------

def _gelu(x):
    return 0.5 * x * (1.0 + jnp.tanh(GELU_C * (x + 0.0044715 * x ** 3)))


def _layer_norm(a, gamma, beta):
    # torch: mean/std over last dim, std is unbiased (N-1), eps added to std.
    mean = jnp.mean(a, axis=-1, keepdims=True)
    var = jnp.sum((a - mean) ** 2, axis=-1, keepdims=True) / (a.shape[-1] - 1)
    denom = jnp.sqrt(var) + EPS
    return gamma * ((a - mean) / denom) + beta


# -------------------- fused Pallas kernel ------------------------------------

def decoder_kernel(acts_ref, bias_ref, wd_ref, wff_ref, b_ref, out_ref):
    """Runs all N_LAYERS decoder layers on the whole flattened batch."""
    x = acts_ref[0]           # (BS, D)  decoder activations
    enc = acts_ref[1]         # (BS, D)  encoder output
    bias = bias_ref[...]      # (BS, BS) 0 within a batch element, -1e9 across

    # Fused, loop-invariant encoder-side K/V projection for ALL layers:
    # one lane-dense (BS, D) @ (D, N_LAYERS*2*D) matmul instead of 4 tiny ones.
    wkv = wd_ref[:, WKV_OFF:W1_OFF]                                   # (32, 128)
    kv = jnp.dot(enc, wkv, preferred_element_type=jnp.float32)        # (16, 128)

    for l in range(N_LAYERS):             # static unroll over packed weights
        bq = b_ref[l:l + 1, BQ_OFF:BK_OFF]                            # (1, 32)
        bk = b_ref[l:l + 1, BK_OFF:BV_OFF]
        bv = b_ref[l:l + 1, BV_OFF:B1_OFF]
        b1 = b_ref[l:l + 1, B1_OFF:B2_OFF]                            # (1, 64)
        b2 = b_ref[l:l + 1, B2_OFF:G_OFF]
        gamma = b_ref[l:l + 1, G_OFF:BE_OFF]                          # (1, 32)
        beta = b_ref[l:l + 1, BE_OFF:B_COLS]

        wq = wd_ref[:, WQ_OFF + l * D_MODEL:WQ_OFF + (l + 1) * D_MODEL]
        w1 = wd_ref[:, W1_OFF + l * D_FF:W1_OFF + (l + 1) * D_FF]
        w2 = wff_ref[:, l * D_MODEL:(l + 1) * D_MODEL]

        # ---- enc-dec attention sublayer: x + LN(MHA(q=x, k=enc, v=enc)) ----
        # 1/sqrt(d_k) folded into q once (equivalent to scaling the scores).
        q = (jnp.dot(x, wq, preferred_element_type=jnp.float32) + bq) * SCALE
        k = kv[:, l * 2 * D_MODEL:l * 2 * D_MODEL + D_MODEL] + bk
        v = kv[:, l * 2 * D_MODEL + D_MODEL:(l + 1) * 2 * D_MODEL] + bv

        heads = []
        for h in range(N_HEAD):           # static head loop, SSA head outputs
            lo, hi = h * D_K, (h + 1) * D_K
            qs, ks, vs = q[:, lo:hi], k[:, lo:hi], v[:, lo:hi]
            # One (BS,BS) score matmul per head; contract last dims so no
            # transpose is materialized.  Cross-batch entries get the -1e9
            # additive bias and vanish in the softmax.
            s = jax.lax.dot_general(
                qs, ks, (((1,), (1,)), ((), ())),
                preferred_element_type=jnp.float32) + bias
            s = s - jnp.max(s, axis=-1, keepdims=True)
            e = jnp.exp(s)
            p = e * pl.reciprocal(jnp.sum(e, axis=-1, keepdims=True), approx=True)
            heads.append(jnp.dot(p, vs, preferred_element_type=jnp.float32))
        ctx = jnp.concatenate(heads, axis=-1)                          # (16, 32)

        a = x + _layer_norm(ctx, gamma, beta)

        # ---- FFN sublayer: a + LN(f2(gelu(f1(a)))) --------------------------
        hdn = jnp.dot(a, w1, preferred_element_type=jnp.float32) + b1
        f = jnp.dot(_gelu(hdn), w2, preferred_element_type=jnp.float32) + b2
        x = a + _layer_norm(f, gamma, beta)

    out_ref[...] = x


# -------------------- wrapper / glue ------------------------------------------

def transformer_decoder(decoder_input, encoder_output, emb, pe, layers):
    # token-embedding gather + positional embedding: plain-JAX glue.
    x = jnp.take(emb, decoder_input, axis=0) + pe[:SEQ_LEN, :][None]   # (B,S,D)
    acts = jnp.stack([x.reshape(BS, D_MODEL),
                      encoder_output.reshape(BS, D_MODEL)])            # (2,BS,D)

    # Additive bias confining attention to its own batch element once the
    # batch is flattened into a single (BS, BS) score matrix.
    ids = jnp.arange(BS, dtype=jnp.int32) // SEQ_LEN
    bias = jnp.where(ids[:, None] == ids[None, :], 0.0, -1e9).astype(jnp.float32)

    # ---- packed weight / bias slabs (few DMAs instead of 15) ----------------
    wq_cols = [p["attn"][0] for p in layers]                 # each (32, 32)
    wkv_cols = []
    for p in layers:
        wkv_cols += [p["attn"][2], p["attn"][4]]             # wk_l, wv_l
    w1_cols = [p["ffn"][0] for p in layers]                  # each (32, 64)
    wd = jnp.concatenate(wq_cols + wkv_cols + w1_cols, axis=1)   # (32, 320)

    wff = jnp.concatenate([p["ffn"][2] for p in layers], axis=1)  # (64, 64)

    def layer_row(p):
        # gamma/beta are identity-initialised (1, S, D) parameters; a single
        # (1, D) row broadcast over positions is exactly equivalent here.
        return jnp.concatenate(
            [p["attn"][1], p["attn"][3], p["attn"][5],        # bq, bk, bv
             p["ffn"][1], p["ffn"][3],                        # b1, b2
             p["gamma2"][:, 0, :], p["beta2"][:, 0, :]], axis=1)
    b_all = jnp.concatenate([layer_row(p) for p in layers], axis=0)  # (2, 256)

    vmem = pl.BlockSpec(memory_space=pltpu.MemorySpace.VMEM)
    out = pl.pallas_call(
        decoder_kernel,
        out_shape=jax.ShapeDtypeStruct((BS, D_MODEL), jnp.float32),
        in_specs=[vmem] * 5,
        out_specs=vmem,
    )(acts, bias, wd, wff, b_all)
    return out.reshape(B, SEQ_LEN, D_MODEL)


# -------------------- parameter setup -----------------------------------------

def make_pe():
    pos = jnp.arange(MAX_LEN, dtype=jnp.float32)[:, None]             # (L, 1)
    div = (10000.0 ** (jnp.arange(D_MODEL, dtype=jnp.float32) / D_MODEL))[None, :]
    angle = pos / div[:, 0::2]                                         # (L, D/2)
    pe = jnp.zeros((MAX_LEN, D_MODEL), jnp.float32)
    pe = pe.at[:, 0::2].set(jnp.sin(angle))
    pe = pe.at[:, 1::2].set(jnp.cos(angle))
    return pe


def init_params(key):
    keys = jax.random.split(key, 1 + N_LAYERS * 10)
    it = iter(list(keys))

    def lin(fan_in, fan_out):
        w = jax.random.normal(next(it), (fan_in, fan_out), jnp.float32) * 0.05
        b = jax.random.normal(next(it), (1, fan_out), jnp.float32) * 0.05
        return w, b

    emb = jax.random.normal(next(it), (N_VOCAB, D_MODEL), jnp.float32) * 0.1
    emb = emb.at[PADDING_IDX].set(0.0)   # nn.Embedding padding_idx row is zero

    layers = []
    for _ in range(N_LAYERS):
        wq, bq = lin(D_MODEL, D_MODEL)
        wk, bk = lin(D_MODEL, D_MODEL)
        wv, bv = lin(D_MODEL, D_MODEL)
        w1, b1 = lin(D_MODEL, D_FF)
        w2, b2 = lin(D_FF, D_MODEL)
        gamma2 = jnp.ones((1, SEQ_LEN, D_MODEL), jnp.float32)
        beta2 = jnp.zeros((1, SEQ_LEN, D_MODEL), jnp.float32)
        layers.append(dict(attn=(wq, bq, wk, bk, wv, bv),
                           ffn=(w1, b1, w2, b2),
                           gamma2=gamma2, beta2=beta2))
    return emb, layers


# -------------------- pure-JAX reference (sanity check) -----------------------

def reference(decoder_input, encoder_output, emb, pe, layers):
    x = jnp.take(emb, decoder_input, axis=0) + pe[:SEQ_LEN, :][None]
    for p in layers:
        wq, bq, wk, bk, wv, bv = p["attn"]
        q = x @ wq + bq
        k = encoder_output @ wk + bk
        v = encoder_output @ wv + bv
        q = q.reshape(B, SEQ_LEN, N_HEAD, D_K).transpose(0, 2, 1, 3)
        k = k.reshape(B, SEQ_LEN, N_HEAD, D_K).transpose(0, 2, 1, 3)
        v = v.reshape(B, SEQ_LEN, N_HEAD, D_K).transpose(0, 2, 1, 3)
        s = jnp.einsum('bhqd,bhkd->bhqk', q, k) / math.sqrt(D_K)
        pm = jax.nn.softmax(s, axis=-1)
        o = jnp.einsum('bhqk,bhkd->bhqd', pm, v)
        o = o.transpose(0, 2, 1, 3).reshape(B, SEQ_LEN, D_MODEL)
        a = x + _layer_norm(o, p["gamma2"], p["beta2"])
        w1, b1, w2, b2 = p["ffn"]
        f = _gelu(a @ w1 + b1) @ w2 + b2
        x = a + _layer_norm(f, p["gamma2"], p["beta2"])
    return x


if __name__ == "__main__":
    key = jax.random.PRNGKey(0)
    k_tok, k_enc, k_par = jax.random.split(key, 3)

    decoder_input = jax.random.randint(k_tok, (B, SEQ_LEN), 0, N_VOCAB)
    encoder_output = jax.random.normal(k_enc, (B, SEQ_LEN, D_MODEL), jnp.float32)
    emb, layers = init_params(k_par)
    pe = make_pe()

    out = transformer_decoder(decoder_input, encoder_output, emb, pe, layers)
    out = jax.block_until_ready(out)

    ref = jax.block_until_ready(reference(decoder_input, encoder_output, emb, pe, layers))
    assert out.shape == (B, SEQ_LEN, D_MODEL)
    assert jnp.allclose(out, ref, atol=2e-2, rtol=2e-2), float(jnp.max(jnp.abs(out - ref)))

    print("KERNEL_OK")
</pallas_src>

<mosaic_0001>
module attributes {stable_mosaic.version = 11 : i64} {
  func.func @decoder_kernel(%arg0: memref<2x16x32xf32, #tpu.memory_space<vmem>>, %arg1: memref<16x16xf32, #tpu.memory_space<vmem>>, %arg2: memref<32x320xf32, #tpu.memory_space<vmem>>, %arg3: memref<64x64xf32, #tpu.memory_space<vmem>>, %arg4: memref<2x256xf32, #tpu.memory_space<vmem>>, %arg5: memref<16x32xf32, #tpu.memory_space<vmem>>) attributes {dimension_semantics = [], scalar_prefetch = 0 : i64, scratch_operands = 0 : i64, tpu.core_type = #tpu.core_type<tc>} {
    %c0 = arith.constant 0 : index
    %c0_0 = arith.constant 0 : index
    %c0_1 = arith.constant 0 : index
    %0 = vector.load %arg0[%c0, %c0_0, %c0_1] : memref<2x16x32xf32, #tpu.memory_space<vmem>>, vector<1x16x32xf32>
    %1 = vector.shape_cast %0 : vector<1x16x32xf32> to vector<16x32xf32>
    %c1 = arith.constant 1 : index
    %c0_2 = arith.constant 0 : index
    %c0_3 = arith.constant 0 : index
    %2 = vector.load %arg0[%c1, %c0_2, %c0_3] : memref<2x16x32xf32, #tpu.memory_space<vmem>>, vector<1x16x32xf32>
    %3 = vector.shape_cast %2 : vector<1x16x32xf32> to vector<16x32xf32>
    %c0_4 = arith.constant 0 : index
    %c0_5 = arith.constant 0 : index
    %4 = vector.load %arg1[%c0_4, %c0_5] : memref<16x16xf32, #tpu.memory_space<vmem>>, vector<16x16xf32>
    %c0_6 = arith.constant 0 : index
    %c64 = arith.constant 64 : index
    %5 = vector.load %arg2[%c0_6, %c64] : memref<32x320xf32, #tpu.memory_space<vmem>>, vector<32x128xf32>
    %cst = arith.constant dense<0.000000e+00> : vector<16x128xf32>
    %6 = tpu.matmul %3, %5, %cst {dimension_numbers = #tpu.dot_dimension_numbers<[1], [0], [0], [1], [0, 0, 1, 1], [], []>} : vector<16x32xf32>, vector<32x128xf32>, vector<16x128xf32> -> vector<16x128xf32>
    %c0_7 = arith.constant 0 : index
    %c0_8 = arith.constant 0 : index
    %7 = vector.load %arg4[%c0_7, %c0_8] : memref<2x256xf32, #tpu.memory_space<vmem>>, vector<1x32xf32>
    %c0_9 = arith.constant 0 : index
    %c32 = arith.constant 32 : index
    %8 = vector.load %arg4[%c0_9, %c32] : memref<2x256xf32, #tpu.memory_space<vmem>>, vector<1x32xf32>
    %c0_10 = arith.constant 0 : index
    %c64_11 = arith.constant 64 : index
    %9 = vector.load %arg4[%c0_10, %c64_11] : memref<2x256xf32, #tpu.memory_space<vmem>>, vector<1x32xf32>
    %c0_12 = arith.constant 0 : index
    %c96 = arith.constant 96 : index
    %10 = vector.load %arg4[%c0_12, %c96] : memref<2x256xf32, #tpu.memory_space<vmem>>, vector<1x64xf32>
    %c0_13 = arith.constant 0 : index
    %c160 = arith.constant 160 : index
    %11 = vector.load %arg4[%c0_13, %c160] : memref<2x256xf32, #tpu.memory_space<vmem>>, vector<1x32xf32>
    %c0_14 = arith.constant 0 : index
    %c192 = arith.constant 192 : index
    %12 = vector.load %arg4[%c0_14, %c192] : memref<2x256xf32, #tpu.memory_space<vmem>>, vector<1x32xf32>
    %c0_15 = arith.constant 0 : index
    %c224 = arith.constant 224 : index
    %13 = vector.load %arg4[%c0_15, %c224] : memref<2x256xf32, #tpu.memory_space<vmem>>, vector<1x32xf32>
    %c0_16 = arith.constant 0 : index
    %c0_17 = arith.constant 0 : index
    %14 = vector.load %arg2[%c0_16, %c0_17] : memref<32x320xf32, #tpu.memory_space<vmem>>, vector<32x32xf32>
    %c0_18 = arith.constant 0 : index
    %c192_19 = arith.constant 192 : index
    %15 = vector.load %arg2[%c0_18, %c192_19] : memref<32x320xf32, #tpu.memory_space<vmem>>, vector<32x64xf32>
    %c0_20 = arith.constant 0 : index
    %c0_21 = arith.constant 0 : index
    %16 = vector.load %arg3[%c0_20, %c0_21] : memref<64x64xf32, #tpu.memory_space<vmem>>, vector<64x32xf32>
    %cst_22 = arith.constant dense<0.000000e+00> : vector<16x32xf32>
    %17 = tpu.matmul %1, %14, %cst_22 {dimension_numbers = #tpu.dot_dimension_numbers<[1], [0], [0], [1], [0, 0, 1, 1], [], []>} : vector<16x32xf32>, vector<32x32xf32>, vector<16x32xf32> -> vector<16x32xf32>
    %18 = vector.broadcast %7 : vector<1x32xf32> to vector<16x32xf32>
    %19 = arith.addf %17, %18 : vector<16x32xf32>
    %cst_23 = arith.constant 0.353553385 : f32
    %20 = vector.broadcast %cst_23 : f32 to vector<16x32xf32>
    %21 = arith.mulf %19, %20 : vector<16x32xf32>
    %22 = vector.extract_strided_slice %6 {offsets = [0, 0], sizes = [16, 32], strides = [1, 1]} : vector<16x128xf32> to vector<16x32xf32>
    %23 = vector.broadcast %8 : vector<1x32xf32> to vector<16x32xf32>
    %24 = arith.addf %22, %23 : vector<16x32xf32>
    %25 = vector.extract_strided_slice %6 {offsets = [0, 32], sizes = [16, 32], strides = [1, 1]} : vector<16x128xf32> to vector<16x32xf32>
    %26 = vector.broadcast %9 : vector<1x32xf32> to vector<16x32xf32>
    %27 = arith.addf %25, %26 : vector<16x32xf32>
    %28 = vector.extract_strided_slice %21 {offsets = [0, 0], sizes = [16, 8], strides = [1, 1]} : vector<16x32xf32> to vector<16x8xf32>
    %29 = vector.extract_strided_slice %24 {offsets = [0, 0], sizes = [16, 8], strides = [1, 1]} : vector<16x32xf32> to vector<16x8xf32>
    %30 = vector.extract_strided_slice %27 {offsets = [0, 0], sizes = [16, 8], strides = [1, 1]} : vector<16x32xf32> to vector<16x8xf32>
    %cst_24 = arith.constant dense<0.000000e+00> : vector<16x16xf32>
    %31 = tpu.matmul %28, %29, %cst_24 {dimension_numbers = #tpu.dot_dimension_numbers<[1], [1], [0], [0], [0, 0, 1, 0], [], []>} : vector<16x8xf32>, vector<16x8xf32>, vector<16x16xf32> -> vector<16x16xf32>
    %32 = arith.addf %31, %4 : vector<16x16xf32>
    %cst_25 = arith.constant dense<0xFF800000> : vector<16xf32>
    %33 = vector.multi_reduction <maximumf>, %32, %cst_25 [1] : vector<16x16xf32> to vector<16xf32>
    %34 = vector.shape_cast %33 : vector<16xf32> to vector<16x1xf32>
    %35 = vector.broadcast %34 : vector<16x1xf32> to vector<16x16xf32>
    %36 = arith.subf %32, %35 : vector<16x16xf32>
    %37 = math.exp %36 : vector<16x16xf32>
    %cst_26 = arith.constant dense<0.000000e+00> : vector<16xf32>
    %38 = vector.multi_reduction <add>, %37, %cst_26 [1] : vector<16x16xf32> to vector<16xf32>
    %39 = vector.shape_cast %38 : vector<16xf32> to vector<16x1xf32>
    %40 = tpu.reciprocal %39 {approx = true} : vector<16x1xf32> -> vector<16x1xf32>
    %41 = vector.broadcast %40 : vector<16x1xf32> to vector<16x16xf32>
    %42 = arith.mulf %37, %41 : vector<16x16xf32>
    %cst_27 = arith.constant dense<0.000000e+00> : vector<16x8xf32>
    %43 = tpu.matmul %42, %30, %cst_27 {dimension_numbers = #tpu.dot_dimension_numbers<[1], [0], [0], [1], [0, 0, 1, 1], [], []>} : vector<16x16xf32>, vector<16x8xf32>, vector<16x8xf32> -> vector<16x8xf32>
    %44 = vector.extract_strided_slice %21 {offsets = [0, 8], sizes = [16, 8], strides = [1, 1]} : vector<16x32xf32> to vector<16x8xf32>
    %45 = vector.extract_strided_slice %24 {offsets = [0, 8], sizes = [16, 8], strides = [1, 1]} : vector<16x32xf32> to vector<16x8xf32>
    %46 = vector.extract_strided_slice %27 {offsets = [0, 8], sizes = [16, 8], strides = [1, 1]} : vector<16x32xf32> to vector<16x8xf32>
    %cst_28 = arith.constant dense<0.000000e+00> : vector<16x16xf32>
    %47 = tpu.matmul %44, %45, %cst_28 {dimension_numbers = #tpu.dot_dimension_numbers<[1], [1], [0], [0], [0, 0, 1, 0], [], []>} : vector<16x8xf32>, vector<16x8xf32>, vector<16x16xf32> -> vector<16x16xf32>
    %48 = arith.addf %47, %4 : vector<16x16xf32>
    %cst_29 = arith.constant dense<0xFF800000> : vector<16xf32>
    %49 = vector.multi_reduction <maximumf>, %48, %cst_29 [1] : vector<16x16xf32> to vector<16xf32>
    %50 = vector.shape_cast %49 : vector<16xf32> to vector<16x1xf32>
    %51 = vector.broadcast %50 : vector<16x1xf32> to vector<16x16xf32>
    %52 = arith.subf %48, %51 : vector<16x16xf32>
    %53 = math.exp %52 : vector<16x16xf32>
    %cst_30 = arith.constant dense<0.000000e+00> : vector<16xf32>
    %54 = vector.multi_reduction <add>, %53, %cst_30 [1] : vector<16x16xf32> to vector<16xf32>
    %55 = vector.shape_cast %54 : vector<16xf32> to vector<16x1xf32>
    %56 = tpu.reciprocal %55 {approx = true} : vector<16x1xf32> -> vector<16x1xf32>
    %57 = vector.broadcast %56 : vector<16x1xf32> to vector<16x16xf32>
    %58 = arith.mulf %53, %57 : vector<16x16xf32>
    %cst_31 = arith.constant dense<0.000000e+00> : vector<16x8xf32>
    %59 = tpu.matmul %58, %46, %cst_31 {dimension_numbers = #tpu.dot_dimension_numbers<[1], [0], [0], [1], [0, 0, 1, 1], [], []>} : vector<16x16xf32>, vector<16x8xf32>, vector<16x8xf32> -> vector<16x8xf32>
    %60 = vector.extract_strided_slice %21 {offsets = [0, 16], sizes = [16, 8], strides = [1, 1]} : vector<16x32xf32> to vector<16x8xf32>
    %61 = vector.extract_strided_slice %24 {offsets = [0, 16], sizes = [16, 8], strides = [1, 1]} : vector<16x32xf32> to vector<16x8xf32>
    %62 = vector.extract_strided_slice %27 {offsets = [0, 16], sizes = [16, 8], strides = [1, 1]} : vector<16x32xf32> to vector<16x8xf32>
    %cst_32 = arith.constant dense<0.000000e+00> : vector<16x16xf32>
    %63 = tpu.matmul %60, %61, %cst_32 {dimension_numbers = #tpu.dot_dimension_numbers<[1], [1], [0], [0], [0, 0, 1, 0], [], []>} : vector<16x8xf32>, vector<16x8xf32>, vector<16x16xf32> -> vector<16x16xf32>
    %64 = arith.addf %63, %4 : vector<16x16xf32>
    %cst_33 = arith.constant dense<0xFF800000> : vector<16xf32>
    %65 = vector.multi_reduction <maximumf>, %64, %cst_33 [1] : vector<16x16xf32> to vector<16xf32>
    %66 = vector.shape_cast %65 : vector<16xf32> to vector<16x1xf32>
    %67 = vector.broadcast %66 : vector<16x1xf32> to vector<16x16xf32>
    %68 = arith.subf %64, %67 : vector<16x16xf32>
    %69 = math.exp %68 : vector<16x16xf32>
    %cst_34 = arith.constant dense<0.000000e+00> : vector<16xf32>
    %70 = vector.multi_reduction <add>, %69, %cst_34 [1] : vector<16x16xf32> to vector<16xf32>
    %71 = vector.shape_cast %70 : vector<16xf32> to vector<16x1xf32>
    %72 = tpu.reciprocal %71 {approx = true} : vector<16x1xf32> -> vector<16x1xf32>
    %73 = vector.broadcast %72 : vector<16x1xf32> to vector<16x16xf32>
    %74 = arith.mulf %69, %73 : vector<16x16xf32>
    %cst_35 = arith.constant dense<0.000000e+00> : vector<16x8xf32>
    %75 = tpu.matmul %74, %62, %cst_35 {dimension_numbers = #tpu.dot_dimension_numbers<[1], [0], [0], [1], [0, 0, 1, 1], [], []>} : vector<16x16xf32>, vector<16x8xf32>, vector<16x8xf32> -> vector<16x8xf32>
    %76 = vector.extract_strided_slice %21 {offsets = [0, 24], sizes = [16, 8], strides = [1, 1]} : vector<16x32xf32> to vector<16x8xf32>
    %77 = vector.extract_strided_slice %24 {offsets = [0, 24], sizes = [16, 8], strides = [1, 1]} : vector<16x32xf32> to vector<16x8xf32>
    %78 = vector.extract_strided_slice %27 {offsets = [0, 24], sizes = [16, 8], strides = [1, 1]} : vector<16x32xf32> to vector<16x8xf32>
    %cst_36 = arith.constant dense<0.000000e+00> : vector<16x16xf32>
    %79 = tpu.matmul %76, %77, %cst_36 {dimension_numbers = #tpu.dot_dimension_numbers<[1], [1], [0], [0], [0, 0, 1, 0], [], []>} : vector<16x8xf32>, vector<16x8xf32>, vector<16x16xf32> -> vector<16x16xf32>
    %80 = arith.addf %79, %4 : vector<16x16xf32>
    %cst_37 = arith.constant dense<0xFF800000> : vector<16xf32>
    %81 = vector.multi_reduction <maximumf>, %80, %cst_37 [1] : vector<16x16xf32> to vector<16xf32>
    %82 = vector.shape_cast %81 : vector<16xf32> to vector<16x1xf32>
    %83 = vector.broadcast %82 : vector<16x1xf32> to vector<16x16xf32>
    %84 = arith.subf %80, %83 : vector<16x16xf32>
    %85 = math.exp %84 : vector<16x16xf32>
    %cst_38 = arith.constant dense<0.000000e+00> : vector<16xf32>
    %86 = vector.multi_reduction <add>, %85, %cst_38 [1] : vector<16x16xf32> to vector<16xf32>
    %87 = vector.shape_cast %86 : vector<16xf32> to vector<16x1xf32>
    %88 = tpu.reciprocal %87 {approx = true} : vector<16x1xf32> -> vector<16x1xf32>
    %89 = vector.broadcast %88 : vector<16x1xf32> to vector<16x16xf32>
    %90 = arith.mulf %85, %89 : vector<16x16xf32>
    %cst_39 = arith.constant dense<0.000000e+00> : vector<16x8xf32>
    %91 = tpu.matmul %90, %78, %cst_39 {dimension_numbers = #tpu.dot_dimension_numbers<[1], [0], [0], [1], [0, 0, 1, 1], [], []>} : vector<16x16xf32>, vector<16x8xf32>, vector<16x8xf32> -> vector<16x8xf32>
    %92 = tpu.concatenate %43, %59, %75, %91 in 1 : vector<16x8xf32>, vector<16x8xf32>, vector<16x8xf32>, vector<16x8xf32> -> vector<16x32xf32>
    %cst_40 = arith.constant dense<0.000000e+00> : vector<16xf32>
    %93 = vector.multi_reduction <add>, %92, %cst_40 [1] : vector<16x32xf32> to vector<16xf32>
    %94 = vector.shape_cast %93 : vector<16xf32> to vector<16x1xf32>
    %cst_41 = arith.constant 3.200000e+01 : f32
    %95 = vector.broadcast %cst_41 : f32 to vector<16x1xf32>
    %96 = arith.divf %94, %95 : vector<16x1xf32>
    %97 = vector.broadcast %96 : vector<16x1xf32> to vector<16x32xf32>
    %98 = arith.subf %92, %97 : vector<16x32xf32>
    %99 = arith.mulf %98, %98 : vector<16x32xf32>
    %cst_42 = arith.constant dense<0.000000e+00> : vector<16xf32>
    %100 = vector.multi_reduction <add>, %99, %cst_42 [1] : vector<16x32xf32> to vector<16xf32>
    %101 = vector.shape_cast %100 : vector<16xf32> to vector<16x1xf32>
    %cst_43 = arith.constant 3.100000e+01 : f32
    %102 = vector.broadcast %cst_43 : f32 to vector<16x1xf32>
    %103 = arith.divf %101, %102 : vector<16x1xf32>
    %104 = math.sqrt %103 : vector<16x1xf32>
    %cst_44 = arith.constant 9.99999993E-9 : f32
    %105 = vector.broadcast %cst_44 : f32 to vector<16x1xf32>
    %106 = arith.addf %104, %105 : vector<16x1xf32>
    %107 = vector.broadcast %96 : vector<16x1xf32> to vector<16x32xf32>
    %108 = arith.subf %92, %107 : vector<16x32xf32>
    %109 = vector.broadcast %106 : vector<16x1xf32> to vector<16x32xf32>
    %110 = arith.divf %108, %109 : vector<16x32xf32>
    %111 = vector.broadcast %12 : vector<1x32xf32> to vector<16x32xf32>
    %112 = arith.mulf %111, %110 : vector<16x32xf32>
    %113 = vector.broadcast %13 : vector<1x32xf32> to vector<16x32xf32>
    %114 = arith.addf %112, %113 : vector<16x32xf32>
    %115 = arith.addf %1, %114 : vector<16x32xf32>
    %cst_45 = arith.constant dense<0.000000e+00> : vector<16x64xf32>
    %116 = tpu.matmul %115, %15, %cst_45 {dimension_numbers = #tpu.dot_dimension_numbers<[1], [0], [0], [1], [0, 0, 1, 1], [], []>} : vector<16x32xf32>, vector<32x64xf32>, vector<16x64xf32> -> vector<16x64xf32>
    %117 = vector.broadcast %10 : vector<1x64xf32> to vector<16x64xf32>
    %118 = arith.addf %116, %117 : vector<16x64xf32>
    %cst_46 = arith.constant 5.000000e-01 : f32
    %119 = vector.broadcast %cst_46 : f32 to vector<16x64xf32>
    %120 = arith.mulf %119, %118 : vector<16x64xf32>
    %121 = arith.mulf %118, %118 : vector<16x64xf32>
    %122 = arith.mulf %118, %121 : vector<16x64xf32>
    %cst_47 = arith.constant 4.471500e-03 : f32
    %123 = vector.broadcast %cst_47 : f32 to vector<16x64xf32>
    %124 = arith.mulf %123, %122 : vector<16x64xf32>
    %125 = arith.addf %118, %124 : vector<16x64xf32>
    %cst_48 = arith.constant 0.797884583 : f32
    %126 = vector.broadcast %cst_48 : f32 to vector<16x64xf32>
    %127 = arith.mulf %126, %125 : vector<16x64xf32>
    %128 = math.tanh %127 : vector<16x64xf32>
    %cst_49 = arith.constant 1.000000e+00 : f32
    %129 = vector.broadcast %cst_49 : f32 to vector<16x64xf32>
    %130 = arith.addf %129, %128 : vector<16x64xf32>
    %131 = arith.mulf %120, %130 : vector<16x64xf32>
    %cst_50 = arith.constant dense<0.000000e+00> : vector<16x32xf32>
    %132 = tpu.matmul %131, %16, %cst_50 {dimension_numbers = #tpu.dot_dimension_numbers<[1], [0], [0], [1], [0, 0, 1, 1], [], []>} : vector<16x64xf32>, vector<64x32xf32>, vector<16x32xf32> -> vector<16x32xf32>
    %133 = vector.broadcast %11 : vector<1x32xf32> to vector<16x32xf32>
    %134 = arith.addf %132, %133 : vector<16x32xf32>
    %cst_51 = arith.constant dense<0.000000e+00> : vector<16xf32>
    %135 = vector.multi_reduction <add>, %134, %cst_51 [1] : vector<16x32xf32> to vector<16xf32>
    %136 = vector.shape_cast %135 : vector<16xf32> to vector<16x1xf32>
    %cst_52 = arith.constant 3.200000e+01 : f32
    %137 = vector.broadcast %cst_52 : f32 to vector<16x1xf32>
    %138 = arith.divf %136, %137 : vector<16x1xf32>
    %139 = vector.broadcast %138 : vector<16x1xf32> to vector<16x32xf32>
    %140 = arith.subf %134, %139 : vector<16x32xf32>
    %141 = arith.mulf %140, %140 : vector<16x32xf32>
    %cst_53 = arith.constant dense<0.000000e+00> : vector<16xf32>
    %142 = vector.multi_reduction <add>, %141, %cst_53 [1] : vector<16x32xf32> to vector<16xf32>
    %143 = vector.shape_cast %142 : vector<16xf32> to vector<16x1xf32>
    %cst_54 = arith.constant 3.100000e+01 : f32
    %144 = vector.broadcast %cst_54 : f32 to vector<16x1xf32>
    %145 = arith.divf %143, %144 : vector<16x1xf32>
    %146 = math.sqrt %145 : vector<16x1xf32>
    %cst_55 = arith.constant 9.99999993E-9 : f32
    %147 = vector.broadcast %cst_55 : f32 to vector<16x1xf32>
    %148 = arith.addf %146, %147 : vector<16x1xf32>
    %149 = vector.broadcast %138 : vector<16x1xf32> to vector<16x32xf32>
    %150 = arith.subf %134, %149 : vector<16x32xf32>
    %151 = vector.broadcast %148 : vector<16x1xf32> to vector<16x32xf32>
    %152 = arith.divf %150, %151 : vector<16x32xf32>
    %153 = vector.broadcast %12 : vector<1x32xf32> to vector<16x32xf32>
    %154 = arith.mulf %153, %152 : vector<16x32xf32>
    %155 = vector.broadcast %13 : vector<1x32xf32> to vector<16x32xf32>
    %156 = arith.addf %154, %155 : vector<16x32xf32>
    %157 = arith.addf %115, %156 : vector<16x32xf32>
    %c1_56 = arith.constant 1 : index
    %c0_57 = arith.constant 0 : index
    %158 = vector.load %arg4[%c1_56, %c0_57] : memref<2x256xf32, #tpu.memory_space<vmem>>, vector<1x32xf32>
    %c1_58 = arith.constant 1 : index
    %c32_59 = arith.constant 32 : index
    %159 = vector.load %arg4[%c1_58, %c32_59] : memref<2x256xf32, #tpu.memory_space<vmem>>, vector<1x32xf32>
    %c1_60 = arith.constant 1 : index
    %c64_61 = arith.constant 64 : index
    %160 = vector.load %arg4[%c1_60, %c64_61] : memref<2x256xf32, #tpu.memory_space<vmem>>, vector<1x32xf32>
    %c1_62 = arith.constant 1 : index
    %c96_63 = arith.constant 96 : index
    %161 = vector.load %arg4[%c1_62, %c96_63] : memref<2x256xf32, #tpu.memory_space<vmem>>, vector<1x64xf32>
    %c1_64 = arith.constant 1 : index
    %c160_65 = arith.constant 160 : index
    %162 = vector.load %arg4[%c1_64, %c160_65] : memref<2x256xf32, #tpu.memory_space<vmem>>, vector<1x32xf32>
    %c1_66 = arith.constant 1 : index
    %c192_67 = arith.constant 192 : index
    %163 = vector.load %arg4[%c1_66, %c192_67] : memref<2x256xf32, #tpu.memory_space<vmem>>, vector<1x32xf32>
    %c1_68 = arith.constant 1 : index
    %c224_69 = arith.constant 224 : index
    %164 = vector.load %arg4[%c1_68, %c224_69] : memref<2x256xf32, #tpu.memory_space<vmem>>, vector<1x32xf32>
    %c0_70 = arith.constant 0 : index
    %c32_71 = arith.constant 32 : index
    %165 = vector.load %arg2[%c0_70, %c32_71] : memref<32x320xf32, #tpu.memory_space<vmem>>, vector<32x32xf32>
    %c0_72 = arith.constant 0 : index
    %c256 = arith.constant 256 : index
    %166 = vector.load %arg2[%c0_72, %c256] : memref<32x320xf32, #tpu.memory_space<vmem>>, vector<32x64xf32>
    %c0_73 = arith.constant 0 : index
    %c32_74 = arith.constant 32 : index
    %167 = vector.load %arg3[%c0_73, %c32_74] : memref<64x64xf32, #tpu.memory_space<vmem>>, vector<64x32xf32>
    %cst_75 = arith.constant dense<0.000000e+00> : vector<16x32xf32>
    %168 = tpu.matmul %157, %165, %cst_75 {dimension_numbers = #tpu.dot_dimension_numbers<[1], [0], [0], [1], [0, 0, 1, 1], [], []>} : vector<16x32xf32>, vector<32x32xf32>, vector<16x32xf32> -> vector<16x32xf32>
    %169 = vector.broadcast %158 : vector<1x32xf32> to vector<16x32xf32>
    %170 = arith.addf %168, %169 : vector<16x32xf32>
    %cst_76 = arith.constant 0.353553385 : f32
    %171 = vector.broadcast %cst_76 : f32 to vector<16x32xf32>
    %172 = arith.mulf %170, %171 : vector<16x32xf32>
    %173 = vector.extract_strided_slice %6 {offsets = [0, 64], sizes = [16, 32], strides = [1, 1]} : vector<16x128xf32> to vector<16x32xf32>
    %174 = vector.broadcast %159 : vector<1x32xf32> to vector<16x32xf32>
    %175 = arith.addf %173, %174 : vector<16x32xf32>
    %176 = vector.extract_strided_slice %6 {offsets = [0, 96], sizes = [16, 32], strides = [1, 1]} : vector<16x128xf32> to vector<16x32xf32>
    %177 = vector.broadcast %160 : vector<1x32xf32> to vector<16x32xf32>
    %178 = arith.addf %176, %177 : vector<16x32xf32>
    %179 = vector.extract_strided_slice %172 {offsets = [0, 0], sizes = [16, 8], strides = [1, 1]} : vector<16x32xf32> to vector<16x8xf32>
    %180 = vector.extract_strided_slice %175 {offsets = [0, 0], sizes = [16, 8], strides = [1, 1]} : vector<16x32xf32> to vector<16x8xf32>
    %181 = vector.extract_strided_slice %178 {offsets = [0, 0], sizes = [16, 8], strides = [1, 1]} : vector<16x32xf32> to vector<16x8xf32>
    %cst_77 = arith.constant dense<0.000000e+00> : vector<16x16xf32>
    %182 = tpu.matmul %179, %180, %cst_77 {dimension_numbers = #tpu.dot_dimension_numbers<[1], [1], [0], [0], [0, 0, 1, 0], [], []>} : vector<16x8xf32>, vector<16x8xf32>, vector<16x16xf32> -> vector<16x16xf32>
    %183 = arith.addf %182, %4 : vector<16x16xf32>
    %cst_78 = arith.constant dense<0xFF800000> : vector<16xf32>
    %184 = vector.multi_reduction <maximumf>, %183, %cst_78 [1] : vector<16x16xf32> to vector<16xf32>
    %185 = vector.shape_cast %184 : vector<16xf32> to vector<16x1xf32>
    %186 = vector.broadcast %185 : vector<16x1xf32> to vector<16x16xf32>
    %187 = arith.subf %183, %186 : vector<16x16xf32>
    %188 = math.exp %187 : vector<16x16xf32>
    %cst_79 = arith.constant dense<0.000000e+00> : vector<16xf32>
    %189 = vector.multi_reduction <add>, %188, %cst_79 [1] : vector<16x16xf32> to vector<16xf32>
    %190 = vector.shape_cast %189 : vector<16xf32> to vector<16x1xf32>
    %191 = tpu.reciprocal %190 {approx = true} : vector<16x1xf32> -> vector<16x1xf32>
    %192 = vector.broadcast %191 : vector<16x1xf32> to vector<16x16xf32>
    %193 = arith.mulf %188, %192 : vector<16x16xf32>
    %cst_80 = arith.constant dense<0.000000e+00> : vector<16x8xf32>
    %194 = tpu.matmul %193, %181, %cst_80 {dimension_numbers = #tpu.dot_dimension_numbers<[1], [0], [0], [1], [0, 0, 1, 1], [], []>} : vector<16x16xf32>, vector<16x8xf32>, vector<16x8xf32> -> vector<16x8xf32>
    %195 = vector.extract_strided_slice %172 {offsets = [0, 8], sizes = [16, 8], strides = [1, 1]} : vector<16x32xf32> to vector<16x8xf32>
    %196 = vector.extract_strided_slice %175 {offsets = [0, 8], sizes = [16, 8], strides = [1, 1]} : vector<16x32xf32> to vector<16x8xf32>
    %197 = vector.extract_strided_slice %178 {offsets = [0, 8], sizes = [16, 8], strides = [1, 1]} : vector<16x32xf32> to vector<16x8xf32>
    %cst_81 = arith.constant dense<0.000000e+00> : vector<16x16xf32>
    %198 = tpu.matmul %195, %196, %cst_81 {dimension_numbers = #tpu.dot_dimension_numbers<[1], [1], [0], [0], [0, 0, 1, 0], [], []>} : vector<16x8xf32>, vector<16x8xf32>, vector<16x16xf32> -> vector<16x16xf32>
    %199 = arith.addf %198, %4 : vector<16x16xf32>
    %cst_82 = arith.constant dense<0xFF800000> : vector<16xf32>
    %200 = vector.multi_reduction <maximumf>, %199, %cst_82 [1] : vector<16x16xf32> to vector<16xf32>
    %201 = vector.shape_cast %200 : vector<16xf32> to vector<16x1xf32>
    %202 = vector.broadcast %201 : vector<16x1xf32> to vector<16x16xf32>
    %203 = arith.subf %199, %202 : vector<16x16xf32>
    %204 = math.exp %203 : vector<16x16xf32>
    %cst_83 = arith.constant dense<0.000000e+00> : vector<16xf32>
    %205 = vector.multi_reduction <add>, %204, %cst_83 [1] : vector<16x16xf32> to vector<16xf32>
    %206 = vector.shape_cast %205 : vector<16xf32> to vector<16x1xf32>
    %207 = tpu.reciprocal %206 {approx = true} : vector<16x1xf32> -> vector<16x1xf32>
    %208 = vector.broadcast %207 : vector<16x1xf32> to vector<16x16xf32>
    %209 = arith.mulf %204, %208 : vector<16x16xf32>
    %cst_84 = arith.constant dense<0.000000e+00> : vector<16x8xf32>
    %210 = tpu.matmul %209, %197, %cst_84 {dimension_numbers = #tpu.dot_dimension_numbers<[1], [0], [0], [1], [0, 0, 1, 1], [], []>} : vector<16x16xf32>, vector<16x8xf32>, vector<16x8xf32> -> vector<16x8xf32>
    %211 = vector.extract_strided_slice %172 {offsets = [0, 16], sizes = [16, 8], strides = [1, 1]} : vector<16x32xf32> to vector<16x8xf32>
    %212 = vector.extract_strided_slice %175 {offsets = [0, 16], sizes = [16, 8], strides = [1, 1]} : vector<16x32xf32> to vector<16x8xf32>
    %213 = vector.extract_strided_slice %178 {offsets = [0, 16], sizes = [16, 8], strides = [1, 1]} : vector<16x32xf32> to vector<16x8xf32>
    %cst_85 = arith.constant dense<0.000000e+00> : vector<16x16xf32>
    %214 = tpu.matmul %211, %212, %cst_85 {dimension_numbers = #tpu.dot_dimension_numbers<[1], [1], [0], [0], [0, 0, 1, 0], [], []>} : vector<16x8xf32>, vector<16x8xf32>, vector<16x16xf32> -> vector<16x16xf32>
    %215 = arith.addf %214, %4 : vector<16x16xf32>
    %cst_86 = arith.constant dense<0xFF800000> : vector<16xf32>
    %216 = vector.multi_reduction <maximumf>, %215, %cst_86 [1] : vector<16x16xf32> to vector<16xf32>
    %217 = vector.shape_cast %216 : vector<16xf32> to vector<16x1xf32>
    %218 = vector.broadcast %217 : vector<16x1xf32> to vector<16x16xf32>
    %219 = arith.subf %215, %218 : vector<16x16xf32>
    %220 = math.exp %219 : vector<16x16xf32>
    %cst_87 = arith.constant dense<0.000000e+00> : vector<16xf32>
    %221 = vector.multi_reduction <add>, %220, %cst_87 [1] : vector<16x16xf32> to vector<16xf32>
    %222 = vector.shape_cast %221 : vector<16xf32> to vector<16x1xf32>
    %223 = tpu.reciprocal %222 {approx = true} : vector<16x1xf32> -> vector<16x1xf32>
    %224 = vector.broadcast %223 : vector<16x1xf32> to vector<16x16xf32>
    %225 = arith.mulf %220, %224 : vector<16x16xf32>
    %cst_88 = arith.constant dense<0.000000e+00> : vector<16x8xf32>
    %226 = tpu.matmul %225, %213, %cst_88 {dimension_numbers = #tpu.dot_dimension_numbers<[1], [0], [0], [1], [0, 0, 1, 1], [], []>} : vector<16x16xf32>, vector<16x8xf32>, vector<16x8xf32> -> vector<16x8xf32>
    %227 = vector.extract_strided_slice %172 {offsets = [0, 24], sizes = [16, 8], strides = [1, 1]} : vector<16x32xf32> to vector<16x8xf32>
    %228 = vector.extract_strided_slice %175 {offsets = [0, 24], sizes = [16, 8], strides = [1, 1]} : vector<16x32xf32> to vector<16x8xf32>
    %229 = vector.extract_strided_slice %178 {offsets = [0, 24], sizes = [16, 8], strides = [1, 1]} : vector<16x32xf32> to vector<16x8xf32>
    %cst_89 = arith.constant dense<0.000000e+00> : vector<16x16xf32>
    %230 = tpu.matmul %227, %228, %cst_89 {dimension_numbers = #tpu.dot_dimension_numbers<[1], [1], [0], [0], [0, 0, 1, 0], [], []>} : vector<16x8xf32>, vector<16x8xf32>, vector<16x16xf32> -> vector<16x16xf32>
    %231 = arith.addf %230, %4 : vector<16x16xf32>
    %cst_90 = arith.constant dense<0xFF800000> : vector<16xf32>
    %232 = vector.multi_reduction <maximumf>, %231, %cst_90 [1] : vector<16x16xf32> to vector<16xf32>
    %233 = vector.shape_cast %232 : vector<16xf32> to vector<16x1xf32>
    %234 = vector.broadcast %233 : vector<16x1xf32> to vector<16x16xf32>
    %235 = arith.subf %231, %234 : vector<16x16xf32>
    %236 = math.exp %235 : vector<16x16xf32>
    %cst_91 = arith.constant dense<0.000000e+00> : vector<16xf32>
    %237 = vector.multi_reduction <add>, %236, %cst_91 [1] : vector<16x16xf32> to vector<16xf32>
    %238 = vector.shape_cast %237 : vector<16xf32> to vector<16x1xf32>
    %239 = tpu.reciprocal %238 {approx = true} : vector<16x1xf32> -> vector<16x1xf32>
    %240 = vector.broadcast %239 : vector<16x1xf32> to vector<16x16xf32>
    %241 = arith.mulf %236, %240 : vector<16x16xf32>
    %cst_92 = arith.constant dense<0.000000e+00> : vector<16x8xf32>
    %242 = tpu.matmul %241, %229, %cst_92 {dimension_numbers = #tpu.dot_dimension_numbers<[1], [0], [0], [1], [0, 0, 1, 1], [], []>} : vector<16x16xf32>, vector<16x8xf32>, vector<16x8xf32> -> vector<16x8xf32>
    %243 = tpu.concatenate %194, %210, %226, %242 in 1 : vector<16x8xf32>, vector<16x8xf32>, vector<16x8xf32>, vector<16x8xf32> -> vector<16x32xf32>
    %cst_93 = arith.constant dense<0.000000e+00> : vector<16xf32>
    %244 = vector.multi_reduction <add>, %243, %cst_93 [1] : vector<16x32xf32> to vector<16xf32>
    %245 = vector.shape_cast %244 : vector<16xf32> to vector<16x1xf32>
    %cst_94 = arith.constant 3.200000e+01 : f32
    %246 = vector.broadcast %cst_94 : f32 to vector<16x1xf32>
    %247 = arith.divf %245, %246 : vector<16x1xf32>
    %248 = vector.broadcast %247 : vector<16x1xf32> to vector<16x32xf32>
    %249 = arith.subf %243, %248 : vector<16x32xf32>
    %250 = arith.mulf %249, %249 : vector<16x32xf32>
    %cst_95 = arith.constant dense<0.000000e+00> : vector<16xf32>
    %251 = vector.multi_reduction <add>, %250, %cst_95 [1] : vector<16x32xf32> to vector<16xf32>
    %252 = vector.shape_cast %251 : vector<16xf32> to vector<16x1xf32>
    %cst_96 = arith.constant 3.100000e+01 : f32
    %253 = vector.broadcast %cst_96 : f32 to vector<16x1xf32>
    %254 = arith.divf %252, %253 : vector<16x1xf32>
    %255 = math.sqrt %254 : vector<16x1xf32>
    %cst_97 = arith.constant 9.99999993E-9 : f32
    %256 = vector.broadcast %cst_97 : f32 to vector<16x1xf32>
    %257 = arith.addf %255, %256 : vector<16x1xf32>
    %258 = vector.broadcast %247 : vector<16x1xf32> to vector<16x32xf32>
    %259 = arith.subf %243, %258 : vector<16x32xf32>
    %260 = vector.broadcast %257 : vector<16x1xf32> to vector<16x32xf32>
    %261 = arith.divf %259, %260 : vector<16x32xf32>
    %262 = vector.broadcast %163 : vector<1x32xf32> to vector<16x32xf32>
    %263 = arith.mulf %262, %261 : vector<16x32xf32>
    %264 = vector.broadcast %164 : vector<1x32xf32> to vector<16x32xf32>
    %265 = arith.addf %263, %264 : vector<16x32xf32>
    %266 = arith.addf %157, %265 : vector<16x32xf32>
    %cst_98 = arith.constant dense<0.000000e+00> : vector<16x64xf32>
    %267 = tpu.matmul %266, %166, %cst_98 {dimension_numbers = #tpu.dot_dimension_numbers<[1], [0], [0], [1], [0, 0, 1, 1], [], []>} : vector<16x32xf32>, vector<32x64xf32>, vector<16x64xf32> -> vector<16x64xf32>
    %268 = vector.broadcast %161 : vector<1x64xf32> to vector<16x64xf32>
    %269 = arith.addf %267, %268 : vector<16x64xf32>
    %cst_99 = arith.constant 5.000000e-01 : f32
    %270 = vector.broadcast %cst_99 : f32 to vector<16x64xf32>
    %271 = arith.mulf %270, %269 : vector<16x64xf32>
    %272 = arith.mulf %269, %269 : vector<16x64xf32>
    %273 = arith.mulf %269, %272 : vector<16x64xf32>
    %cst_100 = arith.constant 4.471500e-03 : f32
    %274 = vector.broadcast %cst_100 : f32 to vector<16x64xf32>
    %275 = arith.mulf %274, %273 : vector<16x64xf32>
    %276 = arith.addf %269, %275 : vector<16x64xf32>
    %cst_101 = arith.constant 0.797884583 : f32
    %277 = vector.broadcast %cst_101 : f32 to vector<16x64xf32>
    %278 = arith.mulf %277, %276 : vector<16x64xf32>
    %279 = math.tanh %278 : vector<16x64xf32>
    %cst_102 = arith.constant 1.000000e+00 : f32
    %280 = vector.broadcast %cst_102 : f32 to vector<16x64xf32>
    %281 = arith.addf %280, %279 : vector<16x64xf32>
    %282 = arith.mulf %271, %281 : vector<16x64xf32>
    %cst_103 = arith.constant dense<0.000000e+00> : vector<16x32xf32>
    %283 = tpu.matmul %282, %167, %cst_103 {dimension_numbers = #tpu.dot_dimension_numbers<[1], [0], [0], [1], [0, 0, 1, 1], [], []>} : vector<16x64xf32>, vector<64x32xf32>, vector<16x32xf32> -> vector<16x32xf32>
    %284 = vector.broadcast %162 : vector<1x32xf32> to vector<16x32xf32>
    %285 = arith.addf %283, %284 : vector<16x32xf32>
    %cst_104 = arith.constant dense<0.000000e+00> : vector<16xf32>
    %286 = vector.multi_reduction <add>, %285, %cst_104 [1] : vector<16x32xf32> to vector<16xf32>
    %287 = vector.shape_cast %286 : vector<16xf32> to vector<16x1xf32>
    %cst_105 = arith.constant 3.200000e+01 : f32
    %288 = vector.broadcast %cst_105 : f32 to vector<16x1xf32>
    %289 = arith.divf %287, %288 : vector<16x1xf32>
    %290 = vector.broadcast %289 : vector<16x1xf32> to vector<16x32xf32>
    %291 = arith.subf %285, %290 : vector<16x32xf32>
    %292 = arith.mulf %291, %291 : vector<16x32xf32>
    %cst_106 = arith.constant dense<0.000000e+00> : vector<16xf32>
    %293 = vector.multi_reduction <add>, %292, %cst_106 [1] : vector<16x32xf32> to vector<16xf32>
    %294 = vector.shape_cast %293 : vector<16xf32> to vector<16x1xf32>
    %cst_107 = arith.constant 3.100000e+01 : f32
    %295 = vector.broadcast %cst_107 : f32 to vector<16x1xf32>
    %296 = arith.divf %294, %295 : vector<16x1xf32>
    %297 = math.sqrt %296 : vector<16x1xf32>
    %cst_108 = arith.constant 9.99999993E-9 : f32
    %298 = vector.broadcast %cst_108 : f32 to vector<16x1xf32>
    %299 = arith.addf %297, %298 : vector<16x1xf32>
    %300 = vector.broadcast %289 : vector<16x1xf32> to vector<16x32xf32>
    %301 = arith.subf %285, %300 : vector<16x32xf32>
    %302 = vector.broadcast %299 : vector<16x1xf32> to vector<16x32xf32>
    %303 = arith.divf %301, %302 : vector<16x32xf32>
    %304 = vector.broadcast %163 : vector<1x32xf32> to vector<16x32xf32>
    %305 = arith.mulf %304, %303 : vector<16x32xf32>
    %306 = vector.broadcast %164 : vector<1x32xf32> to vector<16x32xf32>
    %307 = arith.addf %305, %306 : vector<16x32xf32>
    %308 = arith.addf %266, %307 : vector<16x32xf32>
    %c0_109 = arith.constant 0 : index
    %c0_110 = arith.constant 0 : index
    %309 = vector.load %arg5[%c0_109, %c0_110] : memref<16x32xf32, #tpu.memory_space<vmem>>, vector<16x32xf32>
    tpu.vector_store %arg5[%c0_109, %c0_110], %308 {strides = array<i32>} : memref<16x32xf32, #tpu.memory_space<vmem>>, vector<16x32xf32>,
    return
  }
}

</mosaic_0001>

<llo_original>
// kernel: tpu_custom_call.1
$region0: #{tpu_custom_call.1}
  #allocation0 [shape = 'u32[]', space=smem, size = 0x4, offset = 0x4, fixed_abs, tag = 'smem constant byte address 0x4 - core index']
  #allocation1 [shape = 'u32[144,128]{1,0:T(1,128)}', space=vmem, size = 0x12000, scoped, tag = 'internal scratch']
  %s0 = inlined_call_operand.hbm [shape: f32[2,16,32], index: 0, kind: input, shape index: {}]
  %s1 = inlined_call_operand.hbm [shape: f32[16,16], index: 1, kind: input, shape index: {}]
  %s2 = inlined_call_operand.hbm [shape: f32[32,320], index: 2, kind: input, shape index: {}]
  %s3 = inlined_call_operand.hbm [shape: f32[64,64], index: 3, kind: input, shape index: {}]
  %s4 = inlined_call_operand.vmem [shape: f32[2,256], index: 4, kind: input, shape index: {}]
  %s5 = inlined_call_operand.hbm [shape: f32[16,32], index: 5, kind: output, shape index: {}]
  %s6 = sld [smem:[#allocation0]]
  $region46: #{tpu_custom_call.1} parent=0
    _
  %s8 = ssub.s32 1, %s6
  %s9 = scalar_select 0, %s8, %s6
  $region1: #{tpu_custom_call.1} parent=0
    #allocation2 [shape = 'u8[16384]{0}', space=vmem, size = 0x4000, scoped, tag = 'input window, operand 0, single buffered']
    #allocation3 [shape = 's32[1]{0}', space=sflag, size = 0x4, scoped, tag = 'scoped memory for tpu_custom_call.1']
    #allocation4 [shape = 's32[1]{0}', space=sflag, size = 0x4, scoped, tag = 'scoped memory for tpu_custom_call.1']
    #allocation5 [shape = 'u8[8192]{0}', space=vmem, size = 0x2000, scoped, tag = 'input window, operand 1, single buffered']
    #allocation6 [shape = 's32[1]{0}', space=sflag, size = 0x4, scoped, tag = 'scoped memory for tpu_custom_call.1']
    #allocation7 [shape = 'u8[49152]{0}', space=vmem, size = 0xc000, scoped, tag = 'input window, operand 2, single buffered']
    #allocation8 [shape = 'u8[32768]{0}', space=vmem, size = 0x8000, scoped, tag = 'input window, operand 3, single buffered']
    #allocation9 [shape = 's32[1]{0}', space=sflag, size = 0x4, scoped, tag = 'scoped memory for tpu_custom_call.1']
    #allocation10 [shape = 'u8[8192]{0}', space=vmem, size = 0x2000, scoped, tag = 'output window, operand 0, single buffered']
    %10 = vsyncpa [#allocation3], 0
    %11 = vsyncpa [#allocation6], 0
    %12 = vsyncpa [#allocation9], 0
    %13 = vsyncpa [#allocation4], 0
    // Predicated region
    $region2: #{tpu_custom_call.1} parent=1 // pred_check
      _
    $region3: #{tpu_custom_call.1} parent=1 // pred_check_branch
      %15 = sbr.rel (0) target = $region5
    $region4: #{tpu_custom_call.1} parent=1 // pred_region
      %s17 = ssub.s32 512, 512
      %18 = vsyncadd [#allocation3], %s17
      %s19 = sshll.u32 [#allocation2], 4
      %s20 = int_to_ptr.vmem [resolvable:$true] %s19
      %25 = dma.hbm_to_vmem [thread:$0]  %s0, 512, %s20, [#allocation3], 128, 128, 8
    $region5: #{tpu_custom_call.1} parent=1 // pred_fallthru
      _
    // Predicated region
    $region6: #{tpu_custom_call.1} parent=1 // pred_check
      _
    $region7: #{tpu_custom_call.1} parent=1 // pred_check_branch
      %27 = sbr.rel (0) target = $region9
    $region8: #{tpu_custom_call.1} parent=1 // pred_region
      %s29 = ssub.s32 256, 256
      %30 = vsyncadd [#allocation6], %s29
      %s31 = sshll.u32 [#allocation5], 4
      %s32 = int_to_ptr.vmem [resolvable:$true] %s31
      %37 = dma.hbm_to_vmem [thread:$0]  %s1, 256, %s32, [#allocation6], 128, 128, 8
    $region9: #{tpu_custom_call.1} parent=1 // pred_fallthru
      _
    // Predicated region
    $region10: #{tpu_custom_call.1} parent=1 // pred_check
      _
    $region11: #{tpu_custom_call.1} parent=1 // pred_check_branch
      %39 = sbr.rel (0) target = $region13
    $region12: #{tpu_custom_call.1} parent=1 // pred_region
      %s41 = ssub.s32 1536, 1536
      %42 = vsyncadd [#allocation6], %s41
      %s43 = sshll.u32 [#allocation7], 4
      %s44 = int_to_ptr.vmem [resolvable:$true] %s43
      %49 = dma.hbm_to_vmem [thread:$0]  %s2, 1536, %s44, [#allocation6], 384, 384, 24
    $region13: #{tpu_custom_call.1} parent=1 // pred_fallthru
      _
    // Predicated region
    $region14: #{tpu_custom_call.1} parent=1 // pred_check
      _
    $region15: #{tpu_custom_call.1} parent=1 // pred_check_branch
      %51 = sbr.rel (0) target = $region17
    $region16: #{tpu_custom_call.1} parent=1 // pred_region
      %s53 = ssub.s32 1024, 1024
      %54 = vsyncadd [#allocation9], %s53
      %s55 = sshll.u32 [#allocation8], 4
      %s56 = int_to_ptr.vmem [resolvable:$true] %s55
      %61 = dma.hbm_to_vmem [thread:$0]  %s3, 1024, %s56, [#allocation9], 128, 128, 8
    $region17: #{tpu_custom_call.1} parent=1 // pred_fallthru
      _
    // Predicated region
    $region18: #{tpu_custom_call.1} parent=1 // pred_check
      _
    $region19: #{tpu_custom_call.1} parent=1 // pred_check_branch
      %63 = sbr.rel (0) target = $region21
    $region20: #{tpu_custom_call.1} parent=1 // pred_region
      _
    $region21: #{tpu_custom_call.1} parent=1 // pred_fallthru
      _
    // Predicated region
    $region22: #{tpu_custom_call.1} parent=1 // pred_check
      _
    $region23: #{tpu_custom_call.1} parent=1 // pred_check_branch
      %65 = sbr.rel (0) target = $region25
    $region24: #{tpu_custom_call.1} parent=1 // pred_region
      %66 = dma.done [#allocation3], 512
    $region25: #{tpu_custom_call.1} parent=1 // pred_fallthru
      _
    // Predicated region
    $region26: #{tpu_custom_call.1} parent=1 // pred_check
      _
    $region27: #{tpu_custom_call.1} parent=1 // pred_check_branch
      %68 = sbr.rel (0) target = $region29
    $region28: #{tpu_custom_call.1} parent=1 // pred_region
      %69 = dma.done [#allocation6], 256
    $region29: #{tpu_custom_call.1} parent=1 // pred_fallthru
      _
    // Predicated region
    $region30: #{tpu_custom_call.1} parent=1 // pred_check
      _
    $region31: #{tpu_custom_call.1} parent=1 // pred_check_branch
      %71 = sbr.rel (0) target = $region33
    $region32: #{tpu_custom_call.1} parent=1 // pred_region
      %72 = dma.done [#allocation6], 1536
    $region33: #{tpu_custom_call.1} parent=1 // pred_fallthru
      _
    // Predicated region
    $region34: #{tpu_custom_call.1} parent=1 // pred_check
      _
    $region35: #{tpu_custom_call.1} parent=1 // pred_check_branch
      %74 = sbr.rel (0) target = $region37
    $region36: #{tpu_custom_call.1} parent=1 // pred_region
      %75 = dma.done [#allocation9], 1024
    $region37: #{tpu_custom_call.1} parent=1 // pred_fallthru
      _
    %v76 = vld [vmem:[#allocation2] sm:$0xff]
    %v77 = vld [vmem:[#allocation2 + $0x8] sm:$0xff]
    %s78 = scalar_lea.vmem [#allocation2], 16
    %v79 = vld [vmem:[%s78] sm:$0xff]
    %v80 = vld [vmem:[%s78 + $0x8] sm:$0xff]
    %v81 = vld [vmem:[#allocation5] sm:$0xff]
    %v82 = vld [vmem:[#allocation5 + $0x8] sm:$0xff]
    %v83 = vld [vmem:[#allocation7] sm:$0xff]
    %v84 = vld [vmem:[#allocation7 + $0x8] sm:$0xff]
    %v85 = vld [vmem:[#allocation7 + $0x18] sm:$0xff]
    %v86 = vld [vmem:[#allocation7 + $0x20] sm:$0xff]
    %v87 = vld [vmem:[#allocation7 + $0x30] sm:$0xff]
    %v88 = vld [vmem:[#allocation7 + $0x38] sm:$0xff]
    %v89 = vld [vmem:[#allocation7 + $0x48] sm:$0xff]
    %v90 = vld [vmem:[#allocation7 + $0x50] sm:$0xff]
    %99 = vrot.lane.b32.xlu0 %v83, 64
    %v100 = vpop.permute.xlu0 %99
    %101 = vrot.lane.b32.xlu0 %v84, 64
    %v102 = vpop.permute.xlu0 %101
    %103 = vrot.lane.b32.xlu0 %v85, 64
    %v104 = vpop.permute.xlu0 %103
    %105 = vrot.lane.b32.xlu0 %v86, 64
    %v106 = vpop.permute.xlu0 %105
    %107 = vrot.lane.b32.xlu0 %v87, 64
    %v108 = vpop.permute.xlu0 %107
    %109 = vrot.lane.b32.xlu0 %v88, 64
    %v110 = vpop.permute.xlu0 %109
    %111 = vrot.lane.b32.xlu0 %v89, 64
    %v112 = vpop.permute.xlu0 %111
    %113 = vrot.lane.b32.xlu0 %v90, 64
    %v114 = vpop.permute.xlu0 %113
    %vm115 = vcmask 523264
    %v116 = vsel %vm115, %v100, %v102
    %v117 = vsel %vm115, %v104, %v106
    %v118 = vsel %vm115, %v108, %v110
    %v119 = vsel %vm115, %v112, %v114
    %vm124 = vcmask 261120
    %v126 = vsel %vm124, %v79, 0
    %v129 = vsel %vm124, %v80, 0
    %131 = vmatprep.subr.mxu0 0.0
    %132 = vmatpush1.msra.mxu0 %v116
    %133 = vmatprep.subr.mxu0 0.0
    %134 = vmatpush1.msra.mxu0 %v117
    %135 = vmatprep.subr.mxu0 0.0
    %136 = vmatpush1.msra.mxu0 %v118
    %137 = vmatprep.subr.mxu0 0.0
    %138 = vmatpush1.msra.mxu0 %v119
    %139 = vmatprep.subr.mxu0 0.0
    %140 = vmatpush1.msra.mxu0 0.0
    %141 = vmatprep.subr.mxu0 0.0
    %142 = vmatpush1.msra.mxu0 0.0
    %143 = vmatprep.subr.mxu0 0.0
    %144 = vmatpush1.msra.mxu0 0.0
    %145 = vmatprep.subr.mxu0 0.0
    %146 = vmatpush1.msra.mxu0 0.0
    %147 = vmatprep.subr.mxu0 0.0
    %148 = vmatpush1.msra.mxu0 0.0
    %149 = vmatprep.subr.mxu0 0.0
    %150 = vmatpush1.msra.mxu0 0.0
    %151 = vmatprep.subr.mxu0 0.0
    %152 = vmatpush1.msra.mxu0 0.0
    %153 = vmatprep.subr.mxu0 0.0
    %154 = vmatpush1.msra.mxu0 0.0
    %155 = vmatprep.subr.mxu0 0.0
    %156 = vmatpush1.msra.mxu0 0.0
    %157 = vmatprep.subr.mxu0 0.0
    %158 = vmatpush1.msra.mxu0 0.0
    %159 = vmatprep.subr.mxu0 0.0
    %160 = vmatpush1.msra.mxu0 0.0
    %161 = vmatprep.subr.mxu0 0.0
    %162 = vmatpush1.msra.mxu0 0.0
    %163 = vmatprep.subr.mxu0 0.0
    %164 = vmatpush1.msra.mxu0 0.0
    %165 = vmatprep.subr.mxu0 0.0
    %166 = vmatpush1.msra.mxu0 0.0
    %167 = vmatprep.subr.mxu0 0.0
    %168 = vmatpush1.msra.mxu0 0.0
    %169 = vmatprep.subr.mxu0 0.0
    %170 = vmatpush1.msra.mxu0 0.0
    %171 = vmatprep.subr.mxu0 0.0
    %172 = vmatpush1.msra.mxu0 0.0
    %173 = vmatprep.subr.mxu0 0.0
    %174 = vmatpush1.msra.mxu0 0.0
    %175 = vmatprep.subr.mxu0 0.0
    %176 = vmatpush1.msra.mxu0 0.0
    %177 = vmatprep.subr.mxu0 0.0
    %178 = vmatpush1.msra.mxu0 0.0
    %179 = vmatprep.subr.mxu0 0.0
    %180 = vmatpush1.msra.mxu0 0.0
    %181 = vmatprep.subr.mxu0 0.0
    %182 = vmatpush1.msra.mxu0 0.0
    %183 = vmatprep.subr.mxu0 0.0
    %184 = vmatpush1.msra.mxu0 0.0
    %185 = vmatprep.subr.mxu0 0.0
    %186 = vmatpush1.msra.mxu0 0.0
    %187 = vmatprep.subr.mxu0 0.0
    %188 = vmatpush1.msra.mxu0 0.0
    %189 = vmatprep.subr.mxu0 0.0
    %190 = vmatpush1.msra.mxu0 0.0
    %191 = vmatprep.subr.mxu0 0.0
    %192 = vmatpush1.msra.mxu0 0.0
    %193 = vmatprep.subr.mxu0 0.0
    %194 = vmatpush1.msra.mxu0 0.0
    %195 = vmatprep.mubr.f32.mxu0 0.0
    %196 = vmatmul.mubr.f32.gmra.mrb[0].mxu0 %v126
    %v197 = vpop.f32.mrb[0].mxu0
    %v198 = vadd.f32 0.0, %v197
    %v199 = vpop.f32.mrb[0].mxu0
    %200 = vmatprep.mubr.f32.mxu0 0.0
    %201 = vmatmul.mubr.f32.gmra.mrb[0].mxu0 %v129
    %v202 = vpop.f32.mrb[0].mxu0
    %v203 = vadd.f32 0.0, %v202
    %v204 = vpop.f32.mrb[0].mxu0
    %205 = vdwg.mxu0
    %v206 = vld [vmem:[%s4] sm:$0x1]
    %v207 = vld [vmem:[%s4] sm:$0x5]
    %v208 = vld [vmem:[%s4 + $0x2] sm:$0x1]
    %v209 = vld [vmem:[#allocation7] sm:$0xff]
    %v210 = vld [vmem:[#allocation7 + $0x18] sm:$0xff]
    %v211 = vld [vmem:[#allocation7 + $0x30] sm:$0xff]
    %v212 = vld [vmem:[#allocation7 + $0x48] sm:$0xff]
    %v213 = vld [vmem:[#allocation8] sm:$0xff]
    %v214 = vld [vmem:[#allocation8 + $0x8] sm:$0xff]
    %v215 = vld [vmem:[#allocation8 + $0x10] sm:$0xff]
    %v216 = vld [vmem:[#allocation8 + $0x18] sm:$0xff]
    %v217 = vld [vmem:[#allocation8 + $0x20] sm:$0xff]
    %v218 = vld [vmem:[#allocation8 + $0x28] sm:$0xff]
    %v219 = vld [vmem:[#allocation8 + $0x30] sm:$0xff]
    %v220 = vld [vmem:[#allocation8 + $0x38] sm:$0xff]
    %v221 = vlaneseq
    %v222 = vshrl.u32 %v221, 7
    %v223 = vsub.s32 0, %v222
    %v224 = vrot.slane %v206, %v223
    %v226 = vsel %vm124, %v76, 0
    %v229 = vsel %vm124, %v77, 0
    %231 = vmatprep.subr.mxu0 0.0
    %232 = vmatpush1.msra.mxu0 %v209
    %233 = vmatprep.subr.mxu0 0.0
    %234 = vmatpush1.msra.mxu0 %v210
    %235 = vmatprep.subr.mxu0 0.0
    %236 = vmatpush1.msra.mxu0 %v211
    %237 = vmatprep.subr.mxu0 0.0
    %238 = vmatpush1.msra.mxu0 %v212
    %239 = vmatprep.subr.mxu0 0.0
    %240 = vmatpush1.msra.mxu0 0.0
    %241 = vmatprep.subr.mxu0 0.0
    %242 = vmatpush1.msra.mxu0 0.0
    %243 = vmatprep.subr.mxu0 0.0
    %244 = vmatpush1.msra.mxu0 0.0
    %245 = vmatprep.subr.mxu0 0.0
    %246 = vmatpush1.msra.mxu0 0.0
    %247 = vmatprep.subr.mxu0 0.0
    %248 = vmatpush1.msra.mxu0 0.0
    %249 = vmatprep.subr.mxu0 0.0
    %250 = vmatpush1.msra.mxu0 0.0
    %251 = vmatprep.subr.mxu0 0.0
    %252 = vmatpush1.msra.mxu0 0.0
    %253 = vmatprep.subr.mxu0 0.0
    %254 = vmatpush1.msra.mxu0 0.0
    %255 = vmatprep.subr.mxu0 0.0
    %256 = vmatpush1.msra.mxu0 0.0
    %257 = vmatprep.subr.mxu0 0.0
    %258 = vmatpush1.msra.mxu0 0.0
    %259 = vmatprep.subr.mxu0 0.0
    %260 = vmatpush1.msra.mxu0 0.0
    %261 = vmatprep.subr.mxu0 0.0
    %262 = vmatpush1.msra.mxu0 0.0
    %263 = vmatprep.subr.mxu0 0.0
    %264 = vmatpush1.msra.mxu0 0.0
    %265 = vmatprep.subr.mxu0 0.0
    %266 = vmatpush1.msra.mxu0 0.0
    %267 = vmatprep.subr.mxu0 0.0
    %268 = vmatpush1.msra.mxu0 0.0
    %269 = vmatprep.subr.mxu0 0.0
    %270 = vmatpush1.msra.mxu0 0.0
    %271 = vmatprep.subr.mxu0 0.0
    %272 = vmatpush1.msra.mxu0 0.0
    %273 = vmatprep.subr.mxu0 0.0
    %274 = vmatpush1.msra.mxu0 0.0
    %275 = vmatprep.subr.mxu0 0.0
    %276 = vmatpush1.msra.mxu0 0.0
    %277 = vmatprep.subr.mxu0 0.0
    %278 = vmatpush1.msra.mxu0 0.0
    %279 = vmatprep.subr.mxu0 0.0
    %280 = vmatpush1.msra.mxu0 0.0
    %281 = vmatprep.subr.mxu0 0.0
    %282 = vmatpush1.msra.mxu0 0.0
    %283 = vmatprep.subr.mxu0 0.0
    %284 = vmatpush1.msra.mxu0 0.0
    %285 = vmatprep.subr.mxu0 0.0
    %286 = vmatpush1.msra.mxu0 0.0
    %287 = vmatprep.subr.mxu0 0.0
    %288 = vmatpush1.msra.mxu0 0.0
    %289 = vmatprep.subr.mxu0 0.0
    %290 = vmatpush1.msra.mxu0 0.0
    %291 = vmatprep.subr.mxu0 0.0
    %292 = vmatpush1.msra.mxu0 0.0
    %293 = vmatprep.subr.mxu0 0.0
    %294 = vmatpush1.msra.mxu0 0.0
    %295 = vmatprep.mubr.f32.mxu0 0.0
    %296 = vmatmul.mubr.f32.gmra.mrb[0].mxu0 %v226
    %v297 = vpop.f32.mrb[0].mxu0
    %v298 = vadd.f32 %v224, %v297
    %v299 = vpop.f32.mrb[0].mxu0
    %300 = vmatprep.mubr.f32.mxu0 0.0
    %301 = vmatmul.mubr.f32.gmra.mrb[0].mxu0 %v229
    %v302 = vpop.f32.mrb[0].mxu0
    %v303 = vadd.f32 %v224, %v302
    %v304 = vpop.f32.mrb[0].mxu0
    %305 = vdwg.mxu0
    %v306 = vmul.f32 %v298, 0.35355338
    %v307 = vmul.f32 %v303, 0.35355338
    %309 = vrot.lane.b32.xlu0 %v224, 96
    %v310 = vpop.permute.xlu0 %309
    %v312 = vadd.f32 %v198, %v310
    %v313 = vadd.f32 %v203, %v310
    %vm314 = vcmask 64512
    %v316 = vsel %vm314, %v306, 0
    %v319 = vsel %vm314, %v307, 0
    %v322 = vsel %vm314, %v312, 0
    %v325 = vsel %vm314, %v313, 0
    %327 = vmatprep.subr.mxu0 0.0
    %328 = vmatpush1.xpose.msra.mxu0 %v322
    %329 = vmatprep.subr.mxu0 0.0
    %330 = vmatpush1.xpose.msra.mxu0 %v325
    %331 = vmatprep.subr.mxu0 0.0
    %332 = vmatpush1.xpose.msra.mxu0 0.0
    %333 = vmatprep.subr.mxu0 0.0
    %334 = vmatpush1.xpose.msra.mxu0 0.0
    %335 = vmatprep.subr.mxu0 0.0
    %336 = vmatpush1.xpose.msra.mxu0 0.0
    %337 = vmatprep.subr.mxu0 0.0
    %338 = vmatpush1.xpose.msra.mxu0 0.0
    %339 = vmatprep.subr.mxu0 0.0
    %340 = vmatpush1.xpose.msra.mxu0 0.0
    %341 = vmatprep.subr.mxu0 0.0
    %342 = vmatpush1.xpose.msra.mxu0 0.0
    %343 = vmatprep.subr.mxu0 0.0
    %344 = vmatpush1.xpose.msra.mxu0 0.0
    %345 = vmatprep.subr.mxu0 0.0
    %346 = vmatpush1.xpose.msra.mxu0 0.0
    %347 = vmatprep.subr.mxu0 0.0
    %348 = vmatpush1.xpose.msra.mxu0 0.0
    %349 = vmatprep.subr.mxu0 0.0
    %350 = vmatpush1.xpose.msra.mxu0 0.0
    %351 = vmatprep.subr.mxu0 0.0
    %352 = vmatpush1.xpose.msra.mxu0 0.0
    %353 = vmatprep.subr.mxu0 0.0
    %354 = vmatpush1.xpose.msra.mxu0 0.0
    %355 = vmatprep.subr.mxu0 0.0
    %356 = vmatpush1.xpose.msra.mxu0 0.0
    %357 = vmatprep.subr.mxu0 0.0
    %358 = vmatpush1.xpose.msra.mxu0 0.0
    %359 = vmatprep.subr.mxu0 0.0
    %360 = vmatpush1.xpose.msra.mxu0 0.0
    %361 = vmatprep.subr.mxu0 0.0
    %362 = vmatpush1.xpose.msra.mxu0 0.0
    %363 = vmatprep.subr.mxu0 0.0
    %364 = vmatpush1.xpose.msra.mxu0 0.0
    %365 = vmatprep.subr.mxu0 0.0
    %366 = vmatpush1.xpose.msra.mxu0 0.0
    %367 = vmatprep.subr.mxu0 0.0
    %368 = vmatpush1.xpose.msra.mxu0 0.0
    %369 = vmatprep.subr.mxu0 0.0
    %370 = vmatpush1.xpose.msra.mxu0 0.0
    %371 = vmatprep.subr.mxu0 0.0
    %372 = vmatpush1.xpose.msra.mxu0 0.0
    %373 = vmatprep.subr.mxu0 0.0
    %374 = vmatpush1.xpose.msra.mxu0 0.0
    %375 = vmatprep.subr.mxu0 0.0
    %376 = vmatpush1.xpose.msra.mxu0 0.0
    %377 = vmatprep.subr.mxu0 0.0
    %378 = vmatpush1.xpose.msra.mxu0 0.0
    %379 = vmatprep.subr.mxu0 0.0
    %380 = vmatpush1.xpose.msra.mxu0 0.0
    %381 = vmatprep.subr.mxu0 0.0
    %382 = vmatpush1.xpose.msra.mxu0 0.0
    %383 = vmatprep.subr.mxu0 0.0
    %384 = vmatpush1.xpose.msra.mxu0 0.0
    %385 = vmatprep.subr.mxu0 0.0
    %386 = vmatpush1.xpose.msra.mxu0 0.0
    %387 = vmatprep.subr.mxu0 0.0
    %388 = vmatpush1.xpose.msra.mxu0 0.0
    %389 = vmatprep.subr.mxu0 0.0
    %390 = vmatpush1.xpose.msra.mxu0 0.0
    %391 = vmatprep.mubr.f32.mxu0 0.0
    %392 = vmatmul.mubr.f32.gmra.mrb[0].mxu0 %v316
    %v393 = vpop.f32.mrb[0].mxu0
    %v394 = vadd.f32 %v81, %v393
    %v395 = vpop.f32.mrb[0].mxu0
    %396 = vmatprep.mubr.f32.mxu0 0.0
    %397 = vmatmul.mubr.f32.gmra.mrb[0].mxu0 %v319
    %v398 = vpop.f32.mrb[0].mxu0
    %v399 = vadd.f32 %v82, %v398
    %v400 = vpop.f32.mrb[0].mxu0
    %401 = vdwg.mxu0
    %vm402 = vcmask 130048
    %v403 = vsel %vm402, %v394, -inf
    %404 = vmax.xlane.f32.xlu0 %v403
    %v405 = vpop.xlane.xlu0 %404
    %v406 = vsel %vm402, %v399, -inf
    %407 = vmax.xlane.f32.xlu0 %v406
    %v408 = vpop.xlane.xlu0 %407
    %v409 = vsub.f32 %v394, %v405
    %v410 = vsub.f32 %v399, %v408
    %v411 = vmul.f32 %v409, 1.442695
    %v412 = vpow.pop %v411
    %v413 = vmul.f32 %v410, 1.442695
    %v414 = vpow.pop %v413
    %v415 = vsel %vm402, %v412, 0.0
    %416 = vadd.xlane.f32.xlu0 %v415
    %v417 = vpop.xlane.xlu0 %416
    %v418 = vsel %vm402, %v414, 0.0
    %419 = vadd.xlane.f32.xlu0 %v418
    %v420 = vpop.xlane.xlu0 %419
    %v421 = vrcp.pop %v417
    %v422 = vrcp.pop %v420
    %v423 = vmul.f32 %v412, %v421
    %v424 = vmul.f32 %v414, %v422
    %425 = vrot.lane.b32.xlu0 %v312, 96
    %v426 = vpop.permute.xlu0 %425
    %427 = vrot.lane.b32.xlu0 %v313, 96
    %v428 = vpop.permute.xlu0 %427
    %v432 = vsel %vm402, %v423, 0
    %v435 = vsel %vm402, %v424, 0
    %437 = vmatprep.subr.mxu0 0.0
    %438 = vmatpush1.msra.mxu0 %v426
    %439 = vmatprep.subr.mxu0 0.0
    %440 = vmatpush1.msra.mxu0 %v428
    %441 = vmatprep.subr.mxu0 0.0
    %442 = vmatpush1.msra.mxu0 0.0
    %443 = vmatprep.subr.mxu0 0.0
    %444 = vmatpush1.msra.mxu0 0.0
    %445 = vmatprep.subr.mxu0 0.0
    %446 = vmatpush1.msra.mxu0 0.0
    %447 = vmatprep.subr.mxu0 0.0
    %448 = vmatpush1.msra.mxu0 0.0
    %449 = vmatprep.subr.mxu0 0.0
    %450 = vmatpush1.msra.mxu0 0.0
    %451 = vmatprep.subr.mxu0 0.0
    %452 = vmatpush1.msra.mxu0 0.0
    %453 = vmatprep.subr.mxu0 0.0
    %454 = vmatpush1.msra.mxu0 0.0
    %455 = vmatprep.subr.mxu0 0.0
    %456 = vmatpush1.msra.mxu0 0.0
    %457 = vmatprep.subr.mxu0 0.0
    %458 = vmatpush1.msra.mxu0 0.0
    %459 = vmatprep.subr.mxu0 0.0
    %460 = vmatpush1.msra.mxu0 0.0
    %461 = vmatprep.subr.mxu0 0.0
    %462 = vmatpush1.msra.mxu0 0.0
    %463 = vmatprep.subr.mxu0 0.0
    %464 = vmatpush1.msra.mxu0 0.0
    %465 = vmatprep.subr.mxu0 0.0
    %466 = vmatpush1.msra.mxu0 0.0
    %467 = vmatprep.subr.mxu0 0.0
    %468 = vmatpush1.msra.mxu0 0.0
    %469 = vmatprep.subr.mxu0 0.0
    %470 = vmatpush1.msra.mxu0 0.0
    %471 = vmatprep.subr.mxu0 0.0
    %472 = vmatpush1.msra.mxu0 0.0
    %473 = vmatprep.subr.mxu0 0.0
    %474 = vmatpush1.msra.mxu0 0.0
    %475 = vmatprep.subr.mxu0 0.0
    %476 = vmatpush1.msra.mxu0 0.0
    %477 = vmatprep.subr.mxu0 0.0
    %478 = vmatpush1.msra.mxu0 0.0
    %479 = vmatprep.subr.mxu0 0.0
    %480 = vmatpush1.msra.mxu0 0.0
    %481 = vmatprep.subr.mxu0 0.0
    %482 = vmatpush1.msra.mxu0 0.0
    %483 = vmatprep.subr.mxu0 0.0
    %484 = vmatpush1.msra.mxu0 0.0
    %485 = vmatprep.subr.mxu0 0.0
    %486 = vmatpush1.msra.mxu0 0.0
    %487 = vmatprep.subr.mxu0 0.0
    %488 = vmatpush1.msra.mxu0 0.0
    %489 = vmatprep.subr.mxu0 0.0
    %490 = vmatpush1.msra.mxu0 0.0
    %491 = vmatprep.subr.mxu0 0.0
    %492 = vmatpush1.msra.mxu0 0.0
    %493 = vmatprep.subr.mxu0 0.0
    %494 = vmatpush1.msra.mxu0 0.0
    %495 = vmatprep.subr.mxu0 0.0
    %496 = vmatpush1.msra.mxu0 0.0
    %497 = vmatprep.subr.mxu0 0.0
    %498 = vmatpush1.msra.mxu0 0.0
    %499 = vmatprep.subr.mxu0 0.0
    %500 = vmatpush1.msra.mxu0 0.0
    %501 = vmatprep.mubr.f32.mxu0 0.0
    %502 = vmatmul.mubr.f32.gmra.mrb[0].mxu0 %v432
    %v503 = vpop.f32.mrb[0].mxu0
    %v504 = vadd.f32 0.0, %v503
    %v505 = vpop.f32.mrb[0].mxu0
    %506 = vmatprep.mubr.f32.mxu0 0.0
    %507 = vmatmul.mubr.f32.gmra.mrb[0].mxu0 %v435
    %v508 = vpop.f32.mrb[0].mxu0
    %v509 = vadd.f32 0.0, %v508
    %v510 = vpop.f32.mrb[0].mxu0
    %511 = vdwg.mxu0
    %512 = vrot.lane.b32.xlu0 %v306, 120
    %v513 = vpop.permute.xlu0 %512
    %514 = vrot.lane.b32.xlu0 %v307, 120
    %v515 = vpop.permute.xlu0 %514
    %516 = vrot.lane.b32.xlu0 %v312, 120
    %v517 = vpop.permute.xlu0 %516
    %518 = vrot.lane.b32.xlu0 %v313, 120
    %v519 = vpop.permute.xlu0 %518
    %v520 = vsel %vm314, %v513, 0
    %v522 = vsel %vm314, %v515, 0
    %v524 = vsel %vm314, %v517, 0
    %v526 = vsel %vm314, %v519, 0
    %528 = vmatprep.subr.mxu0 0.0
    %529 = vmatpush1.xpose.msra.mxu0 %v524
    %530 = vmatprep.subr.mxu0 0.0
    %531 = vmatpush1.xpose.msra.mxu0 %v526
    %532 = vmatprep.subr.mxu0 0.0
    %533 = vmatpush1.xpose.msra.mxu0 0.0
    %534 = vmatprep.subr.mxu0 0.0
    %535 = vmatpush1.xpose.msra.mxu0 0.0
    %536 = vmatprep.subr.mxu0 0.0
    %537 = vmatpush1.xpose.msra.mxu0 0.0
    %538 = vmatprep.subr.mxu0 0.0
    %539 = vmatpush1.xpose.msra.mxu0 0.0
    %540 = vmatprep.subr.mxu0 0.0
    %541 = vmatpush1.xpose.msra.mxu0 0.0
    %542 = vmatprep.subr.mxu0 0.0
    %543 = vmatpush1.xpose.msra.mxu0 0.0
    %544 = vmatprep.subr.mxu0 0.0
    %545 = vmatpush1.xpose.msra.mxu0 0.0
    %546 = vmatprep.subr.mxu0 0.0
    %547 = vmatpush1.xpose.msra.mxu0 0.0
    %548 = vmatprep.subr.mxu0 0.0
    %549 = vmatpush1.xpose.msra.mxu0 0.0
    %550 = vmatprep.subr.mxu0 0.0
    %551 = vmatpush1.xpose.msra.mxu0 0.0
    %552 = vmatprep.subr.mxu0 0.0
    %553 = vmatpush1.xpose.msra.mxu0 0.0
    %554 = vmatprep.subr.mxu0 0.0
    %555 = vmatpush1.xpose.msra.mxu0 0.0
    %556 = vmatprep.subr.mxu0 0.0
    %557 = vmatpush1.xpose.msra.mxu0 0.0
    %558 = vmatprep.subr.mxu0 0.0
    %559 = vmatpush1.xpose.msra.mxu0 0.0
    %560 = vmatprep.subr.mxu0 0.0
    %561 = vmatpush1.xpose.msra.mxu0 0.0
    %562 = vmatprep.subr.mxu0 0.0
    %563 = vmatpush1.xpose.msra.mxu0 0.0
    %564 = vmatprep.subr.mxu0 0.0
    %565 = vmatpush1.xpose.msra.mxu0 0.0
    %566 = vmatprep.subr.mxu0 0.0
    %567 = vmatpush1.xpose.msra.mxu0 0.0
    %568 = vmatprep.subr.mxu0 0.0
    %569 = vmatpush1.xpose.msra.mxu0 0.0
    %570 = vmatprep.subr.mxu0 0.0
    %571 = vmatpush1.xpose.msra.mxu0 0.0
    %572 = vmatprep.subr.mxu0 0.0
    %573 = vmatpush1.xpose.msra.mxu0 0.0
    %574 = vmatprep.subr.mxu0 0.0
    %575 = vmatpush1.xpose.msra.mxu0 0.0
    %576 = vmatprep.subr.mxu0 0.0
    %577 = vmatpush1.xpose.msra.mxu0 0.0
    %578 = vmatprep.subr.mxu0 0.0
    %579 = vmatpush1.xpose.msra.mxu0 0.0
    %580 = vmatprep.subr.mxu0 0.0
    %581 = vmatpush1.xpose.msra.mxu0 0.0
    %582 = vmatprep.subr.mxu0 0.0
    %583 = vmatpush1.xpose.msra.mxu0 0.0
    %584 = vmatprep.subr.mxu0 0.0
    %585 = vmatpush1.xpose.msra.mxu0 0.0
    %586 = vmatprep.subr.mxu0 0.0
    %587 = vmatpush1.xpose.msra.mxu0 0.0
    %588 = vmatprep.subr.mxu0 0.0
    %589 = vmatpush1.xpose.msra.mxu0 0.0
    %590 = vmatprep.subr.mxu0 0.0
    %591 = vmatpush1.xpose.msra.mxu0 0.0
    %592 = vmatprep.mubr.f32.mxu0 0.0
    %593 = vmatmul.mubr.f32.gmra.mrb[0].mxu0 %v520
    %v594 = vpop.f32.mrb[0].mxu0
    %v595 = vadd.f32 %v81, %v594
    %v596 = vpop.f32.mrb[0].mxu0
    %597 = vmatprep.mubr.f32.mxu0 0.0
    %598 = vmatmul.mubr.f32.gmra.mrb[0].mxu0 %v522
    %v599 = vpop.f32.mrb[0].mxu0
    %v600 = vadd.f32 %v82, %v599
    %v601 = vpop.f32.mrb[0].mxu0
    %602 = vdwg.mxu0
    %v603 = vsel %vm402, %v595, -inf
    %604 = vmax.xlane.f32.xlu0 %v603
    %v605 = vpop.xlane.xlu0 %604
    %v606 = vsel %vm402, %v600, -inf
    %607 = vmax.xlane.f32.xlu0 %v606
    %v608 = vpop.xlane.xlu0 %607
    %v609 = vsub.f32 %v595, %v605
    %v610 = vsub.f32 %v600, %v608
    %v611 = vmul.f32 %v609, 1.442695
    %v612 = vpow.pop %v611
    %v613 = vmul.f32 %v610, 1.442695
    %v614 = vpow.pop %v613
    %v615 = vsel %vm402, %v612, 0.0
    %616 = vadd.xlane.f32.xlu0 %v615
    %v617 = vpop.xlane.xlu0 %616
    %v618 = vsel %vm402, %v614, 0.0
    %619 = vadd.xlane.f32.xlu0 %v618
    %v620 = vpop.xlane.xlu0 %619
    %v621 = vrcp.pop %v617
    %v622 = vrcp.pop %v620
    %v623 = vmul.f32 %v612, %v621
    %v624 = vmul.f32 %v614, %v622
    %625 = vrot.lane.b32.xlu0 %v312, 88
    %v626 = vpop.permute.xlu0 %625
    %627 = vrot.lane.b32.xlu0 %v313, 88
    %v628 = vpop.permute.xlu0 %627
    %v632 = vsel %vm402, %v623, 0
    %v635 = vsel %vm402, %v624, 0
    %637 = vmatprep.subr.mxu0 0.0
    %638 = vmatpush1.msra.mxu0 %v626
    %639 = vmatprep.subr.mxu0 0.0
    %640 = vmatpush1.msra.mxu0 %v628
    %641 = vmatprep.subr.mxu0 0.0
    %642 = vmatpush1.msra.mxu0 0.0
    %643 = vmatprep.subr.mxu0 0.0
    %644 = vmatpush1.msra.mxu0 0.0
    %645 = vmatprep.subr.mxu0 0.0
    %646 = vmatpush1.msra.mxu0 0.0
    %647 = vmatprep.subr.mxu0 0.0
    %648 = vmatpush1.msra.mxu0 0.0
    %649 = vmatprep.subr.mxu0 0.0
    %650 = vmatpush1.msra.mxu0 0.0
    %651 = vmatprep.subr.mxu0 0.0
    %652 = vmatpush1.msra.mxu0 0.0
    %653 = vmatprep.subr.mxu0 0.0
    %654 = vmatpush1.msra.mxu0 0.0
    %655 = vmatprep.subr.mxu0 0.0
    %656 = vmatpush1.msra.mxu0 0.0
    %657 = vmatprep.subr.mxu0 0.0
    %658 = vmatpush1.msra.mxu0 0.0
    %659 = vmatprep.subr.mxu0 0.0
    %660 = vmatpush1.msra.mxu0 0.0
    %661 = vmatprep.subr.mxu0 0.0
    %662 = vmatpush1.msra.mxu0 0.0
    %663 = vmatprep.subr.mxu0 0.0
    %664 = vmatpush1.msra.mxu0 0.0
    %665 = vmatprep.subr.mxu0 0.0
    %666 = vmatpush1.msra.mxu0 0.0
    %667 = vmatprep.subr.mxu0 0.0
    %668 = vmatpush1.msra.mxu0 0.0
    %669 = vmatprep.subr.mxu0 0.0
    %670 = vmatpush1.msra.mxu0 0.0
    %671 = vmatprep.subr.mxu0 0.0
    %672 = vmatpush1.msra.mxu0 0.0
    %673 = vmatprep.subr.mxu0 0.0
    %674 = vmatpush1.msra.mxu0 0.0
    %675 = vmatprep.subr.mxu0 0.0
    %676 = vmatpush1.msra.mxu0 0.0
    %677 = vmatprep.subr.mxu0 0.0
    %678 = vmatpush1.msra.mxu0 0.0
    %679 = vmatprep.subr.mxu0 0.0
    %680 = vmatpush1.msra.mxu0 0.0
    %681 = vmatprep.subr.mxu0 0.0
    %682 = vmatpush1.msra.mxu0 0.0
    %683 = vmatprep.subr.mxu0 0.0
    %684 = vmatpush1.msra.mxu0 0.0
    %685 = vmatprep.subr.mxu0 0.0
    %686 = vmatpush1.msra.mxu0 0.0
    %687 = vmatprep.subr.mxu0 0.0
    %688 = vmatpush1.msra.mxu0 0.0
    %689 = vmatprep.subr.mxu0 0.0
    %690 = vmatpush1.msra.mxu0 0.0
    %691 = vmatprep.subr.mxu0 0.0
    %692 = vmatpush1.msra.mxu0 0.0
    %693 = vmatprep.subr.mxu0 0.0
    %694 = vmatpush1.msra.mxu0 0.0
    %695 = vmatprep.subr.mxu0 0.0
    %696 = vmatpush1.msra.mxu0 0.0
    %697 = vmatprep.subr.mxu0 0.0
    %698 = vmatpush1.msra.mxu0 0.0
    %699 = vmatprep.subr.mxu0 0.0
    %700 = vmatpush1.msra.mxu0 0.0
    %701 = vmatprep.mubr.f32.mxu0 0.0
    %702 = vmatmul.mubr.f32.gmra.mrb[0].mxu0 %v632
    %v703 = vpop.f32.mrb[0].mxu0
    %v704 = vadd.f32 0.0, %v703
    %v705 = vpop.f32.mrb[0].mxu0
    %706 = vmatprep.mubr.f32.mxu0 0.0
    %707 = vmatmul.mubr.f32.gmra.mrb[0].mxu0 %v635
    %v708 = vpop.f32.mrb[0].mxu0
    %v709 = vadd.f32 0.0, %v708
    %v710 = vpop.f32.mrb[0].mxu0
    %711 = vdwg.mxu0
    %712 = vrot.lane.b32.xlu0 %v306, 112
    %v713 = vpop.permute.xlu0 %712
    %714 = vrot.lane.b32.xlu0 %v307, 112
    %v715 = vpop.permute.xlu0 %714
    %716 = vrot.lane.b32.xlu0 %v312, 112
    %v717 = vpop.permute.xlu0 %716
    %718 = vrot.lane.b32.xlu0 %v313, 112
    %v719 = vpop.permute.xlu0 %718
    %v720 = vsel %vm314, %v713, 0
    %v722 = vsel %vm314, %v715, 0
    %v724 = vsel %vm314, %v717, 0
    %v726 = vsel %vm314, %v719, 0
    %728 = vmatprep.subr.mxu0 0.0
    %729 = vmatpush1.xpose.msra.mxu0 %v724
    %730 = vmatprep.subr.mxu0 0.0
    %731 = vmatpush1.xpose.msra.mxu0 %v726
    %732 = vmatprep.subr.mxu0 0.0
    %733 = vmatpush1.xpose.msra.mxu0 0.0
    %734 = vmatprep.subr.mxu0 0.0
    %735 = vmatpush1.xpose.msra.mxu0 0.0
    %736 = vmatprep.subr.mxu0 0.0
    %737 = vmatpush1.xpose.msra.mxu0 0.0
    %738 = vmatprep.subr.mxu0 0.0
    %739 = vmatpush1.xpose.msra.mxu0 0.0
    %740 = vmatprep.subr.mxu0 0.0
    %741 = vmatpush1.xpose.msra.mxu0 0.0
    %742 = vmatprep.subr.mxu0 0.0
    %743 = vmatpush1.xpose.msra.mxu0 0.0
    %744 = vmatprep.subr.mxu0 0.0
    %745 = vmatpush1.xpose.msra.mxu0 0.0
    %746 = vmatprep.subr.mxu0 0.0
    %747 = vmatpush1.xpose.msra.mxu0 0.0
    %748 = vmatprep.subr.mxu0 0.0
    %749 = vmatpush1.xpose.msra.mxu0 0.0
    %750 = vmatprep.subr.mxu0 0.0
    %751 = vmatpush1.xpose.msra.mxu0 0.0
    %752 = vmatprep.subr.mxu0 0.0
    %753 = vmatpush1.xpose.msra.mxu0 0.0
    %754 = vmatprep.subr.mxu0 0.0
    %755 = vmatpush1.xpose.msra.mxu0 0.0
    %756 = vmatprep.subr.mxu0 0.0
    %757 = vmatpush1.xpose.msra.mxu0 0.0
    %758 = vmatprep.subr.mxu0 0.0
    %759 = vmatpush1.xpose.msra.mxu0 0.0
    %760 = vmatprep.subr.mxu0 0.0
    %761 = vmatpush1.xpose.msra.mxu0 0.0
    %762 = vmatprep.subr.mxu0 0.0
    %763 = vmatpush1.xpose.msra.mxu0 0.0
    %764 = vmatprep.subr.mxu0 0.0
    %765 = vmatpush1.xpose.msra.mxu0 0.0
    %766 = vmatprep.subr.mxu0 0.0
    %767 = vmatpush1.xpose.msra.mxu0 0.0
    %768 = vmatprep.subr.mxu0 0.0
    %769 = vmatpush1.xpose.msra.mxu0 0.0
    %770 = vmatprep.subr.mxu0 0.0
    %771 = vmatpush1.xpose.msra.mxu0 0.0
    %772 = vmatprep.subr.mxu0 0.0
    %773 = vmatpush1.xpose.msra.mxu0 0.0
    %774 = vmatprep.subr.mxu0 0.0
    %775 = vmatpush1.xpose.msra.mxu0 0.0
    %776 = vmatprep.subr.mxu0 0.0
    %777 = vmatpush1.xpose.msra.mxu0 0.0
    %778 = vmatprep.subr.mxu0 0.0
    %779 = vmatpush1.xpose.msra.mxu0 0.0
    %780 = vmatprep.subr.mxu0 0.0
    %781 = vmatpush1.xpose.msra.mxu0 0.0
    %782 = vmatprep.subr.mxu0 0.0
    %783 = vmatpush1.xpose.msra.mxu0 0.0
    %784 = vmatprep.subr.mxu0 0.0
    %785 = vmatpush1.xpose.msra.mxu0 0.0
    %786 = vmatprep.subr.mxu0 0.0
    %787 = vmatpush1.xpose.msra.mxu0 0.0
    %788 = vmatprep.subr.mxu0 0.0
    %789 = vmatpush1.xpose.msra.mxu0 0.0
    %790 = vmatprep.subr.mxu0 0.0
    %791 = vmatpush1.xpose.msra.mxu0 0.0
    %792 = vmatprep.mubr.f32.mxu0 0.0
    %793 = vmatmul.mubr.f32.gmra.mrb[0].mxu0 %v720
    %v794 = vpop.f32.mrb[0].mxu0
    %v795 = vadd.f32 %v81, %v794
    %v796 = vpop.f32.mrb[0].mxu0
    %797 = vmatprep.mubr.f32.mxu0 0.0
    %798 = vmatmul.mubr.f32.gmra.mrb[0].mxu0 %v722
    %v799 = vpop.f32.mrb[0].mxu0
    %v800 = vadd.f32 %v82, %v799
    %v801 = vpop.f32.mrb[0].mxu0
    %802 = vdwg.mxu0
    %v803 = vsel %vm402, %v795, -inf
    %804 = vmax.xlane.f32.xlu0 %v803
    %v805 = vpop.xlane.xlu0 %804
    %v806 = vsel %vm402, %v800, -inf
    %807 = vmax.xlane.f32.xlu0 %v806
    %v808 = vpop.xlane.xlu0 %807
    %v809 = vsub.f32 %v795, %v805
    %v810 = vsub.f32 %v800, %v808
    %v811 = vmul.f32 %v809, 1.442695
    %v812 = vpow.pop %v811
    %v813 = vmul.f32 %v810, 1.442695
    %v814 = vpow.pop %v813
    %v815 = vsel %vm402, %v812, 0.0
    %816 = vadd.xlane.f32.xlu0 %v815
    %v817 = vpop.xlane.xlu0 %816
    %v818 = vsel %vm402, %v814, 0.0
    %819 = vadd.xlane.f32.xlu0 %v818
    %v820 = vpop.xlane.xlu0 %819
    %v821 = vrcp.pop %v817
    %v822 = vrcp.pop %v820
    %v823 = vmul.f32 %v812, %v821
    %v824 = vmul.f32 %v814, %v822
    %825 = vrot.lane.b32.xlu0 %v312, 80
    %v826 = vpop.permute.xlu0 %825
    %827 = vrot.lane.b32.xlu0 %v313, 80
    %v828 = vpop.permute.xlu0 %827
    %v832 = vsel %vm402, %v823, 0
    %v835 = vsel %vm402, %v824, 0
    %837 = vmatprep.subr.mxu0 0.0
    %838 = vmatpush1.msra.mxu0 %v826
    %839 = vmatprep.subr.mxu0 0.0
    %840 = vmatpush1.msra.mxu0 %v828
    %841 = vmatprep.subr.mxu0 0.0
    %842 = vmatpush1.msra.mxu0 0.0
    %843 = vmatprep.subr.mxu0 0.0
    %844 = vmatpush1.msra.mxu0 0.0
    %845 = vmatprep.subr.mxu0 0.0
    %846 = vmatpush1.msra.mxu0 0.0
    %847 = vmatprep.subr.mxu0 0.0
    %848 = vmatpush1.msra.mxu0 0.0
    %849 = vmatprep.subr.mxu0 0.0
    %850 = vmatpush1.msra.mxu0 0.0
    %851 = vmatprep.subr.mxu0 0.0
    %852 = vmatpush1.msra.mxu0 0.0
    %853 = vmatprep.subr.mxu0 0.0
    %854 = vmatpush1.msra.mxu0 0.0
    %855 = vmatprep.subr.mxu0 0.0
    %856 = vmatpush1.msra.mxu0 0.0
    %857 = vmatprep.subr.mxu0 0.0
    %858 = vmatpush1.msra.mxu0 0.0
    %859 = vmatprep.subr.mxu0 0.0
    %860 = vmatpush1.msra.mxu0 0.0
    %861 = vmatprep.subr.mxu0 0.0
    %862 = vmatpush1.msra.mxu0 0.0
    %863 = vmatprep.subr.mxu0 0.0
    %864 = vmatpush1.msra.mxu0 0.0
    %865 = vmatprep.subr.mxu0 0.0
    %866 = vmatpush1.msra.mxu0 0.0
    %867 = vmatprep.subr.mxu0 0.0
    %868 = vmatpush1.msra.mxu0 0.0
    %869 = vmatprep.subr.mxu0 0.0
    %870 = vmatpush1.msra.mxu0 0.0
    %871 = vmatprep.subr.mxu0 0.0
    %872 = vmatpush1.msra.mxu0 0.0
    %873 = vmatprep.subr.mxu0 0.0
    %874 = vmatpush1.msra.mxu0 0.0
    %875 = vmatprep.subr.mxu0 0.0
    %876 = vmatpush1.msra.mxu0 0.0
    %877 = vmatprep.subr.mxu0 0.0
    %878 = vmatpush1.msra.mxu0 0.0
    %879 = vmatprep.subr.mxu0 0.0
    %880 = vmatpush1.msra.mxu0 0.0
    %881 = vmatprep.subr.mxu0 0.0
    %882 = vmatpush1.msra.mxu0 0.0
    %883 = vmatprep.subr.mxu0 0.0
    %884 = vmatpush1.msra.mxu0 0.0
    %885 = vmatprep.subr.mxu0 0.0
    %886 = vmatpush1.msra.mxu0 0.0
    %887 = vmatprep.subr.mxu0 0.0
    %888 = vmatpush1.msra.mxu0 0.0
    %889 = vmatprep.subr.mxu0 0.0
    %890 = vmatpush1.msra.mxu0 0.0
    %891 = vmatprep.subr.mxu0 0.0
    %892 = vmatpush1.msra.mxu0 0.0
    %893 = vmatprep.subr.mxu0 0.0
    %894 = vmatpush1.msra.mxu0 0.0
    %895 = vmatprep.subr.mxu0 0.0
    %896 = vmatpush1.msra.mxu0 0.0
    %897 = vmatprep.subr.mxu0 0.0
    %898 = vmatpush1.msra.mxu0 0.0
    %899 = vmatprep.subr.mxu0 0.0
    %900 = vmatpush1.msra.mxu0 0.0
    %901 = vmatprep.mubr.f32.mxu0 0.0
    %902 = vmatmul.mubr.f32.gmra.mrb[0].mxu0 %v832
    %v903 = vpop.f32.mrb[0].mxu0
    %v904 = vadd.f32 0.0, %v903
    %v905 = vpop.f32.mrb[0].mxu0
    %906 = vmatprep.mubr.f32.mxu0 0.0
    %907 = vmatmul.mubr.f32.gmra.mrb[0].mxu0 %v835
    %v908 = vpop.f32.mrb[0].mxu0
    %v909 = vadd.f32 0.0, %v908
    %v910 = vpop.f32.mrb[0].mxu0
    %911 = vdwg.mxu0
    %912 = vrot.lane.b32.xlu0 %v306, 104
    %v913 = vpop.permute.xlu0 %912
    %914 = vrot.lane.b32.xlu0 %v307, 104
    %v915 = vpop.permute.xlu0 %914
    %916 = vrot.lane.b32.xlu0 %v312, 104
    %v917 = vpop.permute.xlu0 %916
    %918 = vrot.lane.b32.xlu0 %v313, 104
    %v919 = vpop.permute.xlu0 %918
    %v920 = vsel %vm314, %v913, 0
    %v922 = vsel %vm314, %v915, 0
    %v924 = vsel %vm314, %v917, 0
    %v926 = vsel %vm314, %v919, 0
    %928 = vmatprep.subr.mxu0 0.0
    %929 = vmatpush1.xpose.msra.mxu0 %v924
    %930 = vmatprep.subr.mxu0 0.0
    %931 = vmatpush1.xpose.msra.mxu0 %v926
    %932 = vmatprep.subr.mxu0 0.0
    %933 = vmatpush1.xpose.msra.mxu0 0.0
    %934 = vmatprep.subr.mxu0 0.0
    %935 = vmatpush1.xpose.msra.mxu0 0.0
    %936 = vmatprep.subr.mxu0 0.0
    %937 = vmatpush1.xpose.msra.mxu0 0.0
    %938 = vmatprep.subr.mxu0 0.0
    %939 = vmatpush1.xpose.msra.mxu0 0.0
    %940 = vmatprep.subr.mxu0 0.0
    %941 = vmatpush1.xpose.msra.mxu0 0.0
    %942 = vmatprep.subr.mxu0 0.0
    %943 = vmatpush1.xpose.msra.mxu0 0.0
    %944 = vmatprep.subr.mxu0 0.0
    %945 = vmatpush1.xpose.msra.mxu0 0.0
    %946 = vmatprep.subr.mxu0 0.0
    %947 = vmatpush1.xpose.msra.mxu0 0.0
    %948 = vmatprep.subr.mxu0 0.0
    %949 = vmatpush1.xpose.msra.mxu0 0.0
    %950 = vmatprep.subr.mxu0 0.0
    %951 = vmatpush1.xpose.msra.mxu0 0.0
    %952 = vmatprep.subr.mxu0 0.0
    %953 = vmatpush1.xpose.msra.mxu0 0.0
    %954 = vmatprep.subr.mxu0 0.0
    %955 = vmatpush1.xpose.msra.mxu0 0.0
    %956 = vmatprep.subr.mxu0 0.0
    %957 = vmatpush1.xpose.msra.mxu0 0.0
    %958 = vmatprep.subr.mxu0 0.0
    %959 = vmatpush1.xpose.msra.mxu0 0.0
    %960 = vmatprep.subr.mxu0 0.0
    %961 = vmatpush1.xpose.msra.mxu0 0.0
    %962 = vmatprep.subr.mxu0 0.0
    %963 = vmatpush1.xpose.msra.mxu0 0.0
    %964 = vmatprep.subr.mxu0 0.0
    %965 = vmatpush1.xpose.msra.mxu0 0.0
    %966 = vmatprep.subr.mxu0 0.0
    %967 = vmatpush1.xpose.msra.mxu0 0.0
    %968 = vmatprep.subr.mxu0 0.0
    %969 = vmatpush1.xpose.msra.mxu0 0.0
    %970 = vmatprep.subr.mxu0 0.0
    %971 = vmatpush1.xpose.msra.mxu0 0.0
    %972 = vmatprep.subr.mxu0 0.0
    %973 = vmatpush1.xpose.msra.mxu0 0.0
    %974 = vmatprep.subr.mxu0 0.0
    %975 = vmatpush1.xpose.msra.mxu0 0.0
    %976 = vmatprep.subr.mxu0 0.0
    %977 = vmatpush1.xpose.msra.mxu0 0.0
    %978 = vmatprep.subr.mxu0 0.0
    %979 = vmatpush1.xpose.msra.mxu0 0.0
    %980 = vmatprep.subr.mxu0 0.0
    %981 = vmatpush1.xpose.msra.mxu0 0.0
    %982 = vmatprep.subr.mxu0 0.0
    %983 = vmatpush1.xpose.msra.mxu0 0.0
    %984 = vmatprep.subr.mxu0 0.0
    %985 = vmatpush1.xpose.msra.mxu0 0.0
    %986 = vmatprep.subr.mxu0 0.0
    %987 = vmatpush1.xpose.msra.mxu0 0.0
    %988 = vmatprep.subr.mxu0 0.0
    %989 = vmatpush1.xpose.msra.mxu0 0.0
    %990 = vmatprep.subr.mxu0 0.0
    %991 = vmatpush1.xpose.msra.mxu0 0.0
    %992 = vmatprep.mubr.f32.mxu0 0.0
    %993 = vmatmul.mubr.f32.gmra.mrb[0].mxu0 %v920
    %v994 = vpop.f32.mrb[0].mxu0
    %v995 = vadd.f32 %v81, %v994
    %v996 = vpop.f32.mrb[0].mxu0
    %997 = vmatprep.mubr.f32.mxu0 0.0
    %998 = vmatmul.mubr.f32.gmra.mrb[0].mxu0 %v922
    %v999 = vpop.f32.mrb[0].mxu0
    %v1000 = vadd.f32 %v82, %v999
    %v1001 = vpop.f32.mrb[0].mxu0
    %1002 = vdwg.mxu0
    %v1003 = vsel %vm402, %v995, -inf
    %1004 = vmax.xlane.f32.xlu0 %v1003
    %v1005 = vpop.xlane.xlu0 %1004
    %v1006 = vsel %vm402, %v1000, -inf
    %1007 = vmax.xlane.f32.xlu0 %v1006
    %v1008 = vpop.xlane.xlu0 %1007
    %v1009 = vsub.f32 %v995, %v1005
    %v1010 = vsub.f32 %v1000, %v1008
    %v1011 = vmul.f32 %v1009, 1.442695
    %v1012 = vpow.pop %v1011
    %v1013 = vmul.f32 %v1010, 1.442695
    %v1014 = vpow.pop %v1013
    %v1015 = vsel %vm402, %v1012, 0.0
    %1016 = vadd.xlane.f32.xlu0 %v1015
    %v1017 = vpop.xlane.xlu0 %1016
    %v1018 = vsel %vm402, %v1014, 0.0
    %1019 = vadd.xlane.f32.xlu0 %v1018
    %v1020 = vpop.xlane.xlu0 %1019
    %v1021 = vrcp.pop %v1017
    %v1022 = vrcp.pop %v1020
    %v1023 = vmul.f32 %v1012, %v1021
    %v1024 = vmul.f32 %v1014, %v1022
    %1025 = vrot.lane.b32.xlu0 %v312, 72
    %v1026 = vpop.permute.xlu0 %1025
    %1027 = vrot.lane.b32.xlu0 %v313, 72
    %v1028 = vpop.permute.xlu0 %1027
    %v1032 = vsel %vm402, %v1023, 0
    %v1035 = vsel %vm402, %v1024, 0
    %1037 = vmatprep.subr.mxu0 0.0
    %1038 = vmatpush1.msra.mxu0 %v1026
    %1039 = vmatprep.subr.mxu0 0.0
    %1040 = vmatpush1.msra.mxu0 %v1028
    %1041 = vmatprep.subr.mxu0 0.0
    %1042 = vmatpush1.msra.mxu0 0.0
    %1043 = vmatprep.subr.mxu0 0.0
    %1044 = vmatpush1.msra.mxu0 0.0
    %1045 = vmatprep.subr.mxu0 0.0
    %1046 = vmatpush1.msra.mxu0 0.0
    %1047 = vmatprep.subr.mxu0 0.0
    %1048 = vmatpush1.msra.mxu0 0.0
    %1049 = vmatprep.subr.mxu0 0.0
    %1050 = vmatpush1.msra.mxu0 0.0
    %1051 = vmatprep.subr.mxu0 0.0
    %1052 = vmatpush1.msra.mxu0 0.0
    %1053 = vmatprep.subr.mxu0 0.0
    %1054 = vmatpush1.msra.mxu0 0.0
    %1055 = vmatprep.subr.mxu0 0.0
    %1056 = vmatpush1.msra.mxu0 0.0
    %1057 = vmatprep.subr.mxu0 0.0
    %1058 = vmatpush1.msra.mxu0 0.0
    %1059 = vmatprep.subr.mxu0 0.0
    %1060 = vmatpush1.msra.mxu0 0.0
    %1061 = vmatprep.subr.mxu0 0.0
    %1062 = vmatpush1.msra.mxu0 0.0
    %1063 = vmatprep.subr.mxu0 0.0
    %1064 = vmatpush1.msra.mxu0 0.0
    %1065 = vmatprep.subr.mxu0 0.0
    %1066 = vmatpush1.msra.mxu0 0.0
    %1067 = vmatprep.subr.mxu0 0.0
    %1068 = vmatpush1.msra.mxu0 0.0
    %1069 = vmatprep.subr.mxu0 0.0
    %1070 = vmatpush1.msra.mxu0 0.0
    %1071 = vmatprep.subr.mxu0 0.0
    %1072 = vmatpush1.msra.mxu0 0.0
    %1073 = vmatprep.subr.mxu0 0.0
    %1074 = vmatpush1.msra.mxu0 0.0
    %1075 = vmatprep.subr.mxu0 0.0
    %1076 = vmatpush1.msra.mxu0 0.0
    %1077 = vmatprep.subr.mxu0 0.0
    %1078 = vmatpush1.msra.mxu0 0.0
    %1079 = vmatprep.subr.mxu0 0.0
    %1080 = vmatpush1.msra.mxu0 0.0
    %1081 = vmatprep.subr.mxu0 0.0
    %1082 = vmatpush1.msra.mxu0 0.0
    %1083 = vmatprep.subr.mxu0 0.0
    %1084 = vmatpush1.msra.mxu0 0.0
    %1085 = vmatprep.subr.mxu0 0.0
    %1086 = vmatpush1.msra.mxu0 0.0
    %1087 = vmatprep.subr.mxu0 0.0
    %1088 = vmatpush1.msra.mxu0 0.0
    %1089 = vmatprep.subr.mxu0 0.0
    %1090 = vmatpush1.msra.mxu0 0.0
    %1091 = vmatprep.subr.mxu0 0.0
    %1092 = vmatpush1.msra.mxu0 0.0
    %1093 = vmatprep.subr.mxu0 0.0
    %1094 = vmatpush1.msra.mxu0 0.0
    %1095 = vmatprep.subr.mxu0 0.0
    %1096 = vmatpush1.msra.mxu0 0.0
    %1097 = vmatprep.subr.mxu0 0.0
    %1098 = vmatpush1.msra.mxu0 0.0
    %1099 = vmatprep.subr.mxu0 0.0
    %1100 = vmatpush1.msra.mxu0 0.0
    %1101 = vmatprep.mubr.f32.mxu0 0.0
    %1102 = vmatmul.mubr.f32.gmra.mrb[0].mxu0 %v1032
    %v1103 = vpop.f32.mrb[0].mxu0
    %v1104 = vadd.f32 0.0, %v1103
    %v1105 = vpop.f32.mrb[0].mxu0
    %1106 = vmatprep.mubr.f32.mxu0 0.0
    %1107 = vmatmul.mubr.f32.gmra.mrb[0].mxu0 %v1035
    %v1108 = vpop.f32.mrb[0].mxu0
    %v1109 = vadd.f32 0.0, %v1108
    %v1110 = vpop.f32.mrb[0].mxu0
    %1111 = vdwg.mxu0
    %1114 = vrot.lane.b32.xlu0 %v704, 8
    %v1115 = vpop.permute.xlu0 %1114
    %1116 = vrot.lane.b32.xlu0 %v709, 8
    %v1117 = vpop.permute.xlu0 %1116
    %1122 = vrot.lane.b32.xlu0 %v904, 16
    %v1123 = vpop.permute.xlu0 %1122
    %1124 = vrot.lane.b32.xlu0 %v909, 16
    %v1125 = vpop.permute.xlu0 %1124
    %1130 = vrot.lane.b32.xlu0 %v1104, 24
    %v1131 = vpop.permute.xlu0 %1130
    %1132 = vrot.lane.b32.xlu0 %v1109, 24
    %v1133 = vpop.permute.xlu0 %1132
    %v1136 = vsel %vm314, %v504, %v1115
    %v1137 = vsel %vm314, %v509, %v1117
    %v1138 = vsel %vm402, %v1136, %v1123
    %v1139 = vsel %vm402, %v1137, %v1125
    %vm1140 = vcmask 195584
    %v1141 = vsel %vm1140, %v1138, %v1131
    %v1142 = vsel %vm1140, %v1139, %v1133
    %v1143 = vsel %vm124, %v1141, 0.0
    %1144 = vadd.xlane.f32.xlu0 %v1143
    %v1145 = vpop.xlane.xlu0 %1144
    %v1146 = vsel %vm124, %v1142, 0.0
    %1147 = vadd.xlane.f32.xlu0 %v1146
    %v1148 = vpop.xlane.xlu0 %1147
    %v1149 = vrcp.pop 32.0
    %v1150 = vmul.f32 %v1145, %v1149
    %v1151 = vmul.f32 %v1148, %v1149
    %v1152 = vsub.f32 %v1141, %v1150
    %v1153 = vsub.f32 %v1142, %v1151
    %v1154 = vmul.f32 %v1152, %v1152
    %v1155 = vmul.f32 %v1153, %v1153
    %v1156 = vsel %vm124, %v1154, 0.0
    %1157 = vadd.xlane.f32.xlu0 %v1156
    %v1158 = vpop.xlane.xlu0 %1157
    %v1159 = vsel %vm124, %v1155, 0.0
    %1160 = vadd.xlane.f32.xlu0 %v1159
    %v1161 = vpop.xlane.xlu0 %1160
    %v1162 = vrcp.pop 31.0
    %v1163 = vmul.f32 %v1158, %v1162
    %v1164 = vmul.f32 %v1161, %v1162
    %v1165 = vrsqrt.pop %v1163
    %v1166 = vmul.f32 %v1163, %v1165
    %vm1167 = vcmp.eq.f32.partialorder %v1163, inf
    %v1168 = vsel %vm1167, %v1163, %v1166
    %vm1169 = vcmp.eq.f32.partialorder %v1163, 0.0
    %v1170 = vand.u32 %v1163, 2147483648
    %v1171 = vsel %vm1169, %v1170, %v1168
    %v1172 = vrsqrt.pop %v1164
    %v1173 = vmul.f32 %v1164, %v1172
    %vm1174 = vcmp.eq.f32.partialorder %v1164, inf
    %v1175 = vsel %vm1174, %v1164, %v1173
    %vm1176 = vcmp.eq.f32.partialorder %v1164, 0.0
    %v1177 = vand.u32 %v1164, 2147483648
    %v1178 = vsel %vm1176, %v1177, %v1175
    %v1179 = vadd.f32 %v1171, 1e-08
    %v1180 = vadd.f32 %v1178, 1e-08
    %v1181 = vrcp.pop %v1179
    %v1182 = vmul.f32 %v1152, %v1181
    %v1183 = vrcp.pop %v1180
    %v1184 = vmul.f32 %v1153, %v1183
    %v1185 = vlaneseq
    %v1186 = vshrl.u32 %v1185, 7
    %v1187 = vsub.s32 0, %v1186
    %v1188 = vrot.slane %v208, %v1187
    %1191 = vrot.lane.b32.xlu0 %v1182, 64
    %v1192 = vpop.permute.xlu0 %1191
    %1193 = vrot.lane.b32.xlu0 %v1184, 64
    %v1194 = vpop.permute.xlu0 %1193
    %v1197 = vmul.f32 %v1188, %v1192
    %v1198 = vmul.f32 %v1188, %v1194
    %1200 = vrot.lane.b32.xlu0 %v1188, 96
    %v1201 = vpop.permute.xlu0 %1200
    %v1203 = vadd.f32 %v1197, %v1201
    %v1204 = vadd.f32 %v1198, %v1201
    %1207 = vrot.lane.b32.xlu0 %v1203, 64
    %v1208 = vpop.permute.xlu0 %1207
    %1209 = vrot.lane.b32.xlu0 %v1204, 64
    %v1210 = vpop.permute.xlu0 %1209
    %v1213 = vadd.f32 %v76, %v1208
    %v1214 = vadd.f32 %v77, %v1210
    %v1216 = vlaneseq
    %v1217 = vshrl.u32 %v1216, 7
    %v1218 = vsub.s32 0, %v1217
    %v1219 = vrot.slane %v207, %v1218
    %v1220 = vlaneseq
    %v1221 = vshrl.u32 %v1220, 7
    %v1222 = vsub.s32 2, %v1221
    %v1223 = vrot.slane %v207, %v1222
    %v1226 = vlaneseq
    %v1227 = vshrl.u32 %v1226, 7
    %v1228 = vsub.s32 0, %v1227
    %v1229 = vrot.slane %v1219, %v1228
    %v1230 = vlaneseq
    %v1231 = vshrl.u32 %v1230, 7
    %v1232 = vsub.s32 0, %v1231
    %v1233 = vrot.slane %v1223, %v1232
    %1240 = vrot.lane.b32.xlu0 %v1229, 32
    %v1241 = vpop.permute.xlu0 %1240
    %1242 = vrot.lane.b32.xlu0 %v1233, 32
    %v1243 = vpop.permute.xlu0 %1242
    %v1244 = vsel %vm124, %v1241, %v1243
    %v1247 = vsel %vm124, %v1213, 0
    %v1250 = vsel %vm124, %v1214, 0
    %1252 = vmatprep.subr.mxu0 0.0
    %1253 = vmatpush1.msra.mxu0 %v102
    %1254 = vmatprep.subr.mxu0 0.0
    %1255 = vmatpush1.msra.mxu0 %v106
    %1256 = vmatprep.subr.mxu0 0.0
    %1257 = vmatpush1.msra.mxu0 %v110
    %1258 = vmatprep.subr.mxu0 0.0
    %1259 = vmatpush1.msra.mxu0 %v114
    %1260 = vmatprep.subr.mxu0 0.0
    %1261 = vmatpush1.msra.mxu0 0.0
    %1262 = vmatprep.subr.mxu0 0.0
    %1263 = vmatpush1.msra.mxu0 0.0
    %1264 = vmatprep.subr.mxu0 0.0
    %1265 = vmatpush1.msra.mxu0 0.0
    %1266 = vmatprep.subr.mxu0 0.0
    %1267 = vmatpush1.msra.mxu0 0.0
    %1268 = vmatprep.subr.mxu0 0.0
    %1269 = vmatpush1.msra.mxu0 0.0
    %1270 = vmatprep.subr.mxu0 0.0
    %1271 = vmatpush1.msra.mxu0 0.0
    %1272 = vmatprep.subr.mxu0 0.0
    %1273 = vmatpush1.msra.mxu0 0.0
    %1274 = vmatprep.subr.mxu0 0.0
    %1275 = vmatpush1.msra.mxu0 0.0
    %1276 = vmatprep.subr.mxu0 0.0
    %1277 = vmatpush1.msra.mxu0 0.0
    %1278 = vmatprep.subr.mxu0 0.0
    %1279 = vmatpush1.msra.mxu0 0.0
    %1280 = vmatprep.subr.mxu0 0.0
    %1281 = vmatpush1.msra.mxu0 0.0
    %1282 = vmatprep.subr.mxu0 0.0
    %1283 = vmatpush1.msra.mxu0 0.0
    %1284 = vmatprep.subr.mxu0 0.0
    %1285 = vmatpush1.msra.mxu0 0.0
    %1286 = vmatprep.subr.mxu0 0.0
    %1287 = vmatpush1.msra.mxu0 0.0
    %1288 = vmatprep.subr.mxu0 0.0
    %1289 = vmatpush1.msra.mxu0 0.0
    %1290 = vmatprep.subr.mxu0 0.0
    %1291 = vmatpush1.msra.mxu0 0.0
    %1292 = vmatprep.subr.mxu0 0.0
    %1293 = vmatpush1.msra.mxu0 0.0
    %1294 = vmatprep.subr.mxu0 0.0
    %1295 = vmatpush1.msra.mxu0 0.0
    %1296 = vmatprep.subr.mxu0 0.0
    %1297 = vmatpush1.msra.mxu0 0.0
    %1298 = vmatprep.subr.mxu0 0.0
    %1299 = vmatpush1.msra.mxu0 0.0
    %1300 = vmatprep.subr.mxu0 0.0
    %1301 = vmatpush1.msra.mxu0 0.0
    %1302 = vmatprep.subr.mxu0 0.0
    %1303 = vmatpush1.msra.mxu0 0.0
    %1304 = vmatprep.subr.mxu0 0.0
    %1305 = vmatpush1.msra.mxu0 0.0
    %1306 = vmatprep.subr.mxu0 0.0
    %1307 = vmatpush1.msra.mxu0 0.0
    %1308 = vmatprep.subr.mxu0 0.0
    %1309 = vmatpush1.msra.mxu0 0.0
    %1310 = vmatprep.subr.mxu0 0.0
    %1311 = vmatpush1.msra.mxu0 0.0
    %1312 = vmatprep.subr.mxu0 0.0
    %1313 = vmatpush1.msra.mxu0 0.0
    %1314 = vmatprep.subr.mxu0 0.0
    %1315 = vmatpush1.msra.mxu0 0.0
    %1316 = vmatprep.mubr.f32.mxu0 0.0
    %1317 = vmatmul.mubr.f32.gmra.mrb[0].mxu0 %v1247
    %v1318 = vpop.f32.mrb[0].mxu0
    %v1319 = vadd.f32 %v1244, %v1318
    %v1320 = vpop.f32.mrb[0].mxu0
    %1321 = vmatprep.mubr.f32.mxu0 0.0
    %1322 = vmatmul.mubr.f32.gmra.mrb[0].mxu0 %v1250
    %v1323 = vpop.f32.mrb[0].mxu0
    %v1324 = vadd.f32 %v1244, %v1323
    %v1325 = vpop.f32.mrb[0].mxu0
    %1326 = vdwg.mxu0
    %v1327 = vmul.f32 %v1319, 0.5
    %v1328 = vmul.f32 %v1324, 0.5
    %v1329 = vmul.f32 %v1319, %v1319
    %v1330 = vmul.f32 %v1324, %v1324
    %v1331 = vmul.f32 %v1319, %v1329
    %v1332 = vmul.f32 %v1324, %v1330
    %v1333 = vmul.f32 %v1331, 0.0044715
    %v1334 = vmul.f32 %v1332, 0.0044715
    %v1335 = vadd.f32 %v1319, %v1333
    %v1336 = vadd.f32 %v1324, %v1334
    %v1337 = vmul.f32 %v1335, 0.7978846
    %v1338 = vmul.f32 %v1336, 0.7978846
    %v1339 = vtanh.pop %v1337
    %v1340 = vtanh.pop %v1338
    %v1341 = vadd.f32 %v1339, 1.0
    %v1342 = vadd.f32 %v1340, 1.0
    %v1343 = vmul.f32 %v1327, %v1341
    %v1344 = vmul.f32 %v1328, %v1342
    %v1346 = vsel %vm115, %v1343, 0
    %v1349 = vsel %vm115, %v1344, 0
    %1351 = vmatprep.subr.mxu0 0.0
    %1352 = vmatpush1.msra.mxu0 %v213
    %1353 = vmatprep.subr.mxu0 0.0
    %1354 = vmatpush1.msra.mxu0 %v214
    %1355 = vmatprep.subr.mxu0 0.0
    %1356 = vmatpush1.msra.mxu0 %v215
    %1357 = vmatprep.subr.mxu0 0.0
    %1358 = vmatpush1.msra.mxu0 %v216
    %1359 = vmatprep.subr.mxu0 0.0
    %1360 = vmatpush1.msra.mxu0 %v217
    %1361 = vmatprep.subr.mxu0 0.0
    %1362 = vmatpush1.msra.mxu0 %v218
    %1363 = vmatprep.subr.mxu0 0.0
    %1364 = vmatpush1.msra.mxu0 %v219
    %1365 = vmatprep.subr.mxu0 0.0
    %1366 = vmatpush1.msra.mxu0 %v220
    %1367 = vmatprep.subr.mxu0 0.0
    %1368 = vmatpush1.msra.mxu0 0.0
    %1369 = vmatprep.subr.mxu0 0.0
    %1370 = vmatpush1.msra.mxu0 0.0
    %1371 = vmatprep.subr.mxu0 0.0
    %1372 = vmatpush1.msra.mxu0 0.0
    %1373 = vmatprep.subr.mxu0 0.0
    %1374 = vmatpush1.msra.mxu0 0.0
    %1375 = vmatprep.subr.mxu0 0.0
    %1376 = vmatpush1.msra.mxu0 0.0
    %1377 = vmatprep.subr.mxu0 0.0
    %1378 = vmatpush1.msra.mxu0 0.0
    %1379 = vmatprep.subr.mxu0 0.0
    %1380 = vmatpush1.msra.mxu0 0.0
    %1381 = vmatprep.subr.mxu0 0.0
    %1382 = vmatpush1.msra.mxu0 0.0
    %1383 = vmatprep.subr.mxu0 0.0
    %1384 = vmatpush1.msra.mxu0 0.0
    %1385 = vmatprep.subr.mxu0 0.0
    %1386 = vmatpush1.msra.mxu0 0.0
    %1387 = vmatprep.subr.mxu0 0.0
    %1388 = vmatpush1.msra.mxu0 0.0
    %1389 = vmatprep.subr.mxu0 0.0
    %1390 = vmatpush1.msra.mxu0 0.0
    %1391 = vmatprep.subr.mxu0 0.0
    %1392 = vmatpush1.msra.mxu0 0.0
    %1393 = vmatprep.subr.mxu0 0.0
    %1394 = vmatpush1.msra.mxu0 0.0
    %1395 = vmatprep.subr.mxu0 0.0
    %1396 = vmatpush1.msra.mxu0 0.0
    %1397 = vmatprep.subr.mxu0 0.0
    %1398 = vmatpush1.msra.mxu0 0.0
    %1399 = vmatprep.subr.mxu0 0.0
    %1400 = vmatpush1.msra.mxu0 0.0
    %1401 = vmatprep.subr.mxu0 0.0
    %1402 = vmatpush1.msra.mxu0 0.0
    %1403 = vmatprep.subr.mxu0 0.0
    %1404 = vmatpush1.msra.mxu0 0.0
    %1405 = vmatprep.subr.mxu0 0.0
    %1406 = vmatpush1.msra.mxu0 0.0
    %1407 = vmatprep.subr.mxu0 0.0
    %1408 = vmatpush1.msra.mxu0 0.0
    %1409 = vmatprep.subr.mxu0 0.0
    %1410 = vmatpush1.msra.mxu0 0.0
    %1411 = vmatprep.subr.mxu0 0.0
    %1412 = vmatpush1.msra.mxu0 0.0
    %1413 = vmatprep.subr.mxu0 0.0
    %1414 = vmatpush1.msra.mxu0 0.0
    %1415 = vmatprep.mubr.f32.mxu0 0.0
    %1416 = vmatmul.mubr.f32.gmra.mrb[0].mxu0 %v1346
    %v1417 = vpop.f32.mrb[0].mxu0
    %v1418 = vadd.f32 %v1201, %v1417
    %v1419 = vpop.f32.mrb[0].mxu0
    %1420 = vmatprep.mubr.f32.mxu0 0.0
    %1421 = vmatmul.mubr.f32.gmra.mrb[0].mxu0 %v1349
    %v1422 = vpop.f32.mrb[0].mxu0
    %v1423 = vadd.f32 %v1201, %v1422
    %v1424 = vpop.f32.mrb[0].mxu0
    %1425 = vdwg.mxu0
    %v1426 = vsel %vm124, %v1418, 0.0
    %1427 = vadd.xlane.f32.xlu0 %v1426
    %v1428 = vpop.xlane.xlu0 %1427
    %v1429 = vsel %vm124, %v1423, 0.0
    %1430 = vadd.xlane.f32.xlu0 %v1429
    %v1431 = vpop.xlane.xlu0 %1430
    %v1432 = vmul.f32 %v1428, %v1149
    %v1433 = vmul.f32 %v1431, %v1149
    %v1434 = vsub.f32 %v1418, %v1432
    %v1435 = vsub.f32 %v1423, %v1433
    %v1436 = vmul.f32 %v1434, %v1434
    %v1437 = vmul.f32 %v1435, %v1435
    %v1438 = vsel %vm124, %v1436, 0.0
    %1439 = vadd.xlane.f32.xlu0 %v1438
    %v1440 = vpop.xlane.xlu0 %1439
    %v1441 = vsel %vm124, %v1437, 0.0
    %1442 = vadd.xlane.f32.xlu0 %v1441
    %v1443 = vpop.xlane.xlu0 %1442
    %v1444 = vmul.f32 %v1440, %v1162
    %v1445 = vmul.f32 %v1443, %v1162
    %v1446 = vrsqrt.pop %v1444
    %v1447 = vmul.f32 %v1444, %v1446
    %vm1448 = vcmp.eq.f32.partialorder %v1444, inf
    %v1449 = vsel %vm1448, %v1444, %v1447
    %vm1450 = vcmp.eq.f32.partialorder %v1444, 0.0
    %v1451 = vand.u32 %v1444, 2147483648
    %v1452 = vsel %vm1450, %v1451, %v1449
    %v1453 = vrsqrt.pop %v1445
    %v1454 = vmul.f32 %v1445, %v1453
    %vm1455 = vcmp.eq.f32.partialorder %v1445, inf
    %v1456 = vsel %vm1455, %v1445, %v1454
    %vm1457 = vcmp.eq.f32.partialorder %v1445, 0.0
    %v1458 = vand.u32 %v1445, 2147483648
    %v1459 = vsel %vm1457, %v1458, %v1456
    %v1460 = vadd.f32 %v1452, 1e-08
    %v1461 = vadd.f32 %v1459, 1e-08
    %v1462 = vrcp.pop %v1460
    %v1463 = vmul.f32 %v1434, %v1462
    %v1464 = vrcp.pop %v1461
    %v1465 = vmul.f32 %v1435, %v1464
    %1468 = vrot.lane.b32.xlu0 %v1463, 64
    %v1469 = vpop.permute.xlu0 %1468
    %1470 = vrot.lane.b32.xlu0 %v1465, 64
    %v1471 = vpop.permute.xlu0 %1470
    %v1474 = vmul.f32 %v1188, %v1469
    %v1475 = vmul.f32 %v1188, %v1471
    %v1476 = vadd.f32 %v1474, %v1201
    %v1477 = vadd.f32 %v1475, %v1201
    %1480 = vrot.lane.b32.xlu0 %v1476, 64
    %v1481 = vpop.permute.xlu0 %1480
    %1482 = vrot.lane.b32.xlu0 %v1477, 64
    %v1483 = vpop.permute.xlu0 %1482
    %v1486 = vadd.f32 %v1213, %v1481
    %v1487 = vadd.f32 %v1214, %v1483
    %v1488 = vld [vmem:[%s4 + $0x1] sm:$0x1]
    %v1489 = vld [vmem:[%s4 + $0x1] sm:$0x5]
    %v1490 = vld [vmem:[%s4 + $0x3] sm:$0x1]
    %v1491 = vld [vmem:[#allocation7 + $0x10] sm:$0xff]
    %v1492 = vld [vmem:[#allocation7 + $0x28] sm:$0xff]
    %v1493 = vld [vmem:[#allocation7 + $0x40] sm:$0xff]
    %v1494 = vld [vmem:[#allocation7 + $0x58] sm:$0xff]
    %v1495 = vlaneseq
    %v1496 = vshrl.u32 %v1495, 7
    %v1497 = vsub.s32 0, %v1496
    %v1498 = vrot.slane %v1488, %v1497
    %1503 = vrot.lane.b32.xlu0 %v209, 96
    %v1504 = vpop.permute.xlu0 %1503
    %1505 = vrot.lane.b32.xlu0 %v210, 96
    %v1506 = vpop.permute.xlu0 %1505
    %1507 = vrot.lane.b32.xlu0 %v211, 96
    %v1508 = vpop.permute.xlu0 %1507
    %1509 = vrot.lane.b32.xlu0 %v212, 96
    %v1510 = vpop.permute.xlu0 %1509
    %v1516 = vsel %vm124, %v1486, 0
    %v1519 = vsel %vm124, %v1487, 0
    %1521 = vmatprep.subr.mxu0 0.0
    %1522 = vmatpush1.msra.mxu0 %v1504
    %1523 = vmatprep.subr.mxu0 0.0
    %1524 = vmatpush1.msra.mxu0 %v1506
    %1525 = vmatprep.subr.mxu0 0.0
    %1526 = vmatpush1.msra.mxu0 %v1508
    %1527 = vmatprep.subr.mxu0 0.0
    %1528 = vmatpush1.msra.mxu0 %v1510
    %1529 = vmatprep.subr.mxu0 0.0
    %1530 = vmatpush1.msra.mxu0 0.0
    %1531 = vmatprep.subr.mxu0 0.0
    %1532 = vmatpush1.msra.mxu0 0.0
    %1533 = vmatprep.subr.mxu0 0.0
    %1534 = vmatpush1.msra.mxu0 0.0
    %1535 = vmatprep.subr.mxu0 0.0
    %1536 = vmatpush1.msra.mxu0 0.0
    %1537 = vmatprep.subr.mxu0 0.0
    %1538 = vmatpush1.msra.mxu0 0.0
    %1539 = vmatprep.subr.mxu0 0.0
    %1540 = vmatpush1.msra.mxu0 0.0
    %1541 = vmatprep.subr.mxu0 0.0
    %1542 = vmatpush1.msra.mxu0 0.0
    %1543 = vmatprep.subr.mxu0 0.0
    %1544 = vmatpush1.msra.mxu0 0.0
    %1545 = vmatprep.subr.mxu0 0.0
    %1546 = vmatpush1.msra.mxu0 0.0
    %1547 = vmatprep.subr.mxu0 0.0
    %1548 = vmatpush1.msra.mxu0 0.0
    %1549 = vmatprep.subr.mxu0 0.0
    %1550 = vmatpush1.msra.mxu0 0.0
    %1551 = vmatprep.subr.mxu0 0.0
    %1552 = vmatpush1.msra.mxu0 0.0
    %1553 = vmatprep.subr.mxu0 0.0
    %1554 = vmatpush1.msra.mxu0 0.0
    %1555 = vmatprep.subr.mxu0 0.0
    %1556 = vmatpush1.msra.mxu0 0.0
    %1557 = vmatprep.subr.mxu0 0.0
    %1558 = vmatpush1.msra.mxu0 0.0
    %1559 = vmatprep.subr.mxu0 0.0
    %1560 = vmatpush1.msra.mxu0 0.0
    %1561 = vmatprep.subr.mxu0 0.0
    %1562 = vmatpush1.msra.mxu0 0.0
    %1563 = vmatprep.subr.mxu0 0.0
    %1564 = vmatpush1.msra.mxu0 0.0
    %1565 = vmatprep.subr.mxu0 0.0
    %1566 = vmatpush1.msra.mxu0 0.0
    %1567 = vmatprep.subr.mxu0 0.0
    %1568 = vmatpush1.msra.mxu0 0.0
    %1569 = vmatprep.subr.mxu0 0.0
    %1570 = vmatpush1.msra.mxu0 0.0
    %1571 = vmatprep.subr.mxu0 0.0
    %1572 = vmatpush1.msra.mxu0 0.0
    %1573 = vmatprep.subr.mxu0 0.0
    %1574 = vmatpush1.msra.mxu0 0.0
    %1575 = vmatprep.subr.mxu0 0.0
    %1576 = vmatpush1.msra.mxu0 0.0
    %1577 = vmatprep.subr.mxu0 0.0
    %1578 = vmatpush1.msra.mxu0 0.0
    %1579 = vmatprep.subr.mxu0 0.0
    %1580 = vmatpush1.msra.mxu0 0.0
    %1581 = vmatprep.subr.mxu0 0.0
    %1582 = vmatpush1.msra.mxu0 0.0
    %1583 = vmatprep.subr.mxu0 0.0
    %1584 = vmatpush1.msra.mxu0 0.0
    %1585 = vmatprep.mubr.f32.mxu0 0.0
    %1586 = vmatmul.mubr.f32.gmra.mrb[0].mxu0 %v1516
    %v1587 = vpop.f32.mrb[0].mxu0
    %v1588 = vadd.f32 %v1498, %v1587
    %v1589 = vpop.f32.mrb[0].mxu0
    %1590 = vmatprep.mubr.f32.mxu0 0.0
    %1591 = vmatmul.mubr.f32.gmra.mrb[0].mxu0 %v1519
    %v1592 = vpop.f32.mrb[0].mxu0
    %v1593 = vadd.f32 %v1498, %v1592
    %v1594 = vpop.f32.mrb[0].mxu0
    %1595 = vdwg.mxu0
    %v1596 = vmul.f32 %v1588, 0.35355338
    %v1597 = vmul.f32 %v1593, 0.35355338
    %1599 = vrot.lane.b32.xlu0 %v1498, 32
    %v1600 = vpop.permute.xlu0 %1599
    %v1602 = vadd.f32 %v198, %v1600
    %v1603 = vadd.f32 %v203, %v1600
    %1606 = vrot.lane.b32.xlu0 %v1602, 64
    %v1607 = vpop.permute.xlu0 %1606
    %1608 = vrot.lane.b32.xlu0 %v1603, 64
    %v1609 = vpop.permute.xlu0 %1608
    %v1611 = vsel %vm314, %v1596, 0
    %v1614 = vsel %vm314, %v1597, 0
    %v1616 = vsel %vm314, %v1607, 0
    %v1618 = vsel %vm314, %v1609, 0
    %1620 = vmatprep.subr.mxu0 0.0
    %1621 = vmatpush1.xpose.msra.mxu0 %v1616
    %1622 = vmatprep.subr.mxu0 0.0
    %1623 = vmatpush1.xpose.msra.mxu0 %v1618
    %1624 = vmatprep.subr.mxu0 0.0
    %1625 = vmatpush1.xpose.msra.mxu0 0.0
    %1626 = vmatprep.subr.mxu0 0.0
    %1627 = vmatpush1.xpose.msra.mxu0 0.0
    %1628 = vmatprep.subr.mxu0 0.0
    %1629 = vmatpush1.xpose.msra.mxu0 0.0
    %1630 = vmatprep.subr.mxu0 0.0
    %1631 = vmatpush1.xpose.msra.mxu0 0.0
    %1632 = vmatprep.subr.mxu0 0.0
    %1633 = vmatpush1.xpose.msra.mxu0 0.0
    %1634 = vmatprep.subr.mxu0 0.0
    %1635 = vmatpush1.xpose.msra.mxu0 0.0
    %1636 = vmatprep.subr.mxu0 0.0
    %1637 = vmatpush1.xpose.msra.mxu0 0.0
    %1638 = vmatprep.subr.mxu0 0.0
    %1639 = vmatpush1.xpose.msra.mxu0 0.0
    %1640 = vmatprep.subr.mxu0 0.0
    %1641 = vmatpush1.xpose.msra.mxu0 0.0
    %1642 = vmatprep.subr.mxu0 0.0
    %1643 = vmatpush1.xpose.msra.mxu0 0.0
    %1644 = vmatprep.subr.mxu0 0.0
    %1645 = vmatpush1.xpose.msra.mxu0 0.0
    %1646 = vmatprep.subr.mxu0 0.0
    %1647 = vmatpush1.xpose.msra.mxu0 0.0
    %1648 = vmatprep.subr.mxu0 0.0
    %1649 = vmatpush1.xpose.msra.mxu0 0.0
    %1650 = vmatprep.subr.mxu0 0.0
    %1651 = vmatpush1.xpose.msra.mxu0 0.0
    %1652 = vmatprep.subr.mxu0 0.0
    %1653 = vmatpush1.xpose.msra.mxu0 0.0
    %1654 = vmatprep.subr.mxu0 0.0
    %1655 = vmatpush1.xpose.msra.mxu0 0.0
    %1656 = vmatprep.subr.mxu0 0.0
    %1657 = vmatpush1.xpose.msra.mxu0 0.0
    %1658 = vmatprep.subr.mxu0 0.0
    %1659 = vmatpush1.xpose.msra.mxu0 0.0
    %1660 = vmatprep.subr.mxu0 0.0
    %1661 = vmatpush1.xpose.msra.mxu0 0.0
    %1662 = vmatprep.subr.mxu0 0.0
    %1663 = vmatpush1.xpose.msra.mxu0 0.0
    %1664 = vmatprep.subr.mxu0 0.0
    %1665 = vmatpush1.xpose.msra.mxu0 0.0
    %1666 = vmatprep.subr.mxu0 0.0
    %1667 = vmatpush1.xpose.msra.mxu0 0.0
    %1668 = vmatprep.subr.mxu0 0.0
    %1669 = vmatpush1.xpose.msra.mxu0 0.0
    %1670 = vmatprep.subr.mxu0 0.0
    %1671 = vmatpush1.xpose.msra.mxu0 0.0
    %1672 = vmatprep.subr.mxu0 0.0
    %1673 = vmatpush1.xpose.msra.mxu0 0.0
    %1674 = vmatprep.subr.mxu0 0.0
    %1675 = vmatpush1.xpose.msra.mxu0 0.0
    %1676 = vmatprep.subr.mxu0 0.0
    %1677 = vmatpush1.xpose.msra.mxu0 0.0
    %1678 = vmatprep.subr.mxu0 0.0
    %1679 = vmatpush1.xpose.msra.mxu0 0.0
    %1680 = vmatprep.subr.mxu0 0.0
    %1681 = vmatpush1.xpose.msra.mxu0 0.0
    %1682 = vmatprep.subr.mxu0 0.0
    %1683 = vmatpush1.xpose.msra.mxu0 0.0
    %1684 = vmatprep.mubr.f32.mxu0 0.0
    %1685 = vmatmul.mubr.f32.gmra.mrb[0].mxu0 %v1611
    %v1686 = vpop.f32.mrb[0].mxu0
    %v1687 = vadd.f32 %v81, %v1686
    %v1688 = vpop.f32.mrb[0].mxu0
    %1689 = vmatprep.mubr.f32.mxu0 0.0
    %1690 = vmatmul.mubr.f32.gmra.mrb[0].mxu0 %v1614
    %v1691 = vpop.f32.mrb[0].mxu0
    %v1692 = vadd.f32 %v82, %v1691
    %v1693 = vpop.f32.mrb[0].mxu0
    %1694 = vdwg.mxu0
    %v1695 = vsel %vm402, %v1687, -inf
    %1696 = vmax.xlane.f32.xlu0 %v1695
    %v1697 = vpop.xlane.xlu0 %1696
    %v1698 = vsel %vm402, %v1692, -inf
    %1699 = vmax.xlane.f32.xlu0 %v1698
    %v1700 = vpop.xlane.xlu0 %1699
    %v1701 = vsub.f32 %v1687, %v1697
    %v1702 = vsub.f32 %v1692, %v1700
    %v1703 = vmul.f32 %v1701, 1.442695
    %v1704 = vpow.pop %v1703
    %v1705 = vmul.f32 %v1702, 1.442695
    %v1706 = vpow.pop %v1705
    %v1707 = vsel %vm402, %v1704, 0.0
    %1708 = vadd.xlane.f32.xlu0 %v1707
    %v1709 = vpop.xlane.xlu0 %1708
    %v1710 = vsel %vm402, %v1706, 0.0
    %1711 = vadd.xlane.f32.xlu0 %v1710
    %v1712 = vpop.xlane.xlu0 %1711
    %v1713 = vrcp.pop %v1709
    %v1714 = vrcp.pop %v1712
    %v1715 = vmul.f32 %v1704, %v1713
    %v1716 = vmul.f32 %v1706, %v1714
    %1717 = vrot.lane.b32.xlu0 %v1602, 32
    %v1718 = vpop.permute.xlu0 %1717
    %1719 = vrot.lane.b32.xlu0 %v1603, 32
    %v1720 = vpop.permute.xlu0 %1719
    %v1724 = vsel %vm402, %v1715, 0
    %v1727 = vsel %vm402, %v1716, 0
    %1729 = vmatprep.subr.mxu0 0.0
    %1730 = vmatpush1.msra.mxu0 %v1718
    %1731 = vmatprep.subr.mxu0 0.0
    %1732 = vmatpush1.msra.mxu0 %v1720
    %1733 = vmatprep.subr.mxu0 0.0
    %1734 = vmatpush1.msra.mxu0 0.0
    %1735 = vmatprep.subr.mxu0 0.0
    %1736 = vmatpush1.msra.mxu0 0.0
    %1737 = vmatprep.subr.mxu0 0.0
    %1738 = vmatpush1.msra.mxu0 0.0
    %1739 = vmatprep.subr.mxu0 0.0
    %1740 = vmatpush1.msra.mxu0 0.0
    %1741 = vmatprep.subr.mxu0 0.0
    %1742 = vmatpush1.msra.mxu0 0.0
    %1743 = vmatprep.subr.mxu0 0.0
    %1744 = vmatpush1.msra.mxu0 0.0
    %1745 = vmatprep.subr.mxu0 0.0
    %1746 = vmatpush1.msra.mxu0 0.0
    %1747 = vmatprep.subr.mxu0 0.0
    %1748 = vmatpush1.msra.mxu0 0.0
    %1749 = vmatprep.subr.mxu0 0.0
    %1750 = vmatpush1.msra.mxu0 0.0
    %1751 = vmatprep.subr.mxu0 0.0
    %1752 = vmatpush1.msra.mxu0 0.0
    %1753 = vmatprep.subr.mxu0 0.0
    %1754 = vmatpush1.msra.mxu0 0.0
    %1755 = vmatprep.subr.mxu0 0.0
    %1756 = vmatpush1.msra.mxu0 0.0
    %1757 = vmatprep.subr.mxu0 0.0
    %1758 = vmatpush1.msra.mxu0 0.0
    %1759 = vmatprep.subr.mxu0 0.0
    %1760 = vmatpush1.msra.mxu0 0.0
    %1761 = vmatprep.subr.mxu0 0.0
    %1762 = vmatpush1.msra.mxu0 0.0
    %1763 = vmatprep.subr.mxu0 0.0
    %1764 = vmatpush1.msra.mxu0 0.0
    %1765 = vmatprep.subr.mxu0 0.0
    %1766 = vmatpush1.msra.mxu0 0.0
    %1767 = vmatprep.subr.mxu0 0.0
    %1768 = vmatpush1.msra.mxu0 0.0
    %1769 = vmatprep.subr.mxu0 0.0
    %1770 = vmatpush1.msra.mxu0 0.0
    %1771 = vmatprep.subr.mxu0 0.0
    %1772 = vmatpush1.msra.mxu0 0.0
    %1773 = vmatprep.subr.mxu0 0.0
    %1774 = vmatpush1.msra.mxu0 0.0
    %1775 = vmatprep.subr.mxu0 0.0
    %1776 = vmatpush1.msra.mxu0 0.0
    %1777 = vmatprep.subr.mxu0 0.0
    %1778 = vmatpush1.msra.mxu0 0.0
    %1779 = vmatprep.subr.mxu0 0.0
    %1780 = vmatpush1.msra.mxu0 0.0
    %1781 = vmatprep.subr.mxu0 0.0
    %1782 = vmatpush1.msra.mxu0 0.0
    %1783 = vmatprep.subr.mxu0 0.0
    %1784 = vmatpush1.msra.mxu0 0.0
    %1785 = vmatprep.subr.mxu0 0.0
    %1786 = vmatpush1.msra.mxu0 0.0
    %1787 = vmatprep.subr.mxu0 0.0
    %1788 = vmatpush1.msra.mxu0 0.0
    %1789 = vmatprep.subr.mxu0 0.0
    %1790 = vmatpush1.msra.mxu0 0.0
    %1791 = vmatprep.subr.mxu0 0.0
    %1792 = vmatpush1.msra.mxu0 0.0
    %1793 = vmatprep.mubr.f32.mxu0 0.0
    %1794 = vmatmul.mubr.f32.gmra.mrb[0].mxu0 %v1724
    %v1795 = vpop.f32.mrb[0].mxu0
    %v1796 = vadd.f32 0.0, %v1795
    %v1797 = vpop.f32.mrb[0].mxu0
    %1798 = vmatprep.mubr.f32.mxu0 0.0
    %1799 = vmatmul.mubr.f32.gmra.mrb[0].mxu0 %v1727
    %v1800 = vpop.f32.mrb[0].mxu0
    %v1801 = vadd.f32 0.0, %v1800
    %v1802 = vpop.f32.mrb[0].mxu0
    %1803 = vdwg.mxu0
    %1804 = vrot.lane.b32.xlu0 %v1596, 120
    %v1805 = vpop.permute.xlu0 %1804
    %1806 = vrot.lane.b32.xlu0 %v1597, 120
    %v1807 = vpop.permute.xlu0 %1806
    %1808 = vrot.lane.b32.xlu0 %v1602, 56
    %v1809 = vpop.permute.xlu0 %1808
    %1810 = vrot.lane.b32.xlu0 %v1603, 56
    %v1811 = vpop.permute.xlu0 %1810
    %v1812 = vsel %vm314, %v1805, 0
    %v1814 = vsel %vm314, %v1807, 0
    %v1816 = vsel %vm314, %v1809, 0
    %v1818 = vsel %vm314, %v1811, 0
    %1820 = vmatprep.subr.mxu0 0.0
    %1821 = vmatpush1.xpose.msra.mxu0 %v1816
    %1822 = vmatprep.subr.mxu0 0.0
    %1823 = vmatpush1.xpose.msra.mxu0 %v1818
    %1824 = vmatprep.subr.mxu0 0.0
    %1825 = vmatpush1.xpose.msra.mxu0 0.0
    %1826 = vmatprep.subr.mxu0 0.0
    %1827 = vmatpush1.xpose.msra.mxu0 0.0
    %1828 = vmatprep.subr.mxu0 0.0
    %1829 = vmatpush1.xpose.msra.mxu0 0.0
    %1830 = vmatprep.subr.mxu0 0.0
    %1831 = vmatpush1.xpose.msra.mxu0 0.0
    %1832 = vmatprep.subr.mxu0 0.0
    %1833 = vmatpush1.xpose.msra.mxu0 0.0
    %1834 = vmatprep.subr.mxu0 0.0
    %1835 = vmatpush1.xpose.msra.mxu0 0.0
    %1836 = vmatprep.subr.mxu0 0.0
    %1837 = vmatpush1.xpose.msra.mxu0 0.0
    %1838 = vmatprep.subr.mxu0 0.0
    %1839 = vmatpush1.xpose.msra.mxu0 0.0
    %1840 = vmatprep.subr.mxu0 0.0
    %1841 = vmatpush1.xpose.msra.mxu0 0.0
    %1842 = vmatprep.subr.mxu0 0.0
    %1843 = vmatpush1.xpose.msra.mxu0 0.0
    %1844 = vmatprep.subr.mxu0 0.0
    %1845 = vmatpush1.xpose.msra.mxu0 0.0
    %1846 = vmatprep.subr.mxu0 0.0
    %1847 = vmatpush1.xpose.msra.mxu0 0.0
    %1848 = vmatprep.subr.mxu0 0.0
    %1849 = vmatpush1.xpose.msra.mxu0 0.0
    %1850 = vmatprep.subr.mxu0 0.0
    %1851 = vmatpush1.xpose.msra.mxu0 0.0
    %1852 = vmatprep.subr.mxu0 0.0
    %1853 = vmatpush1.xpose.msra.mxu0 0.0
    %1854 = vmatprep.subr.mxu0 0.0
    %1855 = vmatpush1.xpose.msra.mxu0 0.0
    %1856 = vmatprep.subr.mxu0 0.0
    %1857 = vmatpush1.xpose.msra.mxu0 0.0
    %1858 = vmatprep.subr.mxu0 0.0
    %1859 = vmatpush1.xpose.msra.mxu0 0.0
    %1860 = vmatprep.subr.mxu0 0.0
    %1861 = vmatpush1.xpose.msra.mxu0 0.0
    %1862 = vmatprep.subr.mxu0 0.0
    %1863 = vmatpush1.xpose.msra.mxu0 0.0
    %1864 = vmatprep.subr.mxu0 0.0
    %1865 = vmatpush1.xpose.msra.mxu0 0.0
    %1866 = vmatprep.subr.mxu0 0.0
    %1867 = vmatpush1.xpose.msra.mxu0 0.0
    %1868 = vmatprep.subr.mxu0 0.0
    %1869 = vmatpush1.xpose.msra.mxu0 0.0
    %1870 = vmatprep.subr.mxu0 0.0
    %1871 = vmatpush1.xpose.msra.mxu0 0.0
    %1872 = vmatprep.subr.mxu0 0.0
    %1873 = vmatpush1.xpose.msra.mxu0 0.0
    %1874 = vmatprep.subr.mxu0 0.0
    %1875 = vmatpush1.xpose.msra.mxu0 0.0
    %1876 = vmatprep.subr.mxu0 0.0
    %1877 = vmatpush1.xpose.msra.mxu0 0.0
    %1878 = vmatprep.subr.mxu0 0.0
    %1879 = vmatpush1.xpose.msra.mxu0 0.0
    %1880 = vmatprep.subr.mxu0 0.0
    %1881 = vmatpush1.xpose.msra.mxu0 0.0
    %1882 = vmatprep.subr.mxu0 0.0
    %1883 = vmatpush1.xpose.msra.mxu0 0.0
    %1884 = vmatprep.mubr.f32.mxu0 0.0
    %1885 = vmatmul.mubr.f32.gmra.mrb[0].mxu0 %v1812
    %v1886 = vpop.f32.mrb[0].mxu0
    %v1887 = vadd.f32 %v81, %v1886
    %v1888 = vpop.f32.mrb[0].mxu0
    %1889 = vmatprep.mubr.f32.mxu0 0.0
    %1890 = vmatmul.mubr.f32.gmra.mrb[0].mxu0 %v1814
    %v1891 = vpop.f32.mrb[0].mxu0
    %v1892 = vadd.f32 %v82, %v1891
    %v1893 = vpop.f32.mrb[0].mxu0
    %1894 = vdwg.mxu0
    %v1895 = vsel %vm402, %v1887, -inf
    %1896 = vmax.xlane.f32.xlu0 %v1895
    %v1897 = vpop.xlane.xlu0 %1896
    %v1898 = vsel %vm402, %v1892, -inf
    %1899 = vmax.xlane.f32.xlu0 %v1898
    %v1900 = vpop.xlane.xlu0 %1899
    %v1901 = vsub.f32 %v1887, %v1897
    %v1902 = vsub.f32 %v1892, %v1900
    %v1903 = vmul.f32 %v1901, 1.442695
    %v1904 = vpow.pop %v1903
    %v1905 = vmul.f32 %v1902, 1.442695
    %v1906 = vpow.pop %v1905
    %v1907 = vsel %vm402, %v1904, 0.0
    %1908 = vadd.xlane.f32.xlu0 %v1907
    %v1909 = vpop.xlane.xlu0 %1908
    %v1910 = vsel %vm402, %v1906, 0.0
    %1911 = vadd.xlane.f32.xlu0 %v1910
    %v1912 = vpop.xlane.xlu0 %1911
    %v1913 = vrcp.pop %v1909
    %v1914 = vrcp.pop %v1912
    %v1915 = vmul.f32 %v1904, %v1913
    %v1916 = vmul.f32 %v1906, %v1914
    %1917 = vrot.lane.b32.xlu0 %v1602, 24
    %v1918 = vpop.permute.xlu0 %1917
    %1919 = vrot.lane.b32.xlu0 %v1603, 24
    %v1920 = vpop.permute.xlu0 %1919
    %v1924 = vsel %vm402, %v1915, 0
    %v1927 = vsel %vm402, %v1916, 0
    %1929 = vmatprep.subr.mxu0 0.0
    %1930 = vmatpush1.msra.mxu0 %v1918
    %1931 = vmatprep.subr.mxu0 0.0
    %1932 = vmatpush1.msra.mxu0 %v1920
    %1933 = vmatprep.subr.mxu0 0.0
    %1934 = vmatpush1.msra.mxu0 0.0
    %1935 = vmatprep.subr.mxu0 0.0
    %1936 = vmatpush1.msra.mxu0 0.0
    %1937 = vmatprep.subr.mxu0 0.0
    %1938 = vmatpush1.msra.mxu0 0.0
    %1939 = vmatprep.subr.mxu0 0.0
    %1940 = vmatpush1.msra.mxu0 0.0
    %1941 = vmatprep.subr.mxu0 0.0
    %1942 = vmatpush1.msra.mxu0 0.0
    %1943 = vmatprep.subr.mxu0 0.0
    %1944 = vmatpush1.msra.mxu0 0.0
    %1945 = vmatprep.subr.mxu0 0.0
    %1946 = vmatpush1.msra.mxu0 0.0
    %1947 = vmatprep.subr.mxu0 0.0
    %1948 = vmatpush1.msra.mxu0 0.0
    %1949 = vmatprep.subr.mxu0 0.0
    %1950 = vmatpush1.msra.mxu0 0.0
    %1951 = vmatprep.subr.mxu0 0.0
    %1952 = vmatpush1.msra.mxu0 0.0
    %1953 = vmatprep.subr.mxu0 0.0
    %1954 = vmatpush1.msra.mxu0 0.0
    %1955 = vmatprep.subr.mxu0 0.0
    %1956 = vmatpush1.msra.mxu0 0.0
    %1957 = vmatprep.subr.mxu0 0.0
    %1958 = vmatpush1.msra.mxu0 0.0
    %1959 = vmatprep.subr.mxu0 0.0
    %1960 = vmatpush1.msra.mxu0 0.0
    %1961 = vmatprep.subr.mxu0 0.0
    %1962 = vmatpush1.msra.mxu0 0.0
    %1963 = vmatprep.subr.mxu0 0.0
    %1964 = vmatpush1.msra.mxu0 0.0
    %1965 = vmatprep.subr.mxu0 0.0
    %1966 = vmatpush1.msra.mxu0 0.0
    %1967 = vmatprep.subr.mxu0 0.0
    %1968 = vmatpush1.msra.mxu0 0.0
    %1969 = vmatprep.subr.mxu0 0.0
    %1970 = vmatpush1.msra.mxu0 0.0
    %1971 = vmatprep.subr.mxu0 0.0
    %1972 = vmatpush1.msra.mxu0 0.0
    %1973 = vmatprep.subr.mxu0 0.0
    %1974 = vmatpush1.msra.mxu0 0.0
    %1975 = vmatprep.subr.mxu0 0.0
    %1976 = vmatpush1.msra.mxu0 0.0
    %1977 = vmatprep.subr.mxu0 0.0
    %1978 = vmatpush1.msra.mxu0 0.0
    %1979 = vmatprep.subr.mxu0 0.0
    %1980 = vmatpush1.msra.mxu0 0.0
    %1981 = vmatprep.subr.mxu0 0.0
    %1982 = vmatpush1.msra.mxu0 0.0
    %1983 = vmatprep.subr.mxu0 0.0
    %1984 = vmatpush1.msra.mxu0 0.0
    %1985 = vmatprep.subr.mxu0 0.0
    %1986 = vmatpush1.msra.mxu0 0.0
    %1987 = vmatprep.subr.mxu0 0.0
    %1988 = vmatpush1.msra.mxu0 0.0
    %1989 = vmatprep.subr.mxu0 0.0
    %1990 = vmatpush1.msra.mxu0 0.0
    %1991 = vmatprep.subr.mxu0 0.0
    %1992 = vmatpush1.msra.mxu0 0.0
    %1993 = vmatprep.mubr.f32.mxu0 0.0
    %1994 = vmatmul.mubr.f32.gmra.mrb[0].mxu0 %v1924
    %v1995 = vpop.f32.mrb[0].mxu0
    %v1996 = vadd.f32 0.0, %v1995
    %v1997 = vpop.f32.mrb[0].mxu0
    %1998 = vmatprep.mubr.f32.mxu0 0.0
    %1999 = vmatmul.mubr.f32.gmra.mrb[0].mxu0 %v1927
    %v2000 = vpop.f32.mrb[0].mxu0
    %v2001 = vadd.f32 0.0, %v2000
    %v2002 = vpop.f32.mrb[0].mxu0
    %2003 = vdwg.mxu0
    %2004 = vrot.lane.b32.xlu0 %v1596, 112
    %v2005 = vpop.permute.xlu0 %2004
    %2006 = vrot.lane.b32.xlu0 %v1597, 112
    %v2007 = vpop.permute.xlu0 %2006
    %2008 = vrot.lane.b32.xlu0 %v1602, 48
    %v2009 = vpop.permute.xlu0 %2008
    %2010 = vrot.lane.b32.xlu0 %v1603, 48
    %v2011 = vpop.permute.xlu0 %2010
    %v2012 = vsel %vm314, %v2005, 0
    %v2014 = vsel %vm314, %v2007, 0
    %v2016 = vsel %vm314, %v2009, 0
    %v2018 = vsel %vm314, %v2011, 0
    %2020 = vmatprep.subr.mxu0 0.0
    %2021 = vmatpush1.xpose.msra.mxu0 %v2016
    %2022 = vmatprep.subr.mxu0 0.0
    %2023 = vmatpush1.xpose.msra.mxu0 %v2018
    %2024 = vmatprep.subr.mxu0 0.0
    %2025 = vmatpush1.xpose.msra.mxu0 0.0
    %2026 = vmatprep.subr.mxu0 0.0
    %2027 = vmatpush1.xpose.msra.mxu0 0.0
    %2028 = vmatprep.subr.mxu0 0.0
    %2029 = vmatpush1.xpose.msra.mxu0 0.0
    %2030 = vmatprep.subr.mxu0 0.0
    %2031 = vmatpush1.xpose.msra.mxu0 0.0
    %2032 = vmatprep.subr.mxu0 0.0
    %2033 = vmatpush1.xpose.msra.mxu0 0.0
    %2034 = vmatprep.subr.mxu0 0.0
    %2035 = vmatpush1.xpose.msra.mxu0 0.0
    %2036 = vmatprep.subr.mxu0 0.0
    %2037 = vmatpush1.xpose.msra.mxu0 0.0
    %2038 = vmatprep.subr.mxu0 0.0
    %2039 = vmatpush1.xpose.msra.mxu0 0.0
    %2040 = vmatprep.subr.mxu0 0.0
    %2041 = vmatpush1.xpose.msra.mxu0 0.0
    %2042 = vmatprep.subr.mxu0 0.0
    %2043 = vmatpush1.xpose.msra.mxu0 0.0
    %2044 = vmatprep.subr.mxu0 0.0
    %2045 = vmatpush1.xpose.msra.mxu0 0.0
    %2046 = vmatprep.subr.mxu0 0.0
    %2047 = vmatpush1.xpose.msra.mxu0 0.0
    %2048 = vmatprep.subr.mxu0 0.0
    %2049 = vmatpush1.xpose.msra.mxu0 0.0
    %2050 = vmatprep.subr.mxu0 0.0
    %2051 = vmatpush1.xpose.msra.mxu0 0.0
    %2052 = vmatprep.subr.mxu0 0.0
    %2053 = vmatpush1.xpose.msra.mxu0 0.0
    %2054 = vmatprep.subr.mxu0 0.0
    %2055 = vmatpush1.xpose.msra.mxu0 0.0
    %2056 = vmatprep.subr.mxu0 0.0
    %2057 = vmatpush1.xpose.msra.mxu0 0.0
    %2058 = vmatprep.subr.mxu0 0.0
    %2059 = vmatpush1.xpose.msra.mxu0 0.0
    %2060 = vmatprep.subr.mxu0 0.0
    %2061 = vmatpush1.xpose.msra.mxu0 0.0
    %2062 = vmatprep.subr.mxu0 0.0
    %2063 = vmatpush1.xpose.msra.mxu0 0.0
    %2064 = vmatprep.subr.mxu0 0.0
    %2065 = vmatpush1.xpose.msra.mxu0 0.0
    %2066 = vmatprep.subr.mxu0 0.0
    %2067 = vmatpush1.xpose.msra.mxu0 0.0
    %2068 = vmatprep.subr.mxu0 0.0
    %2069 = vmatpush1.xpose.msra.mxu0 0.0
    %2070 = vmatprep.subr.mxu0 0.0
    %2071 = vmatpush1.xpose.msra.mxu0 0.0
    %2072 = vmatprep.subr.mxu0 0.0
    %2073 = vmatpush1.xpose.msra.mxu0 0.0
    %2074 = vmatprep.subr.mxu0 0.0
    %2075 = vmatpush1.xpose.msra.mxu0 0.0
    %2076 = vmatprep.subr.mxu0 0.0
    %2077 = vmatpush1.xpose.msra.mxu0 0.0
    %2078 = vmatprep.subr.mxu0 0.0
    %2079 = vmatpush1.xpose.msra.mxu0 0.0
    %2080 = vmatprep.subr.mxu0 0.0
    %2081 = vmatpush1.xpose.msra.mxu0 0.0
    %2082 = vmatprep.subr.mxu0 0.0
    %2083 = vmatpush1.xpose.msra.mxu0 0.0
    %2084 = vmatprep.mubr.f32.mxu0 0.0
    %2085 = vmatmul.mubr.f32.gmra.mrb[0].mxu0 %v2012
    %v2086 = vpop.f32.mrb[0].mxu0
    %v2087 = vadd.f32 %v81, %v2086
    %v2088 = vpop.f32.mrb[0].mxu0
    %2089 = vmatprep.mubr.f32.mxu0 0.0
    %2090 = vmatmul.mubr.f32.gmra.mrb[0].mxu0 %v2014
    %v2091 = vpop.f32.mrb[0].mxu0
    %v2092 = vadd.f32 %v82, %v2091
    %v2093 = vpop.f32.mrb[0].mxu0
    %2094 = vdwg.mxu0
    %v2095 = vsel %vm402, %v2087, -inf
    %2096 = vmax.xlane.f32.xlu0 %v2095
    %v2097 = vpop.xlane.xlu0 %2096
    %v2098 = vsel %vm402, %v2092, -inf
    %2099 = vmax.xlane.f32.xlu0 %v2098
    %v2100 = vpop.xlane.xlu0 %2099
    %v2101 = vsub.f32 %v2087, %v2097
    %v2102 = vsub.f32 %v2092, %v2100
    %v2103 = vmul.f32 %v2101, 1.442695
    %v2104 = vpow.pop %v2103
    %v2105 = vmul.f32 %v2102, 1.442695
    %v2106 = vpow.pop %v2105
    %v2107 = vsel %vm402, %v2104, 0.0
    %2108 = vadd.xlane.f32.xlu0 %v2107
    %v2109 = vpop.xlane.xlu0 %2108
    %v2110 = vsel %vm402, %v2106, 0.0
    %2111 = vadd.xlane.f32.xlu0 %v2110
    %v2112 = vpop.xlane.xlu0 %2111
    %v2113 = vrcp.pop %v2109
    %v2114 = vrcp.pop %v2112
    %v2115 = vmul.f32 %v2104, %v2113
    %v2116 = vmul.f32 %v2106, %v2114
    %2117 = vrot.lane.b32.xlu0 %v1602, 16
    %v2118 = vpop.permute.xlu0 %2117
    %2119 = vrot.lane.b32.xlu0 %v1603, 16
    %v2120 = vpop.permute.xlu0 %2119
    %v2124 = vsel %vm402, %v2115, 0
    %v2127 = vsel %vm402, %v2116, 0
    %2129 = vmatprep.subr.mxu0 0.0
    %2130 = vmatpush1.msra.mxu0 %v2118
    %2131 = vmatprep.subr.mxu0 0.0
    %2132 = vmatpush1.msra.mxu0 %v2120
    %2133 = vmatprep.subr.mxu0 0.0
    %2134 = vmatpush1.msra.mxu0 0.0
    %2135 = vmatprep.subr.mxu0 0.0
    %2136 = vmatpush1.msra.mxu0 0.0
    %2137 = vmatprep.subr.mxu0 0.0
    %2138 = vmatpush1.msra.mxu0 0.0
    %2139 = vmatprep.subr.mxu0 0.0
    %2140 = vmatpush1.msra.mxu0 0.0
    %2141 = vmatprep.subr.mxu0 0.0
    %2142 = vmatpush1.msra.mxu0 0.0
    %2143 = vmatprep.subr.mxu0 0.0
    %2144 = vmatpush1.msra.mxu0 0.0
    %2145 = vmatprep.subr.mxu0 0.0
    %2146 = vmatpush1.msra.mxu0 0.0
    %2147 = vmatprep.subr.mxu0 0.0
    %2148 = vmatpush1.msra.mxu0 0.0
    %2149 = vmatprep.subr.mxu0 0.0
    %2150 = vmatpush1.msra.mxu0 0.0
    %2151 = vmatprep.subr.mxu0 0.0
    %2152 = vmatpush1.msra.mxu0 0.0
    %2153 = vmatprep.subr.mxu0 0.0
    %2154 = vmatpush1.msra.mxu0 0.0
    %2155 = vmatprep.subr.mxu0 0.0
    %2156 = vmatpush1.msra.mxu0 0.0
    %2157 = vmatprep.subr.mxu0 0.0
    %2158 = vmatpush1.msra.mxu0 0.0
    %2159 = vmatprep.subr.mxu0 0.0
    %2160 = vmatpush1.msra.mxu0 0.0
    %2161 = vmatprep.subr.mxu0 0.0
    %2162 = vmatpush1.msra.mxu0 0.0
    %2163 = vmatprep.subr.mxu0 0.0
    %2164 = vmatpush1.msra.mxu0 0.0
    %2165 = vmatprep.subr.mxu0 0.0
    %2166 = vmatpush1.msra.mxu0 0.0
    %2167 = vmatprep.subr.mxu0 0.0
    %2168 = vmatpush1.msra.mxu0 0.0
    %2169 = vmatprep.subr.mxu0 0.0
    %2170 = vmatpush1.msra.mxu0 0.0
    %2171 = vmatprep.subr.mxu0 0.0
    %2172 = vmatpush1.msra.mxu0 0.0
    %2173 = vmatprep.subr.mxu0 0.0
    %2174 = vmatpush1.msra.mxu0 0.0
    %2175 = vmatprep.subr.mxu0 0.0
    %2176 = vmatpush1.msra.mxu0 0.0
    %2177 = vmatprep.subr.mxu0 0.0
    %2178 = vmatpush1.msra.mxu0 0.0
    %2179 = vmatprep.subr.mxu0 0.0
    %2180 = vmatpush1.msra.mxu0 0.0
    %2181 = vmatprep.subr.mxu0 0.0
    %2182 = vmatpush1.msra.mxu0 0.0
    %2183 = vmatprep.subr.mxu0 0.0
    %2184 = vmatpush1.msra.mxu0 0.0
    %2185 = vmatprep.subr.mxu0 0.0
    %2186 = vmatpush1.msra.mxu0 0.0
    %2187 = vmatprep.subr.mxu0 0.0
    %2188 = vmatpush1.msra.mxu0 0.0
    %2189 = vmatprep.subr.mxu0 0.0
    %2190 = vmatpush1.msra.mxu0 0.0
    %2191 = vmatprep.subr.mxu0 0.0
    %2192 = vmatpush1.msra.mxu0 0.0
    %2193 = vmatprep.mubr.f32.mxu0 0.0
    %2194 = vmatmul.mubr.f32.gmra.mrb[0].mxu0 %v2124
    %v2195 = vpop.f32.mrb[0].mxu0
    %v2196 = vadd.f32 0.0, %v2195
    %v2197 = vpop.f32.mrb[0].mxu0
    %2198 = vmatprep.mubr.f32.mxu0 0.0
    %2199 = vmatmul.mubr.f32.gmra.mrb[0].mxu0 %v2127
    %v2200 = vpop.f32.mrb[0].mxu0
    %v2201 = vadd.f32 0.0, %v2200
    %v2202 = vpop.f32.mrb[0].mxu0
    %2203 = vdwg.mxu0
    %2204 = vrot.lane.b32.xlu0 %v1596, 104
    %v2205 = vpop.permute.xlu0 %2204
    %2206 = vrot.lane.b32.xlu0 %v1597, 104
    %v2207 = vpop.permute.xlu0 %2206
    %2208 = vrot.lane.b32.xlu0 %v1602, 40
    %v2209 = vpop.permute.xlu0 %2208
    %2210 = vrot.lane.b32.xlu0 %v1603, 40
    %v2211 = vpop.permute.xlu0 %2210
    %v2212 = vsel %vm314, %v2205, 0
    %v2214 = vsel %vm314, %v2207, 0
    %v2216 = vsel %vm314, %v2209, 0
    %v2218 = vsel %vm314, %v2211, 0
    %2220 = vmatprep.subr.mxu0 0.0
    %2221 = vmatpush1.xpose.msra.mxu0 %v2216
    %2222 = vmatprep.subr.mxu0 0.0
    %2223 = vmatpush1.xpose.msra.mxu0 %v2218
    %2224 = vmatprep.subr.mxu0 0.0
    %2225 = vmatpush1.xpose.msra.mxu0 0.0
    %2226 = vmatprep.subr.mxu0 0.0
    %2227 = vmatpush1.xpose.msra.mxu0 0.0
    %2228 = vmatprep.subr.mxu0 0.0
    %2229 = vmatpush1.xpose.msra.mxu0 0.0
    %2230 = vmatprep.subr.mxu0 0.0
    %2231 = vmatpush1.xpose.msra.mxu0 0.0
    %2232 = vmatprep.subr.mxu0 0.0
    %2233 = vmatpush1.xpose.msra.mxu0 0.0
    %2234 = vmatprep.subr.mxu0 0.0
    %2235 = vmatpush1.xpose.msra.mxu0 0.0
    %2236 = vmatprep.subr.mxu0 0.0
    %2237 = vmatpush1.xpose.msra.mxu0 0.0
    %2238 = vmatprep.subr.mxu0 0.0
    %2239 = vmatpush1.xpose.msra.mxu0 0.0
    %2240 = vmatprep.subr.mxu0 0.0
    %2241 = vmatpush1.xpose.msra.mxu0 0.0
    %2242 = vmatprep.subr.mxu0 0.0
    %2243 = vmatpush1.xpose.msra.mxu0 0.0
    %2244 = vmatprep.subr.mxu0 0.0
    %2245 = vmatpush1.xpose.msra.mxu0 0.0
    %2246 = vmatprep.subr.mxu0 0.0
    %2247 = vmatpush1.xpose.msra.mxu0 0.0
    %2248 = vmatprep.subr.mxu0 0.0
    %2249 = vmatpush1.xpose.msra.mxu0 0.0
    %2250 = vmatprep.subr.mxu0 0.0
    %2251 = vmatpush1.xpose.msra.mxu0 0.0
    %2252 = vmatprep.subr.mxu0 0.0
    %2253 = vmatpush1.xpose.msra.mxu0 0.0
    %2254 = vmatprep.subr.mxu0 0.0
    %2255 = vmatpush1.xpose.msra.mxu0 0.0
    %2256 = vmatprep.subr.mxu0 0.0
    %2257 = vmatpush1.xpose.msra.mxu0 0.0
    %2258 = vmatprep.subr.mxu0 0.0
    %2259 = vmatpush1.xpose.msra.mxu0 0.0
    %2260 = vmatprep.subr.mxu0 0.0
    %2261 = vmatpush1.xpose.msra.mxu0 0.0
    %2262 = vmatprep.subr.mxu0 0.0
    %2263 = vmatpush1.xpose.msra.mxu0 0.0
    %2264 = vmatprep.subr.mxu0 0.0
    %2265 = vmatpush1.xpose.msra.mxu0 0.0
    %2266 = vmatprep.subr.mxu0 0.0
    %2267 = vmatpush1.xpose.msra.mxu0 0.0
    %2268 = vmatprep.subr.mxu0 0.0
    %2269 = vmatpush1.xpose.msra.mxu0 0.0
    %2270 = vmatprep.subr.mxu0 0.0
    %2271 = vmatpush1.xpose.msra.mxu0 0.0
    %2272 = vmatprep.subr.mxu0 0.0
    %2273 = vmatpush1.xpose.msra.mxu0 0.0
    %2274 = vmatprep.subr.mxu0 0.0
    %2275 = vmatpush1.xpose.msra.mxu0 0.0
    %2276 = vmatprep.subr.mxu0 0.0
    %2277 = vmatpush1.xpose.msra.mxu0 0.0
    %2278 = vmatprep.subr.mxu0 0.0
    %2279 = vmatpush1.xpose.msra.mxu0 0.0
    %2280 = vmatprep.subr.mxu0 0.0
    %2281 = vmatpush1.xpose.msra.mxu0 0.0
    %2282 = vmatprep.subr.mxu0 0.0
    %2283 = vmatpush1.xpose.msra.mxu0 0.0
    %2284 = vmatprep.mubr.f32.mxu0 0.0
    %2285 = vmatmul.mubr.f32.gmra.mrb[0].mxu0 %v2212
    %v2286 = vpop.f32.mrb[0].mxu0
    %v2287 = vadd.f32 %v81, %v2286
    %v2288 = vpop.f32.mrb[0].mxu0
    %2289 = vmatprep.mubr.f32.mxu0 0.0
    %2290 = vmatmul.mubr.f32.gmra.mrb[0].mxu0 %v2214
    %v2291 = vpop.f32.mrb[0].mxu0
    %v2292 = vadd.f32 %v82, %v2291
    %v2293 = vpop.f32.mrb[0].mxu0
    %2294 = vdwg.mxu0
    %v2295 = vsel %vm402, %v2287, -inf
    %2296 = vmax.xlane.f32.xlu0 %v2295
    %v2297 = vpop.xlane.xlu0 %2296
    %v2298 = vsel %vm402, %v2292, -inf
    %2299 = vmax.xlane.f32.xlu0 %v2298
    %v2300 = vpop.xlane.xlu0 %2299
    %v2301 = vsub.f32 %v2287, %v2297
    %v2302 = vsub.f32 %v2292, %v2300
    %v2303 = vmul.f32 %v2301, 1.442695
    %v2304 = vpow.pop %v2303
    %v2305 = vmul.f32 %v2302, 1.442695
    %v2306 = vpow.pop %v2305
    %v2307 = vsel %vm402, %v2304, 0.0
    %2308 = vadd.xlane.f32.xlu0 %v2307
    %v2309 = vpop.xlane.xlu0 %2308
    %v2310 = vsel %vm402, %v2306, 0.0
    %2311 = vadd.xlane.f32.xlu0 %v2310
    %v2312 = vpop.xlane.xlu0 %2311
    %v2313 = vrcp.pop %v2309
    %v2314 = vrcp.pop %v2312
    %v2315 = vmul.f32 %v2304, %v2313
    %v2316 = vmul.f32 %v2306, %v2314
    %2317 = vrot.lane.b32.xlu0 %v1602, 8
    %v2318 = vpop.permute.xlu0 %2317
    %2319 = vrot.lane.b32.xlu0 %v1603, 8
    %v2320 = vpop.permute.xlu0 %2319
    %v2324 = vsel %vm402, %v2315, 0
    %v2327 = vsel %vm402, %v2316, 0
    %2329 = vmatprep.subr.mxu0 0.0
    %2330 = vmatpush1.msra.mxu0 %v2318
    %2331 = vmatprep.subr.mxu0 0.0
    %2332 = vmatpush1.msra.mxu0 %v2320
    %2333 = vmatprep.subr.mxu0 0.0
    %2334 = vmatpush1.msra.mxu0 0.0
    %2335 = vmatprep.subr.mxu0 0.0
    %2336 = vmatpush1.msra.mxu0 0.0
    %2337 = vmatprep.subr.mxu0 0.0
    %2338 = vmatpush1.msra.mxu0 0.0
    %2339 = vmatprep.subr.mxu0 0.0
    %2340 = vmatpush1.msra.mxu0 0.0
    %2341 = vmatprep.subr.mxu0 0.0
    %2342 = vmatpush1.msra.mxu0 0.0
    %2343 = vmatprep.subr.mxu0 0.0
    %2344 = vmatpush1.msra.mxu0 0.0
    %2345 = vmatprep.subr.mxu0 0.0
    %2346 = vmatpush1.msra.mxu0 0.0
    %2347 = vmatprep.subr.mxu0 0.0
    %2348 = vmatpush1.msra.mxu0 0.0
    %2349 = vmatprep.subr.mxu0 0.0
    %2350 = vmatpush1.msra.mxu0 0.0
    %2351 = vmatprep.subr.mxu0 0.0
    %2352 = vmatpush1.msra.mxu0 0.0
    %2353 = vmatprep.subr.mxu0 0.0
    %2354 = vmatpush1.msra.mxu0 0.0
    %2355 = vmatprep.subr.mxu0 0.0
    %2356 = vmatpush1.msra.mxu0 0.0
    %2357 = vmatprep.subr.mxu0 0.0
    %2358 = vmatpush1.msra.mxu0 0.0
    %2359 = vmatprep.subr.mxu0 0.0
    %2360 = vmatpush1.msra.mxu0 0.0
    %2361 = vmatprep.subr.mxu0 0.0
    %2362 = vmatpush1.msra.mxu0 0.0
    %2363 = vmatprep.subr.mxu0 0.0
    %2364 = vmatpush1.msra.mxu0 0.0
    %2365 = vmatprep.subr.mxu0 0.0
    %2366 = vmatpush1.msra.mxu0 0.0
    %2367 = vmatprep.subr.mxu0 0.0
    %2368 = vmatpush1.msra.mxu0 0.0
    %2369 = vmatprep.subr.mxu0 0.0
    %2370 = vmatpush1.msra.mxu0 0.0
    %2371 = vmatprep.subr.mxu0 0.0
    %2372 = vmatpush1.msra.mxu0 0.0
    %2373 = vmatprep.subr.mxu0 0.0
    %2374 = vmatpush1.msra.mxu0 0.0
    %2375 = vmatprep.subr.mxu0 0.0
    %2376 = vmatpush1.msra.mxu0 0.0
    %2377 = vmatprep.subr.mxu0 0.0
    %2378 = vmatpush1.msra.mxu0 0.0
    %2379 = vmatprep.subr.mxu0 0.0
    %2380 = vmatpush1.msra.mxu0 0.0
    %2381 = vmatprep.subr.mxu0 0.0
    %2382 = vmatpush1.msra.mxu0 0.0
    %2383 = vmatprep.subr.mxu0 0.0
    %2384 = vmatpush1.msra.mxu0 0.0
    %2385 = vmatprep.subr.mxu0 0.0
    %2386 = vmatpush1.msra.mxu0 0.0
    %2387 = vmatprep.subr.mxu0 0.0
    %2388 = vmatpush1.msra.mxu0 0.0
    %2389 = vmatprep.subr.mxu0 0.0
    %2390 = vmatpush1.msra.mxu0 0.0
    %2391 = vmatprep.subr.mxu0 0.0
    %2392 = vmatpush1.msra.mxu0 0.0
    %2393 = vmatprep.mubr.f32.mxu0 0.0
    %2394 = vmatmul.mubr.f32.gmra.mrb[0].mxu0 %v2324
    %v2395 = vpop.f32.mrb[0].mxu0
    %v2396 = vadd.f32 0.0, %v2395
    %v2397 = vpop.f32.mrb[0].mxu0
    %2398 = vmatprep.mubr.f32.mxu0 0.0
    %2399 = vmatmul.mubr.f32.gmra.mrb[0].mxu0 %v2327
    %v2400 = vpop.f32.mrb[0].mxu0
    %v2401 = vadd.f32 0.0, %v2400
    %v2402 = vpop.f32.mrb[0].mxu0
    %2403 = vdwg.mxu0
    %2406 = vrot.lane.b32.xlu0 %v1996, 8
    %v2407 = vpop.permute.xlu0 %2406
    %2408 = vrot.lane.b32.xlu0 %v2001, 8
    %v2409 = vpop.permute.xlu0 %2408
    %2414 = vrot.lane.b32.xlu0 %v2196, 16
    %v2415 = vpop.permute.xlu0 %2414
    %2416 = vrot.lane.b32.xlu0 %v2201, 16
    %v2417 = vpop.permute.xlu0 %2416
    %2422 = vrot.lane.b32.xlu0 %v2396, 24
    %v2423 = vpop.permute.xlu0 %2422
    %2424 = vrot.lane.b32.xlu0 %v2401, 24
    %v2425 = vpop.permute.xlu0 %2424
    %v2428 = vsel %vm314, %v1796, %v2407
    %v2429 = vsel %vm314, %v1801, %v2409
    %v2430 = vsel %vm402, %v2428, %v2415
    %v2431 = vsel %vm402, %v2429, %v2417
    %v2432 = vsel %vm1140, %v2430, %v2423
    %v2433 = vsel %vm1140, %v2431, %v2425
    %v2434 = vsel %vm124, %v2432, 0.0
    %2435 = vadd.xlane.f32.xlu0 %v2434
    %v2436 = vpop.xlane.xlu0 %2435
    %v2437 = vsel %vm124, %v2433, 0.0
    %2438 = vadd.xlane.f32.xlu0 %v2437
    %v2439 = vpop.xlane.xlu0 %2438
    %v2440 = vmul.f32 %v2436, %v1149
    %v2441 = vmul.f32 %v2439, %v1149
    %v2442 = vsub.f32 %v2432, %v2440
    %v2443 = vsub.f32 %v2433, %v2441
    %v2444 = vmul.f32 %v2442, %v2442
    %v2445 = vmul.f32 %v2443, %v2443
    %v2446 = vsel %vm124, %v2444, 0.0
    %2447 = vadd.xlane.f32.xlu0 %v2446
    %v2448 = vpop.xlane.xlu0 %2447
    %v2449 = vsel %vm124, %v2445, 0.0
    %2450 = vadd.xlane.f32.xlu0 %v2449
    %v2451 = vpop.xlane.xlu0 %2450
    %v2452 = vmul.f32 %v2448, %v1162
    %v2453 = vmul.f32 %v2451, %v1162
    %v2454 = vrsqrt.pop %v2452
    %v2455 = vmul.f32 %v2452, %v2454
    %vm2456 = vcmp.eq.f32.partialorder %v2452, inf
    %v2457 = vsel %vm2456, %v2452, %v2455
    %vm2458 = vcmp.eq.f32.partialorder %v2452, 0.0
    %v2459 = vand.u32 %v2452, 2147483648
    %v2460 = vsel %vm2458, %v2459, %v2457
    %v2461 = vrsqrt.pop %v2453
    %v2462 = vmul.f32 %v2453, %v2461
    %vm2463 = vcmp.eq.f32.partialorder %v2453, inf
    %v2464 = vsel %vm2463, %v2453, %v2462
    %vm2465 = vcmp.eq.f32.partialorder %v2453, 0.0
    %v2466 = vand.u32 %v2453, 2147483648
    %v2467 = vsel %vm2465, %v2466, %v2464
    %v2468 = vadd.f32 %v2460, 1e-08
    %v2469 = vadd.f32 %v2467, 1e-08
    %v2470 = vrcp.pop %v2468
    %v2471 = vmul.f32 %v2442, %v2470
    %v2472 = vrcp.pop %v2469
    %v2473 = vmul.f32 %v2443, %v2472
    %v2474 = vlaneseq
    %v2475 = vshrl.u32 %v2474, 7
    %v2476 = vsub.s32 0, %v2475
    %v2477 = vrot.slane %v1490, %v2476
    %2480 = vrot.lane.b32.xlu0 %v2471, 64
    %v2481 = vpop.permute.xlu0 %2480
    %2482 = vrot.lane.b32.xlu0 %v2473, 64
    %v2483 = vpop.permute.xlu0 %2482
    %v2486 = vmul.f32 %v2477, %v2481
    %v2487 = vmul.f32 %v2477, %v2483
    %2489 = vrot.lane.b32.xlu0 %v2477, 96
    %v2490 = vpop.permute.xlu0 %2489
    %v2492 = vadd.f32 %v2486, %v2490
    %v2493 = vadd.f32 %v2487, %v2490
    %2496 = vrot.lane.b32.xlu0 %v2492, 64
    %v2497 = vpop.permute.xlu0 %2496
    %2498 = vrot.lane.b32.xlu0 %v2493, 64
    %v2499 = vpop.permute.xlu0 %2498
    %v2502 = vadd.f32 %v1486, %v2497
    %v2503 = vadd.f32 %v1487, %v2499
    %v2505 = vlaneseq
    %v2506 = vshrl.u32 %v2505, 7
    %v2507 = vsub.s32 0, %v2506
    %v2508 = vrot.slane %v1489, %v2507
    %v2509 = vlaneseq
    %v2510 = vshrl.u32 %v2509, 7
    %v2511 = vsub.s32 2, %v2510
    %v2512 = vrot.slane %v1489, %v2511
    %v2515 = vlaneseq
    %v2516 = vshrl.u32 %v2515, 7
    %v2517 = vsub.s32 0, %v2516
    %v2518 = vrot.slane %v2508, %v2517
    %v2519 = vlaneseq
    %v2520 = vshrl.u32 %v2519, 7
    %v2521 = vsub.s32 0, %v2520
    %v2522 = vrot.slane %v2512, %v2521
    %2525 = vrot.lane.b32.xlu0 %v2518, 32
    %v2526 = vpop.permute.xlu0 %2525
    %2527 = vrot.lane.b32.xlu0 %v2522, 32
    %v2528 = vpop.permute.xlu0 %2527
    %v2529 = vsel %vm124, %v2526, %v2528
    %v2532 = vsel %vm124, %v2502, 0
    %v2535 = vsel %vm124, %v2503, 0
    %2537 = vmatprep.subr.mxu0 0.0
    %2538 = vmatpush1.msra.mxu0 %v1491
    %2539 = vmatprep.subr.mxu0 0.0
    %2540 = vmatpush1.msra.mxu0 %v1492
    %2541 = vmatprep.subr.mxu0 0.0
    %2542 = vmatpush1.msra.mxu0 %v1493
    %2543 = vmatprep.subr.mxu0 0.0
    %2544 = vmatpush1.msra.mxu0 %v1494
    %2545 = vmatprep.subr.mxu0 0.0
    %2546 = vmatpush1.msra.mxu0 0.0
    %2547 = vmatprep.subr.mxu0 0.0
    %2548 = vmatpush1.msra.mxu0 0.0
    %2549 = vmatprep.subr.mxu0 0.0
    %2550 = vmatpush1.msra.mxu0 0.0
    %2551 = vmatprep.subr.mxu0 0.0
    %2552 = vmatpush1.msra.mxu0 0.0
    %2553 = vmatprep.subr.mxu0 0.0
    %2554 = vmatpush1.msra.mxu0 0.0
    %2555 = vmatprep.subr.mxu0 0.0
    %2556 = vmatpush1.msra.mxu0 0.0
    %2557 = vmatprep.subr.mxu0 0.0
    %2558 = vmatpush1.msra.mxu0 0.0
    %2559 = vmatprep.subr.mxu0 0.0
    %2560 = vmatpush1.msra.mxu0 0.0
    %2561 = vmatprep.subr.mxu0 0.0
    %2562 = vmatpush1.msra.mxu0 0.0
    %2563 = vmatprep.subr.mxu0 0.0
    %2564 = vmatpush1.msra.mxu0 0.0
    %2565 = vmatprep.subr.mxu0 0.0
    %2566 = vmatpush1.msra.mxu0 0.0
    %2567 = vmatprep.subr.mxu0 0.0
    %2568 = vmatpush1.msra.mxu0 0.0
    %2569 = vmatprep.subr.mxu0 0.0
    %2570 = vmatpush1.msra.mxu0 0.0
    %2571 = vmatprep.subr.mxu0 0.0
    %2572 = vmatpush1.msra.mxu0 0.0
    %2573 = vmatprep.subr.mxu0 0.0
    %2574 = vmatpush1.msra.mxu0 0.0
    %2575 = vmatprep.subr.mxu0 0.0
    %2576 = vmatpush1.msra.mxu0 0.0
    %2577 = vmatprep.subr.mxu0 0.0
    %2578 = vmatpush1.msra.mxu0 0.0
    %2579 = vmatprep.subr.mxu0 0.0
    %2580 = vmatpush1.msra.mxu0 0.0
    %2581 = vmatprep.subr.mxu0 0.0
    %2582 = vmatpush1.msra.mxu0 0.0
    %2583 = vmatprep.subr.mxu0 0.0
    %2584 = vmatpush1.msra.mxu0 0.0
    %2585 = vmatprep.subr.mxu0 0.0
    %2586 = vmatpush1.msra.mxu0 0.0
    %2587 = vmatprep.subr.mxu0 0.0
    %2588 = vmatpush1.msra.mxu0 0.0
    %2589 = vmatprep.subr.mxu0 0.0
    %2590 = vmatpush1.msra.mxu0 0.0
    %2591 = vmatprep.subr.mxu0 0.0
    %2592 = vmatpush1.msra.mxu0 0.0
    %2593 = vmatprep.subr.mxu0 0.0
    %2594 = vmatpush1.msra.mxu0 0.0
    %2595 = vmatprep.subr.mxu0 0.0
    %2596 = vmatpush1.msra.mxu0 0.0
    %2597 = vmatprep.subr.mxu0 0.0
    %2598 = vmatpush1.msra.mxu0 0.0
    %2599 = vmatprep.subr.mxu0 0.0
    %2600 = vmatpush1.msra.mxu0 0.0
    %2601 = vmatprep.mubr.f32.mxu0 0.0
    %2602 = vmatmul.mubr.f32.gmra.mrb[0].mxu0 %v2532
    %v2603 = vpop.f32.mrb[0].mxu0
    %v2604 = vadd.f32 %v2529, %v2603
    %v2605 = vpop.f32.mrb[0].mxu0
    %2606 = vmatprep.mubr.f32.mxu0 0.0
    %2607 = vmatmul.mubr.f32.gmra.mrb[0].mxu0 %v2535
    %v2608 = vpop.f32.mrb[0].mxu0
    %v2609 = vadd.f32 %v2529, %v2608
    %v2610 = vpop.f32.mrb[0].mxu0
    %2611 = vdwg.mxu0
    %v2612 = vmul.f32 %v2604, 0.5
    %v2613 = vmul.f32 %v2609, 0.5
    %v2614 = vmul.f32 %v2604, %v2604
    %v2615 = vmul.f32 %v2609, %v2609
    %v2616 = vmul.f32 %v2604, %v2614
    %v2617 = vmul.f32 %v2609, %v2615
    %v2618 = vmul.f32 %v2616, 0.0044715
    %v2619 = vmul.f32 %v2617, 0.0044715
    %v2620 = vadd.f32 %v2604, %v2618
    %v2621 = vadd.f32 %v2609, %v2619
    %v2622 = vmul.f32 %v2620, 0.7978846
    %v2623 = vmul.f32 %v2621, 0.7978846
    %v2624 = vtanh.pop %v2622
    %v2625 = vtanh.pop %v2623
    %v2626 = vadd.f32 %v2624, 1.0
    %v2627 = vadd.f32 %v2625, 1.0
    %v2628 = vmul.f32 %v2612, %v2626
    %v2629 = vmul.f32 %v2613, %v2627
    %2638 = vrot.lane.b32.xlu0 %v213, 96
    %v2639 = vpop.permute.xlu0 %2638
    %2640 = vrot.lane.b32.xlu0 %v214, 96
    %v2641 = vpop.permute.xlu0 %2640
    %2642 = vrot.lane.b32.xlu0 %v215, 96
    %v2643 = vpop.permute.xlu0 %2642
    %2644 = vrot.lane.b32.xlu0 %v216, 96
    %v2645 = vpop.permute.xlu0 %2644
    %2646 = vrot.lane.b32.xlu0 %v217, 96
    %v2647 = vpop.permute.xlu0 %2646
    %2648 = vrot.lane.b32.xlu0 %v218, 96
    %v2649 = vpop.permute.xlu0 %2648
    %2650 = vrot.lane.b32.xlu0 %v219, 96
    %v2651 = vpop.permute.xlu0 %2650
    %2652 = vrot.lane.b32.xlu0 %v220, 96
    %v2653 = vpop.permute.xlu0 %2652
    %v2663 = vsel %vm115, %v2628, 0
    %v2666 = vsel %vm115, %v2629, 0
    %2668 = vmatprep.subr.mxu0 0.0
    %2669 = vmatpush1.msra.mxu0 %v2639
    %2670 = vmatprep.subr.mxu0 0.0
    %2671 = vmatpush1.msra.mxu0 %v2641
    %2672 = vmatprep.subr.mxu0 0.0
    %2673 = vmatpush1.msra.mxu0 %v2643
    %2674 = vmatprep.subr.mxu0 0.0
    %2675 = vmatpush1.msra.mxu0 %v2645
    %2676 = vmatprep.subr.mxu0 0.0
    %2677 = vmatpush1.msra.mxu0 %v2647
    %2678 = vmatprep.subr.mxu0 0.0
    %2679 = vmatpush1.msra.mxu0 %v2649
    %2680 = vmatprep.subr.mxu0 0.0
    %2681 = vmatpush1.msra.mxu0 %v2651
    %2682 = vmatprep.subr.mxu0 0.0
    %2683 = vmatpush1.msra.mxu0 %v2653
    %2684 = vmatprep.subr.mxu0 0.0
    %2685 = vmatpush1.msra.mxu0 0.0
    %2686 = vmatprep.subr.mxu0 0.0
    %2687 = vmatpush1.msra.mxu0 0.0
    %2688 = vmatprep.subr.mxu0 0.0
    %2689 = vmatpush1.msra.mxu0 0.0
    %2690 = vmatprep.subr.mxu0 0.0
    %2691 = vmatpush1.msra.mxu0 0.0
    %2692 = vmatprep.subr.mxu0 0.0
    %2693 = vmatpush1.msra.mxu0 0.0
    %2694 = vmatprep.subr.mxu0 0.0
    %2695 = vmatpush1.msra.mxu0 0.0
    %2696 = vmatprep.subr.mxu0 0.0
    %2697 = vmatpush1.msra.mxu0 0.0
    %2698 = vmatprep.subr.mxu0 0.0
    %2699 = vmatpush1.msra.mxu0 0.0
    %2700 = vmatprep.subr.mxu0 0.0
    %2701 = vmatpush1.msra.mxu0 0.0
    %2702 = vmatprep.subr.mxu0 0.0
    %2703 = vmatpush1.msra.mxu0 0.0
    %2704 = vmatprep.subr.mxu0 0.0
    %2705 = vmatpush1.msra.mxu0 0.0
    %2706 = vmatprep.subr.mxu0 0.0
    %2707 = vmatpush1.msra.mxu0 0.0
    %2708 = vmatprep.subr.mxu0 0.0
    %2709 = vmatpush1.msra.mxu0 0.0
    %2710 = vmatprep.subr.mxu0 0.0
    %2711 = vmatpush1.msra.mxu0 0.0
    %2712 = vmatprep.subr.mxu0 0.0
    %2713 = vmatpush1.msra.mxu0 0.0
    %2714 = vmatprep.subr.mxu0 0.0
    %2715 = vmatpush1.msra.mxu0 0.0
    %2716 = vmatprep.subr.mxu0 0.0
    %2717 = vmatpush1.msra.mxu0 0.0
    %2718 = vmatprep.subr.mxu0 0.0
    %2719 = vmatpush1.msra.mxu0 0.0
    %2720 = vmatprep.subr.mxu0 0.0
    %2721 = vmatpush1.msra.mxu0 0.0
    %2722 = vmatprep.subr.mxu0 0.0
    %2723 = vmatpush1.msra.mxu0 0.0
    %2724 = vmatprep.subr.mxu0 0.0
    %2725 = vmatpush1.msra.mxu0 0.0
    %2726 = vmatprep.subr.mxu0 0.0
    %2727 = vmatpush1.msra.mxu0 0.0
    %2728 = vmatprep.subr.mxu0 0.0
    %2729 = vmatpush1.msra.mxu0 0.0
    %2730 = vmatprep.subr.mxu0 0.0
    %2731 = vmatpush1.msra.mxu0 0.0
    %2732 = vmatprep.mubr.f32.mxu0 0.0
    %2733 = vmatmul.mubr.f32.gmra.mrb[0].mxu0 %v2663
    %v2734 = vpop.f32.mrb[0].mxu0
    %v2735 = vadd.f32 %v2490, %v2734
    %v2736 = vpop.f32.mrb[0].mxu0
    %2737 = vmatprep.mubr.f32.mxu0 0.0
    %2738 = vmatmul.mubr.f32.gmra.mrb[0].mxu0 %v2666
    %v2739 = vpop.f32.mrb[0].mxu0
    %v2740 = vadd.f32 %v2490, %v2739
    %v2741 = vpop.f32.mrb[0].mxu0
    %2742 = vdwg.mxu0
    %v2743 = vsel %vm124, %v2735, 0.0
    %2744 = vadd.xlane.f32.xlu0 %v2743
    %v2745 = vpop.xlane.xlu0 %2744
    %v2746 = vsel %vm124, %v2740, 0.0
    %2747 = vadd.xlane.f32.xlu0 %v2746
    %v2748 = vpop.xlane.xlu0 %2747
    %v2749 = vmul.f32 %v2745, %v1149
    %v2750 = vmul.f32 %v2748, %v1149
    %v2751 = vsub.f32 %v2735, %v2749
    %v2752 = vsub.f32 %v2740, %v2750
    %v2753 = vmul.f32 %v2751, %v2751
    %v2754 = vmul.f32 %v2752, %v2752
    %v2755 = vsel %vm124, %v2753, 0.0
    %2756 = vadd.xlane.f32.xlu0 %v2755
    %v2757 = vpop.xlane.xlu0 %2756
    %v2758 = vsel %vm124, %v2754, 0.0
    %2759 = vadd.xlane.f32.xlu0 %v2758
    %v2760 = vpop.xlane.xlu0 %2759
    %v2761 = vmul.f32 %v2757, %v1162
    %v2762 = vmul.f32 %v2760, %v1162
    %v2763 = vrsqrt.pop %v2761
    %v2764 = vmul.f32 %v2761, %v2763
    %vm2765 = vcmp.eq.f32.partialorder %v2761, inf
    %v2766 = vsel %vm2765, %v2761, %v2764
    %vm2767 = vcmp.eq.f32.partialorder %v2761, 0.0
    %v2768 = vand.u32 %v2761, 2147483648
    %v2769 = vsel %vm2767, %v2768, %v2766
    %v2770 = vrsqrt.pop %v2762
    %v2771 = vmul.f32 %v2762, %v2770
    %vm2772 = vcmp.eq.f32.partialorder %v2762, inf
    %v2773 = vsel %vm2772, %v2762, %v2771
    %vm2774 = vcmp.eq.f32.partialorder %v2762, 0.0
    %v2775 = vand.u32 %v2762, 2147483648
    %v2776 = vsel %vm2774, %v2775, %v2773
    %v2777 = vadd.f32 %v2769, 1e-08
    %v2778 = vadd.f32 %v2776, 1e-08
    %v2779 = vrcp.pop %v2777
    %v2780 = vmul.f32 %v2751, %v2779
    %v2781 = vrcp.pop %v2778
    %v2782 = vmul.f32 %v2752, %v2781
    %2785 = vrot.lane.b32.xlu0 %v2780, 64
    %v2786 = vpop.permute.xlu0 %2785
    %2787 = vrot.lane.b32.xlu0 %v2782, 64
    %v2788 = vpop.permute.xlu0 %2787
    %v2791 = vmul.f32 %v2477, %v2786
    %v2792 = vmul.f32 %v2477, %v2788
    %v2793 = vadd.f32 %v2791, %v2490
    %v2794 = vadd.f32 %v2792, %v2490
    %2797 = vrot.lane.b32.xlu0 %v2793, 64
    %v2798 = vpop.permute.xlu0 %2797
    %2799 = vrot.lane.b32.xlu0 %v2794, 64
    %v2800 = vpop.permute.xlu0 %2799
    %v2803 = vadd.f32 %v2502, %v2798
    %v2804 = vadd.f32 %v2503, %v2800
    %2805 = vst.msk [vmem:[#allocation10] sm:$0xff] %vm124, %v2803
    %2806 = vst.msk [vmem:[#allocation10 + $0x8] sm:$0xff] %vm124, %v2804
    // Predicated region
    $region38: #{tpu_custom_call.1} parent=1 // pred_check
      _
    $region39: #{tpu_custom_call.1} parent=1 // pred_check_branch
      %2808 = sbr.rel (0) target = $region41
    $region40: #{tpu_custom_call.1} parent=1 // pred_region
      %s2810 = ssub.s32 256, 256
      %2811 = vsyncadd [#allocation4], %s2810
      %s2812 = sshll.u32 [#allocation10], 4
      %s2813 = int_to_ptr.vmem [resolvable:$true] %s2812
      %2818 = dma.vmem_to_hbm [thread:$0]  %s2813, 256, %s5, [#allocation4], 128, 128, 8
    $region41: #{tpu_custom_call.1} parent=1 // pred_fallthru
      _
    // Predicated region
    $region42: #{tpu_custom_call.1} parent=1 // pred_check
      _
    $region43: #{tpu_custom_call.1} parent=1 // pred_check_branch
      %2820 = sbr.rel (0) target = $region45
    $region44: #{tpu_custom_call.1} parent=1 // pred_region
      %2821 = dma.done [#allocation4], 256
    $region45: #{tpu_custom_call.1} parent=1 // pred_fallthru
      _
    %2822 = vsyncpa [#allocation3], 1
    %2823 = vsyncpa [#allocation6], 1
    %2824 = vsyncpa [#allocation9], 1
    %2825 = vsyncpa [#allocation4], 1

</llo_original>
